<compile_context>
chip_gen: v5e
topology: v5e:2x2
jax: 0.10.0
libtpu: 0.0.40
codegen_flags: <defaults>
</compile_context>

<pallas_src>
import jax
import jax.numpy as jnp
from jax import lax
from jax.experimental import pallas as pl
from jax.experimental.pallas import tpu as pltpu

NUM_BLOCKS = 5   # ResBlocks
KSIZE = 5        # Conv1d kernel width
RES_SCALE = 0.3


# ------------------------------- Pallas kernel --------------------------------

def generator_kernel(noise_ref, w1_ref, b1_ref, rw_ref, rb_ref, cw_ref, cb_ref,
                     out_ref, x_ref):
    # noise_ref: (TB, NZ)          bf16
    # w1_ref:    (NZ, L*C)         bf16     b1_ref: (1, L*C)        f32
    # rw_ref:    (5, 2, L*C, L*C)  bf16     rb_ref: (5, 2, 1, L*C)  f32
    # cw_ref:    (L*C, L*V)        bf16     cb_ref: (1, L*V)        f32
    # out_ref:   (TB, L*V)
    # x_ref:     (TB, L*C) f32 VMEM scratch holding the residual slab.

    # fc1: one fat matmul; residual slab kept in f32 in VMEM scratch.
    x_ref[...] = jnp.dot(noise_ref[...], w1_ref[...],
                         preferred_element_type=jnp.float32) + b1_ref[...]

    for blk in range(NUM_BLOCKS):
        # bf16 ReLU (cast first, then max) -> packed vregs, bit-identical.
        t = jnp.maximum(x_ref[...].astype(jnp.bfloat16), 0.0)
        t = jnp.dot(t, rw_ref[blk, 0],
                    preferred_element_type=jnp.float32) + rb_ref[blk, 0]
        t = jnp.maximum(t.astype(jnp.bfloat16), 0.0)
        t = jnp.dot(t, rw_ref[blk, 1],
                    preferred_element_type=jnp.float32) + rb_ref[blk, 1]
        x_ref[...] = x_ref[...] + RES_SCALE * t          # f32 residual accumulate

    y = jnp.dot(x_ref[...].astype(jnp.bfloat16), cw_ref[...],
                preferred_element_type=jnp.float32) + cb_ref[...]
    out_ref[...] = jnp.tanh(y).astype(out_ref.dtype)     # lane-dense store


# --------------------------------- wrapper ------------------------------------

def generator_forward(noise, kparams, *, seq_len, vocab, tile_b=512,
                      out_dtype=jnp.float32):
    w1, b1, rw, rb, cw, cb = kparams
    weights = (w1, b1, rw, rb, cw, cb)
    B, NZ = noise.shape
    LC = w1.shape[1]
    LV = cw.shape[1]

    # ---- batch tiling: big tiles amortize per-step overhead; even number of
    #      grid steps keeps both TensorCores busy on v7x. --------------------
    if B <= tile_b:
        TB, Bp = B, B                      # single step; block == full array dim
    else:
        TB = tile_b
        steps = pl.cdiv(B, TB)
        if steps > 1 and steps % 2 == 1:   # prefer an even step count (2 TCs)
            steps += 1
            TB = max(8, pl.cdiv(pl.cdiv(B, steps), 8) * 8)
        Bp = pl.cdiv(B, TB) * TB
    noise_p = jnp.pad(noise.astype(jnp.bfloat16), ((0, Bp - B), (0, 0)))

    # ---- explicit VMEM budget: weights (x2 worst case) + double-buffered
    #      noise/out tiles + residual scratch + headroom. --------------------
    wbytes = sum(int(a.size) * a.dtype.itemsize for a in weights)
    iobytes = 2 * (TB * NZ * 2 + TB * LV * jnp.dtype(out_dtype).itemsize)
    scbytes = TB * LC * 4
    vmem_limit = int(min(64 << 20,
                         max(16 << 20, 2 * wbytes + iobytes + scbytes + (4 << 20))))

    def build(single_buffer_weights):
        def wspec(a):
            nd = a.ndim
            if single_buffer_weights:
                # Grid-invariant weights: fetched once -> single buffer.
                return pl.BlockSpec(a.shape, lambda i: (0,) * nd,
                                    pipeline_mode=pl.Buffered(1))
            return pl.BlockSpec(a.shape, lambda i: (0,) * nd)

        return pl.pallas_call(
            generator_kernel,
            out_shape=jax.ShapeDtypeStruct((Bp, LV), out_dtype),
            grid=(Bp // TB,),
            in_specs=[pl.BlockSpec((TB, NZ), lambda i: (i, 0))]    # noise tile
                     + [wspec(a) for a in weights],
            out_specs=pl.BlockSpec((TB, LV), lambda i: (i, 0)),
            scratch_shapes=[pltpu.VMEM((TB, LC), jnp.float32)],    # residual slab
            compiler_params=pltpu.CompilerParams(
                dimension_semantics=("parallel",),
                vmem_limit_bytes=vmem_limit),
        )

    try:
        out2d = build(True)(noise_p, *weights)
    except Exception:
        # pl.Buffered(1) unsupported on this jax build -> default buffering.
        out2d = build(False)(noise_p, *weights)

    return out2d[:B].reshape(B, seq_len, vocab)


# ------------------------- parameters (deterministic) -------------------------

def init_pt_params(key, C, L, V, NZ):
    """Parameters in PyTorch layout: Linear [out,in], Conv1d [out,in,k]."""
    ks = jax.random.split(key, 6)
    s = 0.05
    W1 = jax.random.normal(ks[0], (C * L, NZ), jnp.float32) * s
    b1 = jax.random.normal(ks[1], (C * L,), jnp.float32) * s
    rw = jax.random.normal(ks[2], (NUM_BLOCKS, 2, C, C, KSIZE), jnp.float32) * s
    rb = jax.random.normal(ks[3], (NUM_BLOCKS, 2, C), jnp.float32) * s
    cw = jax.random.normal(ks[4], (V, C, 1), jnp.float32) * s
    cb = jax.random.normal(ks[5], (V,), jnp.float32) * s
    return W1, b1, rw, rb, cw, cb


def _lift_conv5(w, L):
    """Conv1d(C_in->C_out, K, pad=K//2) as a banded (L*C_in, L*C_out) matrix
    acting on the flattened seq-major / channel-minor activation vector.

    Band density is K/L: good for small seq_len (L=8 here).  For L >> 16 the
    dense lift wastes MXU FLOPs and O(L^2*C^2) weight bytes; restructure as
    grouped band matmuls (skip zero L-blocks) before scaling seq_len."""
    C_out, C_in, K = w.shape
    li = jnp.arange(L)[:, None]
    lo = jnp.arange(L)[None, :]
    k = li - lo + K // 2
    valid = (k >= 0) & (k < K)
    kc = jnp.clip(k, 0, K - 1)
    w_t = jnp.transpose(w, (2, 1, 0))                        # (K, C_in, C_out)
    wk = jnp.where(valid[:, :, None, None], w_t[kc], 0.0)    # (L, L, C_in, C_out)
    return jnp.transpose(wk, (0, 2, 1, 3)).reshape(L * C_in, L * C_out)


def _lift_conv1(w, L):
    """Conv1d(C->V, 1) as a block-diagonal (L*C, L*V) matrix."""
    V, C, _ = w.shape
    blk = w[:, :, 0].T                                       # (C, V)
    M = jnp.einsum('ab,cv->acbv', jnp.eye(L, dtype=blk.dtype), blk)
    return M.reshape(L * C, L * V)


def to_kernel_params(pt, C, L, V, NZ):
    """Re-layout / lift PyTorch params for the (TB, L*C) slab kernel."""
    W1, b1, rw, rb, cw, cb = pt
    # fc1 emitted directly in seq-major/channel-minor order:
    #   w1k[d, l*C + c] = W1[c*L + l, d]
    w1k = jnp.transpose(W1.reshape(C, L, NZ), (1, 0, 2)).reshape(L * C, NZ).T
    b1k = b1.reshape(C, L).T.reshape(1, L * C)
    rwk = jnp.stack([jnp.stack([_lift_conv5(rw[i, j], L) for j in range(2)])
                     for i in range(NUM_BLOCKS)])            # (5, 2, L*C, L*C)
    rbk = jnp.tile(rb, (1, 1, L)).reshape(NUM_BLOCKS, 2, 1, L * C)
    cwk = _lift_conv1(cw, L)                                 # (L*C, L*V)
    cbk = jnp.tile(cb, (L,)).reshape(1, L * V)
    return (w1k.astype(jnp.bfloat16), b1k,
            rwk.astype(jnp.bfloat16), rbk,
            cwk.astype(jnp.bfloat16), cbk)


# ------------------------------ pure-JAX reference ----------------------------

def ref_forward(noise, pt, *, B, L, C, V):
    W1, b1, rw, rb, cw, cb = pt
    dn = ("NCH", "OIH", "NCH")
    hp = lax.Precision.HIGHEST

    h = jnp.dot(noise, W1.T, precision=hp) + b1
    x = h.reshape(B, C, L)
    for blk in range(NUM_BLOCKS):
        t = jax.nn.relu(x)
        t = lax.conv_general_dilated(t, rw[blk, 0], (1,), [(2, 2)],
                                     dimension_numbers=dn, precision=hp)
        t = t + rb[blk, 0][None, :, None]
        t = jax.nn.relu(t)
        t = lax.conv_general_dilated(t, rw[blk, 1], (1,), [(2, 2)],
                                     dimension_numbers=dn, precision=hp)
        t = t + rb[blk, 1][None, :, None]
        x = x + RES_SCALE * t
    out = lax.conv_general_dilated(x, cw, (1,), [(0, 0)],
                                   dimension_numbers=dn, precision=hp)
    out = out + cb[None, :, None]
    out = jnp.transpose(out, (0, 2, 1))          # transpose(1, 2)
    out = jnp.tanh(out.reshape(B * L, V))        # view + tanh
    return out.reshape(B, L, V)


if __name__ == "__main__":
    # Small shapes consistent with the module: batch=2, seq_len=8,
    # layer_dim (hidden)=32, vocab (len(charmap))=16, noise dim fixed at 128.
    B, L, C, V, NZ = 2, 8, 32, 16, 128

    key = jax.random.PRNGKey(0)
    kp, kn = jax.random.split(key)
    pt_params = init_pt_params(kp, C, L, V, NZ)
    noise = jax.random.normal(kn, (B, NZ), jnp.float32)

    kparams = to_kernel_params(pt_params, C, L, V, NZ)
    out = generator_forward(noise, kparams, seq_len=L, vocab=V)
    out = jax.block_until_ready(out)

    ref = ref_forward(noise, pt_params, B=B, L=L, C=C, V=V)
    err = float(jnp.max(jnp.abs(out - ref)))
    assert out.shape == (B, L, V), out.shape
    # bf16 matmul operands, f32 accumulation -> small rounding vs f32 reference.
    assert err < 1e-2, f"max abs err {err}"
    print("KERNEL_OK")
</pallas_src>

<mosaic_0001>
module attributes {stable_mosaic.version = 11 : i64} {
  func.func @generator_kernel(%arg0: i32, %arg1: memref<2x128xbf16, #tpu.memory_space<vmem>>, %arg2: memref<128x256xbf16, #tpu.memory_space<vmem>>, %arg3: memref<1x256xf32, #tpu.memory_space<vmem>>, %arg4: memref<5x2x256x256xbf16, #tpu.memory_space<vmem>>, %arg5: memref<5x2x1x256xf32, #tpu.memory_space<vmem>>, %arg6: memref<256x128xbf16, #tpu.memory_space<vmem>>, %arg7: memref<1x128xf32, #tpu.memory_space<vmem>>, %arg8: memref<2x128xf32, #tpu.memory_space<vmem>>, %arg9: memref<2x256xf32, #tpu.memory_space<vmem>>) attributes {dimension_semantics = [#tpu.dimension_semantics<parallel>], iteration_bounds = array<i64: 1>, scalar_prefetch = 0 : i64, scratch_operands = 1 : i64, tpu.core_type = #tpu.core_type<tc>, window_params = [{transform_indices = @transform_0, window_bounds = array<i64: 2, 128>}, {pipeline_mode = #tpu.pipeline_mode<synchronous>, transform_indices = @transform_1, window_bounds = array<i64: 128, 256>}, {pipeline_mode = #tpu.pipeline_mode<synchronous>, transform_indices = @transform_2, window_bounds = array<i64: 1, 256>}, {pipeline_mode = #tpu.pipeline_mode<synchronous>, transform_indices = @transform_3, window_bounds = array<i64: 5, 2, 256, 256>}, {pipeline_mode = #tpu.pipeline_mode<synchronous>, transform_indices = @transform_4, window_bounds = array<i64: 5, 2, 1, 256>}, {pipeline_mode = #tpu.pipeline_mode<synchronous>, transform_indices = @transform_5, window_bounds = array<i64: 256, 128>}, {pipeline_mode = #tpu.pipeline_mode<synchronous>, transform_indices = @transform_6, window_bounds = array<i64: 1, 128>}, {transform_indices = @transform_7, window_bounds = array<i64: 2, 128>}]} {
    %c0 = arith.constant 0 : index
    %c0_0 = arith.constant 0 : index
    %0 = vector.load %arg1[%c0, %c0_0] : memref<2x128xbf16, #tpu.memory_space<vmem>>, vector<2x128xbf16>
    %c0_1 = arith.constant 0 : index
    %c0_2 = arith.constant 0 : index
    %1 = vector.load %arg2[%c0_1, %c0_2] : memref<128x256xbf16, #tpu.memory_space<vmem>>, vector<128x256xbf16>
    %cst = arith.constant dense<0.000000e+00> : vector<2x256xf32>
    %2 = tpu.matmul %0, %1, %cst {dimension_numbers = #tpu.dot_dimension_numbers<[1], [0], [0], [1], [0, 0, 1, 1], [], []>} : vector<2x128xbf16>, vector<128x256xbf16>, vector<2x256xf32> -> vector<2x256xf32>
    %c0_3 = arith.constant 0 : index
    %c0_4 = arith.constant 0 : index
    %3 = vector.load %arg3[%c0_3, %c0_4] : memref<1x256xf32, #tpu.memory_space<vmem>>, vector<1x256xf32>
    %4 = vector.broadcast %3 : vector<1x256xf32> to vector<2x256xf32>
    %5 = arith.addf %2, %4 : vector<2x256xf32>
    %c0_5 = arith.constant 0 : index
    %c0_6 = arith.constant 0 : index
    %6 = vector.load %arg9[%c0_5, %c0_6] : memref<2x256xf32, #tpu.memory_space<vmem>>, vector<2x256xf32>
    tpu.vector_store %arg9[%c0_5, %c0_6], %5 {strides = array<i32>} : memref<2x256xf32, #tpu.memory_space<vmem>>, vector<2x256xf32>,
    %c0_7 = arith.constant 0 : index
    %c0_8 = arith.constant 0 : index
    %7 = vector.load %arg9[%c0_7, %c0_8] : memref<2x256xf32, #tpu.memory_space<vmem>>, vector<2x256xf32>
    %8 = arith.truncf %7 : vector<2x256xf32> to vector<2x256xbf16>
    %cst_9 = arith.constant 0.000000e+00 : bf16
    %9 = vector.broadcast %cst_9 : bf16 to vector<2x256xbf16>
    %10 = arith.maximumf %8, %9 : vector<2x256xbf16>
    %c0_10 = arith.constant 0 : index
    %c0_11 = arith.constant 0 : index
    %c0_12 = arith.constant 0 : index
    %c0_13 = arith.constant 0 : index
    %11 = vector.load %arg4[%c0_10, %c0_11, %c0_12, %c0_13] : memref<5x2x256x256xbf16, #tpu.memory_space<vmem>>, vector<1x1x256x256xbf16>
    %12 = vector.shape_cast %11 : vector<1x1x256x256xbf16> to vector<256x256xbf16>
    %cst_14 = arith.constant dense<0.000000e+00> : vector<2x256xf32>
    %13 = tpu.matmul %10, %12, %cst_14 {dimension_numbers = #tpu.dot_dimension_numbers<[1], [0], [0], [1], [0, 0, 1, 1], [], []>} : vector<2x256xbf16>, vector<256x256xbf16>, vector<2x256xf32> -> vector<2x256xf32>
    %c0_15 = arith.constant 0 : index
    %c0_16 = arith.constant 0 : index
    %c0_17 = arith.constant 0 : index
    %c0_18 = arith.constant 0 : index
    %14 = vector.load %arg5[%c0_15, %c0_16, %c0_17, %c0_18] : memref<5x2x1x256xf32, #tpu.memory_space<vmem>>, vector<1x1x1x256xf32>
    %15 = vector.shape_cast %14 : vector<1x1x1x256xf32> to vector<1x256xf32>
    %16 = vector.broadcast %15 : vector<1x256xf32> to vector<2x256xf32>
    %17 = arith.addf %13, %16 : vector<2x256xf32>
    %18 = arith.truncf %17 : vector<2x256xf32> to vector<2x256xbf16>
    %cst_19 = arith.constant 0.000000e+00 : bf16
    %19 = vector.broadcast %cst_19 : bf16 to vector<2x256xbf16>
    %20 = arith.maximumf %18, %19 : vector<2x256xbf16>
    %c0_20 = arith.constant 0 : index
    %c1 = arith.constant 1 : index
    %c0_21 = arith.constant 0 : index
    %c0_22 = arith.constant 0 : index
    %21 = vector.load %arg4[%c0_20, %c1, %c0_21, %c0_22] : memref<5x2x256x256xbf16, #tpu.memory_space<vmem>>, vector<1x1x256x256xbf16>
    %22 = vector.shape_cast %21 : vector<1x1x256x256xbf16> to vector<256x256xbf16>
    %cst_23 = arith.constant dense<0.000000e+00> : vector<2x256xf32>
    %23 = tpu.matmul %20, %22, %cst_23 {dimension_numbers = #tpu.dot_dimension_numbers<[1], [0], [0], [1], [0, 0, 1, 1], [], []>} : vector<2x256xbf16>, vector<256x256xbf16>, vector<2x256xf32> -> vector<2x256xf32>
    %c0_24 = arith.constant 0 : index
    %c1_25 = arith.constant 1 : index
    %c0_26 = arith.constant 0 : index
    %c0_27 = arith.constant 0 : index
    %24 = vector.load %arg5[%c0_24, %c1_25, %c0_26, %c0_27] : memref<5x2x1x256xf32, #tpu.memory_space<vmem>>, vector<1x1x1x256xf32>
    %25 = vector.shape_cast %24 : vector<1x1x1x256xf32> to vector<1x256xf32>
    %26 = vector.broadcast %25 : vector<1x256xf32> to vector<2x256xf32>
    %27 = arith.addf %23, %26 : vector<2x256xf32>
    %c0_28 = arith.constant 0 : index
    %c0_29 = arith.constant 0 : index
    %28 = vector.load %arg9[%c0_28, %c0_29] : memref<2x256xf32, #tpu.memory_space<vmem>>, vector<2x256xf32>
    %cst_30 = arith.constant 3.000000e-01 : f32
    %29 = vector.broadcast %cst_30 : f32 to vector<2x256xf32>
    %30 = arith.mulf %29, %27 : vector<2x256xf32>
    %31 = arith.addf %28, %30 : vector<2x256xf32>
    %c0_31 = arith.constant 0 : index
    %c0_32 = arith.constant 0 : index
    %32 = vector.load %arg9[%c0_31, %c0_32] : memref<2x256xf32, #tpu.memory_space<vmem>>, vector<2x256xf32>
    tpu.vector_store %arg9[%c0_31, %c0_32], %31 {strides = array<i32>} : memref<2x256xf32, #tpu.memory_space<vmem>>, vector<2x256xf32>,
    %c0_33 = arith.constant 0 : index
    %c0_34 = arith.constant 0 : index
    %33 = vector.load %arg9[%c0_33, %c0_34] : memref<2x256xf32, #tpu.memory_space<vmem>>, vector<2x256xf32>
    %34 = arith.truncf %33 : vector<2x256xf32> to vector<2x256xbf16>
    %cst_35 = arith.constant 0.000000e+00 : bf16
    %35 = vector.broadcast %cst_35 : bf16 to vector<2x256xbf16>
    %36 = arith.maximumf %34, %35 : vector<2x256xbf16>
    %c1_36 = arith.constant 1 : index
    %c0_37 = arith.constant 0 : index
    %c0_38 = arith.constant 0 : index
    %c0_39 = arith.constant 0 : index
    %37 = vector.load %arg4[%c1_36, %c0_37, %c0_38, %c0_39] : memref<5x2x256x256xbf16, #tpu.memory_space<vmem>>, vector<1x1x256x256xbf16>
    %38 = vector.shape_cast %37 : vector<1x1x256x256xbf16> to vector<256x256xbf16>
    %cst_40 = arith.constant dense<0.000000e+00> : vector<2x256xf32>
    %39 = tpu.matmul %36, %38, %cst_40 {dimension_numbers = #tpu.dot_dimension_numbers<[1], [0], [0], [1], [0, 0, 1, 1], [], []>} : vector<2x256xbf16>, vector<256x256xbf16>, vector<2x256xf32> -> vector<2x256xf32>
    %c1_41 = arith.constant 1 : index
    %c0_42 = arith.constant 0 : index
    %c0_43 = arith.constant 0 : index
    %c0_44 = arith.constant 0 : index
    %40 = vector.load %arg5[%c1_41, %c0_42, %c0_43, %c0_44] : memref<5x2x1x256xf32, #tpu.memory_space<vmem>>, vector<1x1x1x256xf32>
    %41 = vector.shape_cast %40 : vector<1x1x1x256xf32> to vector<1x256xf32>
    %42 = vector.broadcast %41 : vector<1x256xf32> to vector<2x256xf32>
    %43 = arith.addf %39, %42 : vector<2x256xf32>
    %44 = arith.truncf %43 : vector<2x256xf32> to vector<2x256xbf16>
    %cst_45 = arith.constant 0.000000e+00 : bf16
    %45 = vector.broadcast %cst_45 : bf16 to vector<2x256xbf16>
    %46 = arith.maximumf %44, %45 : vector<2x256xbf16>
    %c1_46 = arith.constant 1 : index
    %c1_47 = arith.constant 1 : index
    %c0_48 = arith.constant 0 : index
    %c0_49 = arith.constant 0 : index
    %47 = vector.load %arg4[%c1_46, %c1_47, %c0_48, %c0_49] : memref<5x2x256x256xbf16, #tpu.memory_space<vmem>>, vector<1x1x256x256xbf16>
    %48 = vector.shape_cast %47 : vector<1x1x256x256xbf16> to vector<256x256xbf16>
    %cst_50 = arith.constant dense<0.000000e+00> : vector<2x256xf32>
    %49 = tpu.matmul %46, %48, %cst_50 {dimension_numbers = #tpu.dot_dimension_numbers<[1], [0], [0], [1], [0, 0, 1, 1], [], []>} : vector<2x256xbf16>, vector<256x256xbf16>, vector<2x256xf32> -> vector<2x256xf32>
    %c1_51 = arith.constant 1 : index
    %c1_52 = arith.constant 1 : index
    %c0_53 = arith.constant 0 : index
    %c0_54 = arith.constant 0 : index
    %50 = vector.load %arg5[%c1_51, %c1_52, %c0_53, %c0_54] : memref<5x2x1x256xf32, #tpu.memory_space<vmem>>, vector<1x1x1x256xf32>
    %51 = vector.shape_cast %50 : vector<1x1x1x256xf32> to vector<1x256xf32>
    %52 = vector.broadcast %51 : vector<1x256xf32> to vector<2x256xf32>
    %53 = arith.addf %49, %52 : vector<2x256xf32>
    %c0_55 = arith.constant 0 : index
    %c0_56 = arith.constant 0 : index
    %54 = vector.load %arg9[%c0_55, %c0_56] : memref<2x256xf32, #tpu.memory_space<vmem>>, vector<2x256xf32>
    %cst_57 = arith.constant 3.000000e-01 : f32
    %55 = vector.broadcast %cst_57 : f32 to vector<2x256xf32>
    %56 = arith.mulf %55, %53 : vector<2x256xf32>
    %57 = arith.addf %54, %56 : vector<2x256xf32>
    %c0_58 = arith.constant 0 : index
    %c0_59 = arith.constant 0 : index
    %58 = vector.load %arg9[%c0_58, %c0_59] : memref<2x256xf32, #tpu.memory_space<vmem>>, vector<2x256xf32>
    tpu.vector_store %arg9[%c0_58, %c0_59], %57 {strides = array<i32>} : memref<2x256xf32, #tpu.memory_space<vmem>>, vector<2x256xf32>,
    %c0_60 = arith.constant 0 : index
    %c0_61 = arith.constant 0 : index
    %59 = vector.load %arg9[%c0_60, %c0_61] : memref<2x256xf32, #tpu.memory_space<vmem>>, vector<2x256xf32>
    %60 = arith.truncf %59 : vector<2x256xf32> to vector<2x256xbf16>
    %cst_62 = arith.constant 0.000000e+00 : bf16
    %61 = vector.broadcast %cst_62 : bf16 to vector<2x256xbf16>
    %62 = arith.maximumf %60, %61 : vector<2x256xbf16>
    %c2 = arith.constant 2 : index
    %c0_63 = arith.constant 0 : index
    %c0_64 = arith.constant 0 : index
    %c0_65 = arith.constant 0 : index
    %63 = vector.load %arg4[%c2, %c0_63, %c0_64, %c0_65] : memref<5x2x256x256xbf16, #tpu.memory_space<vmem>>, vector<1x1x256x256xbf16>
    %64 = vector.shape_cast %63 : vector<1x1x256x256xbf16> to vector<256x256xbf16>
    %cst_66 = arith.constant dense<0.000000e+00> : vector<2x256xf32>
    %65 = tpu.matmul %62, %64, %cst_66 {dimension_numbers = #tpu.dot_dimension_numbers<[1], [0], [0], [1], [0, 0, 1, 1], [], []>} : vector<2x256xbf16>, vector<256x256xbf16>, vector<2x256xf32> -> vector<2x256xf32>
    %c2_67 = arith.constant 2 : index
    %c0_68 = arith.constant 0 : index
    %c0_69 = arith.constant 0 : index
    %c0_70 = arith.constant 0 : index
    %66 = vector.load %arg5[%c2_67, %c0_68, %c0_69, %c0_70] : memref<5x2x1x256xf32, #tpu.memory_space<vmem>>, vector<1x1x1x256xf32>
    %67 = vector.shape_cast %66 : vector<1x1x1x256xf32> to vector<1x256xf32>
    %68 = vector.broadcast %67 : vector<1x256xf32> to vector<2x256xf32>
    %69 = arith.addf %65, %68 : vector<2x256xf32>
    %70 = arith.truncf %69 : vector<2x256xf32> to vector<2x256xbf16>
    %cst_71 = arith.constant 0.000000e+00 : bf16
    %71 = vector.broadcast %cst_71 : bf16 to vector<2x256xbf16>
    %72 = arith.maximumf %70, %71 : vector<2x256xbf16>
    %c2_72 = arith.constant 2 : index
    %c1_73 = arith.constant 1 : index
    %c0_74 = arith.constant 0 : index
    %c0_75 = arith.constant 0 : index
    %73 = vector.load %arg4[%c2_72, %c1_73, %c0_74, %c0_75] : memref<5x2x256x256xbf16, #tpu.memory_space<vmem>>, vector<1x1x256x256xbf16>
    %74 = vector.shape_cast %73 : vector<1x1x256x256xbf16> to vector<256x256xbf16>
    %cst_76 = arith.constant dense<0.000000e+00> : vector<2x256xf32>
    %75 = tpu.matmul %72, %74, %cst_76 {dimension_numbers = #tpu.dot_dimension_numbers<[1], [0], [0], [1], [0, 0, 1, 1], [], []>} : vector<2x256xbf16>, vector<256x256xbf16>, vector<2x256xf32> -> vector<2x256xf32>
    %c2_77 = arith.constant 2 : index
    %c1_78 = arith.constant 1 : index
    %c0_79 = arith.constant 0 : index
    %c0_80 = arith.constant 0 : index
    %76 = vector.load %arg5[%c2_77, %c1_78, %c0_79, %c0_80] : memref<5x2x1x256xf32, #tpu.memory_space<vmem>>, vector<1x1x1x256xf32>
    %77 = vector.shape_cast %76 : vector<1x1x1x256xf32> to vector<1x256xf32>
    %78 = vector.broadcast %77 : vector<1x256xf32> to vector<2x256xf32>
    %79 = arith.addf %75, %78 : vector<2x256xf32>
    %c0_81 = arith.constant 0 : index
    %c0_82 = arith.constant 0 : index
    %80 = vector.load %arg9[%c0_81, %c0_82] : memref<2x256xf32, #tpu.memory_space<vmem>>, vector<2x256xf32>
    %cst_83 = arith.constant 3.000000e-01 : f32
    %81 = vector.broadcast %cst_83 : f32 to vector<2x256xf32>
    %82 = arith.mulf %81, %79 : vector<2x256xf32>
    %83 = arith.addf %80, %82 : vector<2x256xf32>
    %c0_84 = arith.constant 0 : index
    %c0_85 = arith.constant 0 : index
    %84 = vector.load %arg9[%c0_84, %c0_85] : memref<2x256xf32, #tpu.memory_space<vmem>>, vector<2x256xf32>
    tpu.vector_store %arg9[%c0_84, %c0_85], %83 {strides = array<i32>} : memref<2x256xf32, #tpu.memory_space<vmem>>, vector<2x256xf32>,
    %c0_86 = arith.constant 0 : index
    %c0_87 = arith.constant 0 : index
    %85 = vector.load %arg9[%c0_86, %c0_87] : memref<2x256xf32, #tpu.memory_space<vmem>>, vector<2x256xf32>
    %86 = arith.truncf %85 : vector<2x256xf32> to vector<2x256xbf16>
    %cst_88 = arith.constant 0.000000e+00 : bf16
    %87 = vector.broadcast %cst_88 : bf16 to vector<2x256xbf16>
    %88 = arith.maximumf %86, %87 : vector<2x256xbf16>
    %c3 = arith.constant 3 : index
    %c0_89 = arith.constant 0 : index
    %c0_90 = arith.constant 0 : index
    %c0_91 = arith.constant 0 : index
    %89 = vector.load %arg4[%c3, %c0_89, %c0_90, %c0_91] : memref<5x2x256x256xbf16, #tpu.memory_space<vmem>>, vector<1x1x256x256xbf16>
    %90 = vector.shape_cast %89 : vector<1x1x256x256xbf16> to vector<256x256xbf16>
    %cst_92 = arith.constant dense<0.000000e+00> : vector<2x256xf32>
    %91 = tpu.matmul %88, %90, %cst_92 {dimension_numbers = #tpu.dot_dimension_numbers<[1], [0], [0], [1], [0, 0, 1, 1], [], []>} : vector<2x256xbf16>, vector<256x256xbf16>, vector<2x256xf32> -> vector<2x256xf32>
    %c3_93 = arith.constant 3 : index
    %c0_94 = arith.constant 0 : index
    %c0_95 = arith.constant 0 : index
    %c0_96 = arith.constant 0 : index
    %92 = vector.load %arg5[%c3_93, %c0_94, %c0_95, %c0_96] : memref<5x2x1x256xf32, #tpu.memory_space<vmem>>, vector<1x1x1x256xf32>
    %93 = vector.shape_cast %92 : vector<1x1x1x256xf32> to vector<1x256xf32>
    %94 = vector.broadcast %93 : vector<1x256xf32> to vector<2x256xf32>
    %95 = arith.addf %91, %94 : vector<2x256xf32>
    %96 = arith.truncf %95 : vector<2x256xf32> to vector<2x256xbf16>
    %cst_97 = arith.constant 0.000000e+00 : bf16
    %97 = vector.broadcast %cst_97 : bf16 to vector<2x256xbf16>
    %98 = arith.maximumf %96, %97 : vector<2x256xbf16>
    %c3_98 = arith.constant 3 : index
    %c1_99 = arith.constant 1 : index
    %c0_100 = arith.constant 0 : index
    %c0_101 = arith.constant 0 : index
    %99 = vector.load %arg4[%c3_98, %c1_99, %c0_100, %c0_101] : memref<5x2x256x256xbf16, #tpu.memory_space<vmem>>, vector<1x1x256x256xbf16>
    %100 = vector.shape_cast %99 : vector<1x1x256x256xbf16> to vector<256x256xbf16>
    %cst_102 = arith.constant dense<0.000000e+00> : vector<2x256xf32>
    %101 = tpu.matmul %98, %100, %cst_102 {dimension_numbers = #tpu.dot_dimension_numbers<[1], [0], [0], [1], [0, 0, 1, 1], [], []>} : vector<2x256xbf16>, vector<256x256xbf16>, vector<2x256xf32> -> vector<2x256xf32>
    %c3_103 = arith.constant 3 : index
    %c1_104 = arith.constant 1 : index
    %c0_105 = arith.constant 0 : index
    %c0_106 = arith.constant 0 : index
    %102 = vector.load %arg5[%c3_103, %c1_104, %c0_105, %c0_106] : memref<5x2x1x256xf32, #tpu.memory_space<vmem>>, vector<1x1x1x256xf32>
    %103 = vector.shape_cast %102 : vector<1x1x1x256xf32> to vector<1x256xf32>
    %104 = vector.broadcast %103 : vector<1x256xf32> to vector<2x256xf32>
    %105 = arith.addf %101, %104 : vector<2x256xf32>
    %c0_107 = arith.constant 0 : index
    %c0_108 = arith.constant 0 : index
    %106 = vector.load %arg9[%c0_107, %c0_108] : memref<2x256xf32, #tpu.memory_space<vmem>>, vector<2x256xf32>
    %cst_109 = arith.constant 3.000000e-01 : f32
    %107 = vector.broadcast %cst_109 : f32 to vector<2x256xf32>
    %108 = arith.mulf %107, %105 : vector<2x256xf32>
    %109 = arith.addf %106, %108 : vector<2x256xf32>
    %c0_110 = arith.constant 0 : index
    %c0_111 = arith.constant 0 : index
    %110 = vector.load %arg9[%c0_110, %c0_111] : memref<2x256xf32, #tpu.memory_space<vmem>>, vector<2x256xf32>
    tpu.vector_store %arg9[%c0_110, %c0_111], %109 {strides = array<i32>} : memref<2x256xf32, #tpu.memory_space<vmem>>, vector<2x256xf32>,
    %c0_112 = arith.constant 0 : index
    %c0_113 = arith.constant 0 : index
    %111 = vector.load %arg9[%c0_112, %c0_113] : memref<2x256xf32, #tpu.memory_space<vmem>>, vector<2x256xf32>
    %112 = arith.truncf %111 : vector<2x256xf32> to vector<2x256xbf16>
    %cst_114 = arith.constant 0.000000e+00 : bf16
    %113 = vector.broadcast %cst_114 : bf16 to vector<2x256xbf16>
    %114 = arith.maximumf %112, %113 : vector<2x256xbf16>
    %c4 = arith.constant 4 : index
    %c0_115 = arith.constant 0 : index
    %c0_116 = arith.constant 0 : index
    %c0_117 = arith.constant 0 : index
    %115 = vector.load %arg4[%c4, %c0_115, %c0_116, %c0_117] : memref<5x2x256x256xbf16, #tpu.memory_space<vmem>>, vector<1x1x256x256xbf16>
    %116 = vector.shape_cast %115 : vector<1x1x256x256xbf16> to vector<256x256xbf16>
    %cst_118 = arith.constant dense<0.000000e+00> : vector<2x256xf32>
    %117 = tpu.matmul %114, %116, %cst_118 {dimension_numbers = #tpu.dot_dimension_numbers<[1], [0], [0], [1], [0, 0, 1, 1], [], []>} : vector<2x256xbf16>, vector<256x256xbf16>, vector<2x256xf32> -> vector<2x256xf32>
    %c4_119 = arith.constant 4 : index
    %c0_120 = arith.constant 0 : index
    %c0_121 = arith.constant 0 : index
    %c0_122 = arith.constant 0 : index
    %118 = vector.load %arg5[%c4_119, %c0_120, %c0_121, %c0_122] : memref<5x2x1x256xf32, #tpu.memory_space<vmem>>, vector<1x1x1x256xf32>
    %119 = vector.shape_cast %118 : vector<1x1x1x256xf32> to vector<1x256xf32>
    %120 = vector.broadcast %119 : vector<1x256xf32> to vector<2x256xf32>
    %121 = arith.addf %117, %120 : vector<2x256xf32>
    %122 = arith.truncf %121 : vector<2x256xf32> to vector<2x256xbf16>
    %cst_123 = arith.constant 0.000000e+00 : bf16
    %123 = vector.broadcast %cst_123 : bf16 to vector<2x256xbf16>
    %124 = arith.maximumf %122, %123 : vector<2x256xbf16>
    %c4_124 = arith.constant 4 : index
    %c1_125 = arith.constant 1 : index
    %c0_126 = arith.constant 0 : index
    %c0_127 = arith.constant 0 : index
    %125 = vector.load %arg4[%c4_124, %c1_125, %c0_126, %c0_127] : memref<5x2x256x256xbf16, #tpu.memory_space<vmem>>, vector<1x1x256x256xbf16>
    %126 = vector.shape_cast %125 : vector<1x1x256x256xbf16> to vector<256x256xbf16>
    %cst_128 = arith.constant dense<0.000000e+00> : vector<2x256xf32>
    %127 = tpu.matmul %124, %126, %cst_128 {dimension_numbers = #tpu.dot_dimension_numbers<[1], [0], [0], [1], [0, 0, 1, 1], [], []>} : vector<2x256xbf16>, vector<256x256xbf16>, vector<2x256xf32> -> vector<2x256xf32>
    %c4_129 = arith.constant 4 : index
    %c1_130 = arith.constant 1 : index
    %c0_131 = arith.constant 0 : index
    %c0_132 = arith.constant 0 : index
    %128 = vector.load %arg5[%c4_129, %c1_130, %c0_131, %c0_132] : memref<5x2x1x256xf32, #tpu.memory_space<vmem>>, vector<1x1x1x256xf32>
    %129 = vector.shape_cast %128 : vector<1x1x1x256xf32> to vector<1x256xf32>
    %130 = vector.broadcast %129 : vector<1x256xf32> to vector<2x256xf32>
    %131 = arith.addf %127, %130 : vector<2x256xf32>
    %c0_133 = arith.constant 0 : index
    %c0_134 = arith.constant 0 : index
    %132 = vector.load %arg9[%c0_133, %c0_134] : memref<2x256xf32, #tpu.memory_space<vmem>>, vector<2x256xf32>
    %cst_135 = arith.constant 3.000000e-01 : f32
    %133 = vector.broadcast %cst_135 : f32 to vector<2x256xf32>
    %134 = arith.mulf %133, %131 : vector<2x256xf32>
    %135 = arith.addf %132, %134 : vector<2x256xf32>
    %c0_136 = arith.constant 0 : index
    %c0_137 = arith.constant 0 : index
    %136 = vector.load %arg9[%c0_136, %c0_137] : memref<2x256xf32, #tpu.memory_space<vmem>>, vector<2x256xf32>
    tpu.vector_store %arg9[%c0_136, %c0_137], %135 {strides = array<i32>} : memref<2x256xf32, #tpu.memory_space<vmem>>, vector<2x256xf32>,
    %c0_138 = arith.constant 0 : index
    %c0_139 = arith.constant 0 : index
    %137 = vector.load %arg9[%c0_138, %c0_139] : memref<2x256xf32, #tpu.memory_space<vmem>>, vector<2x256xf32>
    %138 = arith.truncf %137 : vector<2x256xf32> to vector<2x256xbf16>
    %c0_140 = arith.constant 0 : index
    %c0_141 = arith.constant 0 : index
    %139 = vector.load %arg6[%c0_140, %c0_141] : memref<256x128xbf16, #tpu.memory_space<vmem>>, vector<256x128xbf16>
    %cst_142 = arith.constant dense<0.000000e+00> : vector<2x128xf32>
    %140 = tpu.matmul %138, %139, %cst_142 {dimension_numbers = #tpu.dot_dimension_numbers<[1], [0], [0], [1], [0, 0, 1, 1], [], []>} : vector<2x256xbf16>, vector<256x128xbf16>, vector<2x128xf32> -> vector<2x128xf32>
    %c0_143 = arith.constant 0 : index
    %c0_144 = arith.constant 0 : index
    %141 = vector.load %arg7[%c0_143, %c0_144] : memref<1x128xf32, #tpu.memory_space<vmem>>, vector<1x128xf32>
    %142 = vector.broadcast %141 : vector<1x128xf32> to vector<2x128xf32>
    %143 = arith.addf %140, %142 : vector<2x128xf32>
    %144 = math.tanh %143 : vector<2x128xf32>
    %c0_145 = arith.constant 0 : index
    %c0_146 = arith.constant 0 : index
    %145 = vector.load %arg8[%c0_145, %c0_146] : memref<2x128xf32, #tpu.memory_space<vmem>>, vector<2x128xf32>
    tpu.vector_store %arg8[%c0_145, %c0_146], %144 {strides = array<i32>} : memref<2x128xf32, #tpu.memory_space<vmem>>, vector<2x128xf32>,
    return
  }
  func.func @transform_0(%arg0: i32) -> (i32, i32) {
    %c0_i32 = arith.constant 0 : i32
    %c0_i32_0 = arith.constant 0 : i32
    return %arg0, %c0_i32 : i32, i32
  }
  func.func @transform_1(%arg0: i32) -> (i32, i32) {
    %c0_i32 = arith.constant 0 : i32
    %c0_i32_0 = arith.constant 0 : i32
    %c0_i32_1 = arith.constant 0 : i32
    return %c0_i32, %c0_i32_0 : i32, i32
  }
  func.func @transform_2(%arg0: i32) -> (i32, i32) {
    %c0_i32 = arith.constant 0 : i32
    %c0_i32_0 = arith.constant 0 : i32
    %c0_i32_1 = arith.constant 0 : i32
    return %c0_i32, %c0_i32_0 : i32, i32
  }
  func.func @transform_3(%arg0: i32) -> (i32, i32, i32, i32) {
    %c0_i32 = arith.constant 0 : i32
    %c0_i32_0 = arith.constant 0 : i32
    %c0_i32_1 = arith.constant 0 : i32
    %c0_i32_2 = arith.constant 0 : i32
    %c0_i32_3 = arith.constant 0 : i32
    return %c0_i32, %c0_i32_0, %c0_i32_1, %c0_i32_2 : i32, i32, i32, i32
  }
  func.func @transform_4(%arg0: i32) -> (i32, i32, i32, i32) {
    %c0_i32 = arith.constant 0 : i32
    %c0_i32_0 = arith.constant 0 : i32
    %c0_i32_1 = arith.constant 0 : i32
    %c0_i32_2 = arith.constant 0 : i32
    %c0_i32_3 = arith.constant 0 : i32
    return %c0_i32, %c0_i32_0, %c0_i32_1, %c0_i32_2 : i32, i32, i32, i32
  }
  func.func @transform_5(%arg0: i32) -> (i32, i32) {
    %c0_i32 = arith.constant 0 : i32
    %c0_i32_0 = arith.constant 0 : i32
    %c0_i32_1 = arith.constant 0 : i32
    return %c0_i32, %c0_i32_0 : i32, i32
  }
  func.func @transform_6(%arg0: i32) -> (i32, i32) {
    %c0_i32 = arith.constant 0 : i32
    %c0_i32_0 = arith.constant 0 : i32
    %c0_i32_1 = arith.constant 0 : i32
    return %c0_i32, %c0_i32_0 : i32, i32
  }
  func.func @transform_7(%arg0: i32) -> (i32, i32) {
    %c0_i32 = arith.constant 0 : i32
    %c0_i32_0 = arith.constant 0 : i32
    return %arg0, %c0_i32 : i32, i32
  }
}

module attributes {stable_mosaic.version = 11 : i64} {
  func.func @generator_kernel(%arg0: i32, %arg1: memref<2x128xbf16, #tpu.memory_space<vmem>>, %arg2: memref<128x256xbf16, #tpu.memory_space<vmem>>, %arg3: memref<1x256xf32, #tpu.memory_space<vmem>>, %arg4: memref<5x2x256x256xbf16, #tpu.memory_space<vmem>>, %arg5: memref<5x2x1x256xf32, #tpu.memory_space<vmem>>, %arg6: memref<256x128xbf16, #tpu.memory_space<vmem>>, %arg7: memref<1x128xf32, #tpu.memory_space<vmem>>, %arg8: memref<2x128xf32, #tpu.memory_space<vmem>>, %arg9: memref<2x256xf32, #tpu.memory_space<vmem>>) attributes {dimension_semantics = [#tpu.dimension_semantics<parallel>], iteration_bounds = array<i64: 1>, scalar_prefetch = 0 : i64, scratch_operands = 1 : i64, tpu.core_type = #tpu.core_type<tc>, window_params = [{transform_indices = @transform_0, window_bounds = array<i64: 2, 128>}, {pipeline_mode = #tpu.pipeline_mode<synchronous>, transform_indices = @transform_1, window_bounds = array<i64: 128, 256>}, {pipeline_mode = #tpu.pipeline_mode<synchronous>, transform_indices = @transform_2, window_bounds = array<i64: 1, 256>}, {pipeline_mode = #tpu.pipeline_mode<synchronous>, transform_indices = @transform_3, window_bounds = array<i64: 5, 2, 256, 256>}, {pipeline_mode = #tpu.pipeline_mode<synchronous>, transform_indices = @transform_4, window_bounds = array<i64: 5, 2, 1, 256>}, {pipeline_mode = #tpu.pipeline_mode<synchronous>, transform_indices = @transform_5, window_bounds = array<i64: 256, 128>}, {pipeline_mode = #tpu.pipeline_mode<synchronous>, transform_indices = @transform_6, window_bounds = array<i64: 1, 128>}, {transform_indices = @transform_7, window_bounds = array<i64: 2, 128>}]} {
    %c0 = arith.constant 0 : index
    %c0_0 = arith.constant 0 : index
    %0 = vector.load %arg1[%c0, %c0_0] : memref<2x128xbf16, #tpu.memory_space<vmem>>, vector<2x128xbf16>
    %c0_1 = arith.constant 0 : index
    %c0_2 = arith.constant 0 : index
    %1 = vector.load %arg2[%c0_1, %c0_2] : memref<128x256xbf16, #tpu.memory_space<vmem>>, vector<128x256xbf16>
    %cst = arith.constant dense<0.000000e+00> : vector<2x256xf32>
    %2 = tpu.matmul %0, %1, %cst {dimension_numbers = #tpu.dot_dimension_numbers<[1], [0], [0], [1], [0, 0, 1, 1], [], []>} : vector<2x128xbf16>, vector<128x256xbf16>, vector<2x256xf32> -> vector<2x256xf32>
    %c0_3 = arith.constant 0 : index
    %c0_4 = arith.constant 0 : index
    %3 = vector.load %arg3[%c0_3, %c0_4] : memref<1x256xf32, #tpu.memory_space<vmem>>, vector<1x256xf32>
    %4 = vector.broadcast %3 : vector<1x256xf32> to vector<2x256xf32>
    %5 = arith.addf %2, %4 : vector<2x256xf32>
    %c0_5 = arith.constant 0 : index
    %c0_6 = arith.constant 0 : index
    %6 = vector.load %arg9[%c0_5, %c0_6] : memref<2x256xf32, #tpu.memory_space<vmem>>, vector<2x256xf32>
    tpu.vector_store %arg9[%c0_5, %c0_6], %5 {strides = array<i32>} : memref<2x256xf32, #tpu.memory_space<vmem>>, vector<2x256xf32>,
    %c0_7 = arith.constant 0 : index
    %c0_8 = arith.constant 0 : index
    %7 = vector.load %arg9[%c0_7, %c0_8] : memref<2x256xf32, #tpu.memory_space<vmem>>, vector<2x256xf32>
    %8 = arith.truncf %7 : vector<2x256xf32> to vector<2x256xbf16>
    %cst_9 = arith.constant 0.000000e+00 : bf16
    %9 = vector.broadcast %cst_9 : bf16 to vector<2x256xbf16>
    %10 = arith.maximumf %8, %9 : vector<2x256xbf16>
    %c0_10 = arith.constant 0 : index
    %c0_11 = arith.constant 0 : index
    %c0_12 = arith.constant 0 : index
    %c0_13 = arith.constant 0 : index
    %11 = vector.load %arg4[%c0_10, %c0_11, %c0_12, %c0_13] : memref<5x2x256x256xbf16, #tpu.memory_space<vmem>>, vector<1x1x256x256xbf16>
    %12 = vector.shape_cast %11 : vector<1x1x256x256xbf16> to vector<256x256xbf16>
    %cst_14 = arith.constant dense<0.000000e+00> : vector<2x256xf32>
    %13 = tpu.matmul %10, %12, %cst_14 {dimension_numbers = #tpu.dot_dimension_numbers<[1], [0], [0], [1], [0, 0, 1, 1], [], []>} : vector<2x256xbf16>, vector<256x256xbf16>, vector<2x256xf32> -> vector<2x256xf32>
    %c0_15 = arith.constant 0 : index
    %c0_16 = arith.constant 0 : index
    %c0_17 = arith.constant 0 : index
    %c0_18 = arith.constant 0 : index
    %14 = vector.load %arg5[%c0_15, %c0_16, %c0_17, %c0_18] : memref<5x2x1x256xf32, #tpu.memory_space<vmem>>, vector<1x1x1x256xf32>
    %15 = vector.shape_cast %14 : vector<1x1x1x256xf32> to vector<1x256xf32>
    %16 = vector.broadcast %15 : vector<1x256xf32> to vector<2x256xf32>
    %17 = arith.addf %13, %16 : vector<2x256xf32>
    %18 = arith.truncf %17 : vector<2x256xf32> to vector<2x256xbf16>
    %cst_19 = arith.constant 0.000000e+00 : bf16
    %19 = vector.broadcast %cst_19 : bf16 to vector<2x256xbf16>
    %20 = arith.maximumf %18, %19 : vector<2x256xbf16>
    %c0_20 = arith.constant 0 : index
    %c1 = arith.constant 1 : index
    %c0_21 = arith.constant 0 : index
    %c0_22 = arith.constant 0 : index
    %21 = vector.load %arg4[%c0_20, %c1, %c0_21, %c0_22] : memref<5x2x256x256xbf16, #tpu.memory_space<vmem>>, vector<1x1x256x256xbf16>
    %22 = vector.shape_cast %21 : vector<1x1x256x256xbf16> to vector<256x256xbf16>
    %cst_23 = arith.constant dense<0.000000e+00> : vector<2x256xf32>
    %23 = tpu.matmul %20, %22, %cst_23 {dimension_numbers = #tpu.dot_dimension_numbers<[1], [0], [0], [1], [0, 0, 1, 1], [], []>} : vector<2x256xbf16>, vector<256x256xbf16>, vector<2x256xf32> -> vector<2x256xf32>
    %c0_24 = arith.constant 0 : index
    %c1_25 = arith.constant 1 : index
    %c0_26 = arith.constant 0 : index
    %c0_27 = arith.constant 0 : index
    %24 = vector.load %arg5[%c0_24, %c1_25, %c0_26, %c0_27] : memref<5x2x1x256xf32, #tpu.memory_space<vmem>>, vector<1x1x1x256xf32>
    %25 = vector.shape_cast %24 : vector<1x1x1x256xf32> to vector<1x256xf32>
    %26 = vector.broadcast %25 : vector<1x256xf32> to vector<2x256xf32>
    %27 = arith.addf %23, %26 : vector<2x256xf32>
    %c0_28 = arith.constant 0 : index
    %c0_29 = arith.constant 0 : index
    %28 = vector.load %arg9[%c0_28, %c0_29] : memref<2x256xf32, #tpu.memory_space<vmem>>, vector<2x256xf32>
    %cst_30 = arith.constant 3.000000e-01 : f32
    %29 = vector.broadcast %cst_30 : f32 to vector<2x256xf32>
    %30 = arith.mulf %29, %27 : vector<2x256xf32>
    %31 = arith.addf %28, %30 : vector<2x256xf32>
    %c0_31 = arith.constant 0 : index
    %c0_32 = arith.constant 0 : index
    %32 = vector.load %arg9[%c0_31, %c0_32] : memref<2x256xf32, #tpu.memory_space<vmem>>, vector<2x256xf32>
    tpu.vector_store %arg9[%c0_31, %c0_32], %31 {strides = array<i32>} : memref<2x256xf32, #tpu.memory_space<vmem>>, vector<2x256xf32>,
    %c0_33 = arith.constant 0 : index
    %c0_34 = arith.constant 0 : index
    %33 = vector.load %arg9[%c0_33, %c0_34] : memref<2x256xf32, #tpu.memory_space<vmem>>, vector<2x256xf32>
    %34 = arith.truncf %33 : vector<2x256xf32> to vector<2x256xbf16>
    %cst_35 = arith.constant 0.000000e+00 : bf16
    %35 = vector.broadcast %cst_35 : bf16 to vector<2x256xbf16>
    %36 = arith.maximumf %34, %35 : vector<2x256xbf16>
    %c1_36 = arith.constant 1 : index
    %c0_37 = arith.constant 0 : index
    %c0_38 = arith.constant 0 : index
    %c0_39 = arith.constant 0 : index
    %37 = vector.load %arg4[%c1_36, %c0_37, %c0_38, %c0_39] : memref<5x2x256x256xbf16, #tpu.memory_space<vmem>>, vector<1x1x256x256xbf16>
    %38 = vector.shape_cast %37 : vector<1x1x256x256xbf16> to vector<256x256xbf16>
    %cst_40 = arith.constant dense<0.000000e+00> : vector<2x256xf32>
    %39 = tpu.matmul %36, %38, %cst_40 {dimension_numbers = #tpu.dot_dimension_numbers<[1], [0], [0], [1], [0, 0, 1, 1], [], []>} : vector<2x256xbf16>, vector<256x256xbf16>, vector<2x256xf32> -> vector<2x256xf32>
    %c1_41 = arith.constant 1 : index
    %c0_42 = arith.constant 0 : index
    %c0_43 = arith.constant 0 : index
    %c0_44 = arith.constant 0 : index
    %40 = vector.load %arg5[%c1_41, %c0_42, %c0_43, %c0_44] : memref<5x2x1x256xf32, #tpu.memory_space<vmem>>, vector<1x1x1x256xf32>
    %41 = vector.shape_cast %40 : vector<1x1x1x256xf32> to vector<1x256xf32>
    %42 = vector.broadcast %41 : vector<1x256xf32> to vector<2x256xf32>
    %43 = arith.addf %39, %42 : vector<2x256xf32>
    %44 = arith.truncf %43 : vector<2x256xf32> to vector<2x256xbf16>
    %cst_45 = arith.constant 0.000000e+00 : bf16
    %45 = vector.broadcast %cst_45 : bf16 to vector<2x256xbf16>
    %46 = arith.maximumf %44, %45 : vector<2x256xbf16>
    %c1_46 = arith.constant 1 : index
    %c1_47 = arith.constant 1 : index
    %c0_48 = arith.constant 0 : index
    %c0_49 = arith.constant 0 : index
    %47 = vector.load %arg4[%c1_46, %c1_47, %c0_48, %c0_49] : memref<5x2x256x256xbf16, #tpu.memory_space<vmem>>, vector<1x1x256x256xbf16>
    %48 = vector.shape_cast %47 : vector<1x1x256x256xbf16> to vector<256x256xbf16>
    %cst_50 = arith.constant dense<0.000000e+00> : vector<2x256xf32>
    %49 = tpu.matmul %46, %48, %cst_50 {dimension_numbers = #tpu.dot_dimension_numbers<[1], [0], [0], [1], [0, 0, 1, 1], [], []>} : vector<2x256xbf16>, vector<256x256xbf16>, vector<2x256xf32> -> vector<2x256xf32>
    %c1_51 = arith.constant 1 : index
    %c1_52 = arith.constant 1 : index
    %c0_53 = arith.constant 0 : index
    %c0_54 = arith.constant 0 : index
    %50 = vector.load %arg5[%c1_51, %c1_52, %c0_53, %c0_54] : memref<5x2x1x256xf32, #tpu.memory_space<vmem>>, vector<1x1x1x256xf32>
    %51 = vector.shape_cast %50 : vector<1x1x1x256xf32> to vector<1x256xf32>
    %52 = vector.broadcast %51 : vector<1x256xf32> to vector<2x256xf32>
    %53 = arith.addf %49, %52 : vector<2x256xf32>
    %c0_55 = arith.constant 0 : index
    %c0_56 = arith.constant 0 : index
    %54 = vector.load %arg9[%c0_55, %c0_56] : memref<2x256xf32, #tpu.memory_space<vmem>>, vector<2x256xf32>
    %cst_57 = arith.constant 3.000000e-01 : f32
    %55 = vector.broadcast %cst_57 : f32 to vector<2x256xf32>
    %56 = arith.mulf %55, %53 : vector<2x256xf32>
    %57 = arith.addf %54, %56 : vector<2x256xf32>
    %c0_58 = arith.constant 0 : index
    %c0_59 = arith.constant 0 : index
    %58 = vector.load %arg9[%c0_58, %c0_59] : memref<2x256xf32, #tpu.memory_space<vmem>>, vector<2x256xf32>
    tpu.vector_store %arg9[%c0_58, %c0_59], %57 {strides = array<i32>} : memref<2x256xf32, #tpu.memory_space<vmem>>, vector<2x256xf32>,
    %c0_60 = arith.constant 0 : index
    %c0_61 = arith.constant 0 : index
    %59 = vector.load %arg9[%c0_60, %c0_61] : memref<2x256xf32, #tpu.memory_space<vmem>>, vector<2x256xf32>
    %60 = arith.truncf %59 : vector<2x256xf32> to vector<2x256xbf16>
    %cst_62 = arith.constant 0.000000e+00 : bf16
    %61 = vector.broadcast %cst_62 : bf16 to vector<2x256xbf16>
    %62 = arith.maximumf %60, %61 : vector<2x256xbf16>
    %c2 = arith.constant 2 : index
    %c0_63 = arith.constant 0 : index
    %c0_64 = arith.constant 0 : index
    %c0_65 = arith.constant 0 : index
    %63 = vector.load %arg4[%c2, %c0_63, %c0_64, %c0_65] : memref<5x2x256x256xbf16, #tpu.memory_space<vmem>>, vector<1x1x256x256xbf16>
    %64 = vector.shape_cast %63 : vector<1x1x256x256xbf16> to vector<256x256xbf16>
    %cst_66 = arith.constant dense<0.000000e+00> : vector<2x256xf32>
    %65 = tpu.matmul %62, %64, %cst_66 {dimension_numbers = #tpu.dot_dimension_numbers<[1], [0], [0], [1], [0, 0, 1, 1], [], []>} : vector<2x256xbf16>, vector<256x256xbf16>, vector<2x256xf32> -> vector<2x256xf32>
    %c2_67 = arith.constant 2 : index
    %c0_68 = arith.constant 0 : index
    %c0_69 = arith.constant 0 : index
    %c0_70 = arith.constant 0 : index
    %66 = vector.load %arg5[%c2_67, %c0_68, %c0_69, %c0_70] : memref<5x2x1x256xf32, #tpu.memory_space<vmem>>, vector<1x1x1x256xf32>
    %67 = vector.shape_cast %66 : vector<1x1x1x256xf32> to vector<1x256xf32>
    %68 = vector.broadcast %67 : vector<1x256xf32> to vector<2x256xf32>
    %69 = arith.addf %65, %68 : vector<2x256xf32>
    %70 = arith.truncf %69 : vector<2x256xf32> to vector<2x256xbf16>
    %cst_71 = arith.constant 0.000000e+00 : bf16
    %71 = vector.broadcast %cst_71 : bf16 to vector<2x256xbf16>
    %72 = arith.maximumf %70, %71 : vector<2x256xbf16>
    %c2_72 = arith.constant 2 : index
    %c1_73 = arith.constant 1 : index
    %c0_74 = arith.constant 0 : index
    %c0_75 = arith.constant 0 : index
    %73 = vector.load %arg4[%c2_72, %c1_73, %c0_74, %c0_75] : memref<5x2x256x256xbf16, #tpu.memory_space<vmem>>, vector<1x1x256x256xbf16>
    %74 = vector.shape_cast %73 : vector<1x1x256x256xbf16> to vector<256x256xbf16>
    %cst_76 = arith.constant dense<0.000000e+00> : vector<2x256xf32>
    %75 = tpu.matmul %72, %74, %cst_76 {dimension_numbers = #tpu.dot_dimension_numbers<[1], [0], [0], [1], [0, 0, 1, 1], [], []>} : vector<2x256xbf16>, vector<256x256xbf16>, vector<2x256xf32> -> vector<2x256xf32>
    %c2_77 = arith.constant 2 : index
    %c1_78 = arith.constant 1 : index
    %c0_79 = arith.constant 0 : index
    %c0_80 = arith.constant 0 : index
    %76 = vector.load %arg5[%c2_77, %c1_78, %c0_79, %c0_80] : memref<5x2x1x256xf32, #tpu.memory_space<vmem>>, vector<1x1x1x256xf32>
    %77 = vector.shape_cast %76 : vector<1x1x1x256xf32> to vector<1x256xf32>
    %78 = vector.broadcast %77 : vector<1x256xf32> to vector<2x256xf32>
    %79 = arith.addf %75, %78 : vector<2x256xf32>
    %c0_81 = arith.constant 0 : index
    %c0_82 = arith.constant 0 : index
    %80 = vector.load %arg9[%c0_81, %c0_82] : memref<2x256xf32, #tpu.memory_space<vmem>>, vector<2x256xf32>
    %cst_83 = arith.constant 3.000000e-01 : f32
    %81 = vector.broadcast %cst_83 : f32 to vector<2x256xf32>
    %82 = arith.mulf %81, %79 : vector<2x256xf32>
    %83 = arith.addf %80, %82 : vector<2x256xf32>
    %c0_84 = arith.constant 0 : index
    %c0_85 = arith.constant 0 : index
    %84 = vector.load %arg9[%c0_84, %c0_85] : memref<2x256xf32, #tpu.memory_space<vmem>>, vector<2x256xf32>
    tpu.vector_store %arg9[%c0_84, %c0_85], %83 {strides = array<i32>} : memref<2x256xf32, #tpu.memory_space<vmem>>, vector<2x256xf32>,
    %c0_86 = arith.constant 0 : index
    %c0_87 = arith.constant 0 : index
    %85 = vector.load %arg9[%c0_86, %c0_87] : memref<2x256xf32, #tpu.memory_space<vmem>>, vector<2x256xf32>
    %86 = arith.truncf %85 : vector<2x256xf32> to vector<2x256xbf16>
    %cst_88 = arith.constant 0.000000e+00 : bf16
    %87 = vector.broadcast %cst_88 : bf16 to vector<2x256xbf16>
    %88 = arith.maximumf %86, %87 : vector<2x256xbf16>
    %c3 = arith.constant 3 : index
    %c0_89 = arith.constant 0 : index
    %c0_90 = arith.constant 0 : index
    %c0_91 = arith.constant 0 : index
    %89 = vector.load %arg4[%c3, %c0_89, %c0_90, %c0_91] : memref<5x2x256x256xbf16, #tpu.memory_space<vmem>>, vector<1x1x256x256xbf16>
    %90 = vector.shape_cast %89 : vector<1x1x256x256xbf16> to vector<256x256xbf16>
    %cst_92 = arith.constant dense<0.000000e+00> : vector<2x256xf32>
    %91 = tpu.matmul %88, %90, %cst_92 {dimension_numbers = #tpu.dot_dimension_numbers<[1], [0], [0], [1], [0, 0, 1, 1], [], []>} : vector<2x256xbf16>, vector<256x256xbf16>, vector<2x256xf32> -> vector<2x256xf32>
    %c3_93 = arith.constant 3 : index
    %c0_94 = arith.constant 0 : index
    %c0_95 = arith.constant 0 : index
    %c0_96 = arith.constant 0 : index
    %92 = vector.load %arg5[%c3_93, %c0_94, %c0_95, %c0_96] : memref<5x2x1x256xf32, #tpu.memory_space<vmem>>, vector<1x1x1x256xf32>
    %93 = vector.shape_cast %92 : vector<1x1x1x256xf32> to vector<1x256xf32>
    %94 = vector.broadcast %93 : vector<1x256xf32> to vector<2x256xf32>
    %95 = arith.addf %91, %94 : vector<2x256xf32>
    %96 = arith.truncf %95 : vector<2x256xf32> to vector<2x256xbf16>
    %cst_97 = arith.constant 0.000000e+00 : bf16
    %97 = vector.broadcast %cst_97 : bf16 to vector<2x256xbf16>
    %98 = arith.maximumf %96, %97 : vector<2x256xbf16>
    %c3_98 = arith.constant 3 : index
    %c1_99 = arith.constant 1 : index
    %c0_100 = arith.constant 0 : index
    %c0_101 = arith.constant 0 : index
    %99 = vector.load %arg4[%c3_98, %c1_99, %c0_100, %c0_101] : memref<5x2x256x256xbf16, #tpu.memory_space<vmem>>, vector<1x1x256x256xbf16>
    %100 = vector.shape_cast %99 : vector<1x1x256x256xbf16> to vector<256x256xbf16>
    %cst_102 = arith.constant dense<0.000000e+00> : vector<2x256xf32>
    %101 = tpu.matmul %98, %100, %cst_102 {dimension_numbers = #tpu.dot_dimension_numbers<[1], [0], [0], [1], [0, 0, 1, 1], [], []>} : vector<2x256xbf16>, vector<256x256xbf16>, vector<2x256xf32> -> vector<2x256xf32>
    %c3_103 = arith.constant 3 : index
    %c1_104 = arith.constant 1 : index
    %c0_105 = arith.constant 0 : index
    %c0_106 = arith.constant 0 : index
    %102 = vector.load %arg5[%c3_103, %c1_104, %c0_105, %c0_106] : memref<5x2x1x256xf32, #tpu.memory_space<vmem>>, vector<1x1x1x256xf32>
    %103 = vector.shape_cast %102 : vector<1x1x1x256xf32> to vector<1x256xf32>
    %104 = vector.broadcast %103 : vector<1x256xf32> to vector<2x256xf32>
    %105 = arith.addf %101, %104 : vector<2x256xf32>
    %c0_107 = arith.constant 0 : index
    %c0_108 = arith.constant 0 : index
    %106 = vector.load %arg9[%c0_107, %c0_108] : memref<2x256xf32, #tpu.memory_space<vmem>>, vector<2x256xf32>
    %cst_109 = arith.constant 3.000000e-01 : f32
    %107 = vector.broadcast %cst_109 : f32 to vector<2x256xf32>
    %108 = arith.mulf %107, %105 : vector<2x256xf32>
    %109 = arith.addf %106, %108 : vector<2x256xf32>
    %c0_110 = arith.constant 0 : index
    %c0_111 = arith.constant 0 : index
    %110 = vector.load %arg9[%c0_110, %c0_111] : memref<2x256xf32, #tpu.memory_space<vmem>>, vector<2x256xf32>
    tpu.vector_store %arg9[%c0_110, %c0_111], %109 {strides = array<i32>} : memref<2x256xf32, #tpu.memory_space<vmem>>, vector<2x256xf32>,
    %c0_112 = arith.constant 0 : index
    %c0_113 = arith.constant 0 : index
    %111 = vector.load %arg9[%c0_112, %c0_113] : memref<2x256xf32, #tpu.memory_space<vmem>>, vector<2x256xf32>
    %112 = arith.truncf %111 : vector<2x256xf32> to vector<2x256xbf16>
    %cst_114 = arith.constant 0.000000e+00 : bf16
    %113 = vector.broadcast %cst_114 : bf16 to vector<2x256xbf16>
    %114 = arith.maximumf %112, %113 : vector<2x256xbf16>
    %c4 = arith.constant 4 : index
    %c0_115 = arith.constant 0 : index
    %c0_116 = arith.constant 0 : index
    %c0_117 = arith.constant 0 : index
    %115 = vector.load %arg4[%c4, %c0_115, %c0_116, %c0_117] : memref<5x2x256x256xbf16, #tpu.memory_space<vmem>>, vector<1x1x256x256xbf16>
    %116 = vector.shape_cast %115 : vector<1x1x256x256xbf16> to vector<256x256xbf16>
    %cst_118 = arith.constant dense<0.000000e+00> : vector<2x256xf32>
    %117 = tpu.matmul %114, %116, %cst_118 {dimension_numbers = #tpu.dot_dimension_numbers<[1], [0], [0], [1], [0, 0, 1, 1], [], []>} : vector<2x256xbf16>, vector<256x256xbf16>, vector<2x256xf32> -> vector<2x256xf32>
    %c4_119 = arith.constant 4 : index
    %c0_120 = arith.constant 0 : index
    %c0_121 = arith.constant 0 : index
    %c0_122 = arith.constant 0 : index
    %118 = vector.load %arg5[%c4_119, %c0_120, %c0_121, %c0_122] : memref<5x2x1x256xf32, #tpu.memory_space<vmem>>, vector<1x1x1x256xf32>
    %119 = vector.shape_cast %118 : vector<1x1x1x256xf32> to vector<1x256xf32>
    %120 = vector.broadcast %119 : vector<1x256xf32> to vector<2x256xf32>
    %121 = arith.addf %117, %120 : vector<2x256xf32>
    %122 = arith.truncf %121 : vector<2x256xf32> to vector<2x256xbf16>
    %cst_123 = arith.constant 0.000000e+00 : bf16
    %123 = vector.broadcast %cst_123 : bf16 to vector<2x256xbf16>
    %124 = arith.maximumf %122, %123 : vector<2x256xbf16>
    %c4_124 = arith.constant 4 : index
    %c1_125 = arith.constant 1 : index
    %c0_126 = arith.constant 0 : index
    %c0_127 = arith.constant 0 : index
    %125 = vector.load %arg4[%c4_124, %c1_125, %c0_126, %c0_127] : memref<5x2x256x256xbf16, #tpu.memory_space<vmem>>, vector<1x1x256x256xbf16>
    %126 = vector.shape_cast %125 : vector<1x1x256x256xbf16> to vector<256x256xbf16>
    %cst_128 = arith.constant dense<0.000000e+00> : vector<2x256xf32>
    %127 = tpu.matmul %124, %126, %cst_128 {dimension_numbers = #tpu.dot_dimension_numbers<[1], [0], [0], [1], [0, 0, 1, 1], [], []>} : vector<2x256xbf16>, vector<256x256xbf16>, vector<2x256xf32> -> vector<2x256xf32>
    %c4_129 = arith.constant 4 : index
    %c1_130 = arith.constant 1 : index
    %c0_131 = arith.constant 0 : index
    %c0_132 = arith.constant 0 : index
    %128 = vector.load %arg5[%c4_129, %c1_130, %c0_131, %c0_132] : memref<5x2x1x256xf32, #tpu.memory_space<vmem>>, vector<1x1x1x256xf32>
    %129 = vector.shape_cast %128 : vector<1x1x1x256xf32> to vector<1x256xf32>
    %130 = vector.broadcast %129 : vector<1x256xf32> to vector<2x256xf32>
    %131 = arith.addf %127, %130 : vector<2x256xf32>
    %c0_133 = arith.constant 0 : index
    %c0_134 = arith.constant 0 : index
    %132 = vector.load %arg9[%c0_133, %c0_134] : memref<2x256xf32, #tpu.memory_space<vmem>>, vector<2x256xf32>
    %cst_135 = arith.constant 3.000000e-01 : f32
    %133 = vector.broadcast %cst_135 : f32 to vector<2x256xf32>
    %134 = arith.mulf %133, %131 : vector<2x256xf32>
    %135 = arith.addf %132, %134 : vector<2x256xf32>
    %c0_136 = arith.constant 0 : index
    %c0_137 = arith.constant 0 : index
    %136 = vector.load %arg9[%c0_136, %c0_137] : memref<2x256xf32, #tpu.memory_space<vmem>>, vector<2x256xf32>
    tpu.vector_store %arg9[%c0_136, %c0_137], %135 {strides = array<i32>} : memref<2x256xf32, #tpu.memory_space<vmem>>, vector<2x256xf32>,
    %c0_138 = arith.constant 0 : index
    %c0_139 = arith.constant 0 : index
    %137 = vector.load %arg9[%c0_138, %c0_139] : memref<2x256xf32, #tpu.memory_space<vmem>>, vector<2x256xf32>
    %138 = arith.truncf %137 : vector<2x256xf32> to vector<2x256xbf16>
    %c0_140 = arith.constant 0 : index
    %c0_141 = arith.constant 0 : index
    %139 = vector.load %arg6[%c0_140, %c0_141] : memref<256x128xbf16, #tpu.memory_space<vmem>>, vector<256x128xbf16>
    %cst_142 = arith.constant dense<0.000000e+00> : vector<2x128xf32>
    %140 = tpu.matmul %138, %139, %cst_142 {dimension_numbers = #tpu.dot_dimension_numbers<[1], [0], [0], [1], [0, 0, 1, 1], [], []>} : vector<2x256xbf16>, vector<256x128xbf16>, vector<2x128xf32> -> vector<2x128xf32>
    %c0_143 = arith.constant 0 : index
    %c0_144 = arith.constant 0 : index
    %141 = vector.load %arg7[%c0_143, %c0_144] : memref<1x128xf32, #tpu.memory_space<vmem>>, vector<1x128xf32>
    %142 = vector.broadcast %141 : vector<1x128xf32> to vector<2x128xf32>
    %143 = arith.addf %140, %142 : vector<2x128xf32>
    %144 = math.tanh %143 : vector<2x128xf32>
    %c0_145 = arith.constant 0 : index
    %c0_146 = arith.constant 0 : index
    %145 = vector.load %arg8[%c0_145, %c0_146] : memref<2x128xf32, #tpu.memory_space<vmem>>, vector<2x128xf32>
    tpu.vector_store %arg8[%c0_145, %c0_146], %144 {strides = array<i32>} : memref<2x128xf32, #tpu.memory_space<vmem>>, vector<2x128xf32>,
    return
  }
  func.func @transform_0(%arg0: i32) -> (i32, i32) {
    %c0_i32 = arith.constant 0 : i32
    %c0_i32_0 = arith.constant 0 : i32
    return %arg0, %c0_i32 : i32, i32
  }
  func.func @transform_1(%arg0: i32) -> (i32, i32) {
    %c0_i32 = arith.constant 0 : i32
    %c0_i32_0 = arith.constant 0 : i32
    %c0_i32_1 = arith.constant 0 : i32
    return %c0_i32, %c0_i32_0 : i32, i32
  }
  func.func @transform_2(%arg0: i32) -> (i32, i32) {
    %c0_i32 = arith.constant 0 : i32
    %c0_i32_0 = arith.constant 0 : i32
    %c0_i32_1 = arith.constant 0 : i32
    return %c0_i32, %c0_i32_0 : i32, i32
  }
  func.func @transform_3(%arg0: i32) -> (i32, i32, i32, i32) {
    %c0_i32 = arith.constant 0 : i32
    %c0_i32_0 = arith.constant 0 : i32
    %c0_i32_1 = arith.constant 0 : i32
    %c0_i32_2 = arith.constant 0 : i32
    %c0_i32_3 = arith.constant 0 : i32
    return %c0_i32, %c0_i32_0, %c0_i32_1, %c0_i32_2 : i32, i32, i32, i32
  }
  func.func @transform_4(%arg0: i32) -> (i32, i32, i32, i32) {
    %c0_i32 = arith.constant 0 : i32
    %c0_i32_0 = arith.constant 0 : i32
    %c0_i32_1 = arith.constant 0 : i32
    %c0_i32_2 = arith.constant 0 : i32
    %c0_i32_3 = arith.constant 0 : i32
    return %c0_i32, %c0_i32_0, %c0_i32_1, %c0_i32_2 : i32, i32, i32, i32
  }
  func.func @transform_5(%arg0: i32) -> (i32, i32) {
    %c0_i32 = arith.constant 0 : i32
    %c0_i32_0 = arith.constant 0 : i32
    %c0_i32_1 = arith.constant 0 : i32
    return %c0_i32, %c0_i32_0 : i32, i32
  }
  func.func @transform_6(%arg0: i32) -> (i32, i32) {
    %c0_i32 = arith.constant 0 : i32
    %c0_i32_0 = arith.constant 0 : i32
    %c0_i32_1 = arith.constant 0 : i32
    return %c0_i32, %c0_i32_0 : i32, i32
  }
  func.func @transform_7(%arg0: i32) -> (i32, i32) {
    %c0_i32 = arith.constant 0 : i32
    %c0_i32_0 = arith.constant 0 : i32
    return %arg0, %c0_i32 : i32, i32
  }
}

</mosaic_0001>

<llo_original>
// kernel: tpu_custom_call.1
$region0: #{tpu_custom_call.1}
  #allocation0 [shape = 'u32[]', space=smem, size = 0x4, offset = 0x4, fixed_abs, tag = 'smem constant byte address 0x4 - core index']
  #allocation1 [shape = 'u32[72,128]{1,0:T(1,128)}', space=vmem, size = 0x9000, scoped, tag = 'internal scratch']
  #allocation2 [shape = 'f32[2,256]{1,0:T(2,128)}', space=vmem, size = 0x800, scoped, tag = 'scratch operand']
  %s0 = inlined_call_operand.hbm [shape: bf16[2,128], index: 0, kind: input, shape index: {}]
  %s1 = inlined_call_operand.hbm [shape: bf16[128,256], index: 1, kind: input, shape index: {}]
  %s2 = inlined_call_operand.hbm [shape: f32[1,256], index: 2, kind: input, shape index: {}]
  %s3 = inlined_call_operand.hbm [shape: bf16[5,2,256,256], index: 3, kind: input, shape index: {}]
  %s4 = inlined_call_operand.hbm [shape: f32[5,2,1,256], index: 4, kind: input, shape index: {}]
  %s5 = inlined_call_operand.hbm [shape: bf16[256,128], index: 5, kind: input, shape index: {}]
  %s6 = inlined_call_operand.hbm [shape: f32[1,128], index: 6, kind: input, shape index: {}]
  %s7 = inlined_call_operand.hbm [shape: f32[2,128], index: 7, kind: output, shape index: {}]
  %s8 = sld [smem:[#allocation0]]
  $region66: #{tpu_custom_call.1} parent=0
    _
  %s10 = ssub.s32 1, %s8
  %s11 = scalar_select 0, %s10, %s8
  $region1: #{tpu_custom_call.1} parent=0
    #allocation3 [shape = 'u8[512]{0}', space=vmem, size = 0x400, scoped, tag = 'input window, operand 0, single buffered']
    #allocation4 [shape = 's32[1]{0}', space=sflag, size = 0x4, scoped, tag = 'scoped memory for tpu_custom_call.1']
    #allocation5 [shape = 's32[1]{0}', space=sflag, size = 0x4, scoped, tag = 'scoped memory for tpu_custom_call.1']
    #allocation6 [shape = 'u8[65536]{0}', space=vmem, size = 0x10000, scoped, tag = 'input window, operand 1, single buffered']
    #allocation7 [shape = 's32[1]{0}', space=sflag, size = 0x4, scoped, tag = 'scoped memory for tpu_custom_call.1']
    #allocation8 [shape = 'u8[1024]{0}', space=vmem, size = 0x400, scoped, tag = 'input window, operand 2, single buffered']
    #allocation9 [shape = 'u8[1310720]{0}', space=vmem, size = 0x140000, scoped, tag = 'input window, operand 3, single buffered']
    #allocation10 [shape = 's32[1]{0}', space=sflag, size = 0x4, scoped, tag = 'scoped memory for tpu_custom_call.1']
    #allocation11 [shape = 'u8[10240]{0}', space=vmem, size = 0x2800, scoped, tag = 'input window, operand 4, single buffered']
    #allocation12 [shape = 'u8[65536]{0}', space=vmem, size = 0x10000, scoped, tag = 'input window, operand 5, single buffered']
    #allocation13 [shape = 's32[1]{0}', space=sflag, size = 0x4, scoped, tag = 'scoped memory for tpu_custom_call.1']
    #allocation14 [shape = 'u8[512]{0}', space=vmem, size = 0x400, scoped, tag = 'input window, operand 6, single buffered']
    #allocation15 [shape = 'u8[1024]{0}', space=vmem, size = 0x400, scoped, tag = 'output window, operand 0, single buffered']
    %12 = vsyncpa [#allocation4], 0
    %13 = vsyncpa [#allocation7], 0
    %14 = vsyncpa [#allocation10], 0
    %15 = vsyncpa [#allocation13], 0
    %16 = vsyncpa [#allocation5], 0
    // Predicated region
    $region2: #{tpu_custom_call.1} parent=1 // pred_check
      _
    $region3: #{tpu_custom_call.1} parent=1 // pred_check_branch
      %18 = sbr.rel (0) target = $region5
    $region4: #{tpu_custom_call.1} parent=1 // pred_region
      %20 = vsyncadd [#allocation4], 0
      %s22 = sshll.u32 %s0, 4
      %s23 = int_to_ptr.hbm [resolvable:$true] %s22
      %s24 = sshll.u32 [#allocation3], 4
      %s25 = int_to_ptr.vmem [resolvable:$true] %s24
      %27 = dma.hbm_to_vmem [thread:$0]  %s23, 16, %s25, [#allocation4]
    $region5: #{tpu_custom_call.1} parent=1 // pred_fallthru
      _
    // Predicated region
    $region6: #{tpu_custom_call.1} parent=1 // pred_check
      _
    $region7: #{tpu_custom_call.1} parent=1 // pred_check_branch
      %29 = sbr.rel (0) target = $region9
    $region8: #{tpu_custom_call.1} parent=1 // pred_region
      %31 = vsyncadd [#allocation7], 0
      %s32 = sshll.u32 %s1, 4
      %s33 = int_to_ptr.hbm [resolvable:$true] %s32
      %s34 = sshll.u32 [#allocation6], 4
      %s35 = int_to_ptr.vmem [resolvable:$true] %s34
      %40 = dma.hbm_to_vmem [thread:$0]  %s33, 2048, %s35, [#allocation7], 128, 128, 8
    $region9: #{tpu_custom_call.1} parent=1 // pred_fallthru
      _
    // Predicated region
    $region10: #{tpu_custom_call.1} parent=1 // pred_check
      _
    $region11: #{tpu_custom_call.1} parent=1 // pred_check_branch
      %42 = sbr.rel (0) target = $region13
    $region12: #{tpu_custom_call.1} parent=1 // pred_region
      %44 = vsyncadd [#allocation7], 0
      %s46 = sshll.u32 %s2, 4
      %s47 = int_to_ptr.hbm [resolvable:$true] %s46
      %s48 = sshll.u32 [#allocation8], 4
      %s49 = int_to_ptr.vmem [resolvable:$true] %s48
      %51 = dma.hbm_to_vmem [thread:$0]  %s47, 32, %s49, [#allocation7]
    $region13: #{tpu_custom_call.1} parent=1 // pred_fallthru
      _
    // Predicated region
    $region14: #{tpu_custom_call.1} parent=1 // pred_check
      _
    $region15: #{tpu_custom_call.1} parent=1 // pred_check_branch
      %53 = sbr.rel (0) target = $region17
    $region16: #{tpu_custom_call.1} parent=1 // pred_region
      %55 = vsyncadd [#allocation10], 0
      %s56 = sshll.u32 %s3, 4
      %s57 = int_to_ptr.hbm [resolvable:$true] %s56
      %s58 = sshll.u32 [#allocation9], 4
      %s59 = int_to_ptr.vmem [resolvable:$true] %s58
      %64 = dma.hbm_to_vmem [thread:$0]  %s57, 40960, %s59, [#allocation10], 128, 128, 8
    $region17: #{tpu_custom_call.1} parent=1 // pred_fallthru
      _
    // Predicated region
    $region18: #{tpu_custom_call.1} parent=1 // pred_check
      _
    $region19: #{tpu_custom_call.1} parent=1 // pred_check_branch
      %66 = sbr.rel (0) target = $region21
    $region20: #{tpu_custom_call.1} parent=1 // pred_region
      %68 = vsyncadd [#allocation10], 0
      %s69 = sshll.u32 %s4, 4
      %s70 = int_to_ptr.hbm [resolvable:$true] %s69
      %s71 = sshll.u32 [#allocation11], 4
      %s72 = int_to_ptr.vmem [resolvable:$true] %s71
      %77 = dma.hbm_to_vmem [thread:$0]  %s70, 320, %s72, [#allocation10], 32, 32, 2
    $region21: #{tpu_custom_call.1} parent=1 // pred_fallthru
      _
    // Predicated region
    $region22: #{tpu_custom_call.1} parent=1 // pred_check
      _
    $region23: #{tpu_custom_call.1} parent=1 // pred_check_branch
      %79 = sbr.rel (0) target = $region25
    $region24: #{tpu_custom_call.1} parent=1 // pred_region
      %81 = vsyncadd [#allocation13], 0
      %s82 = sshll.u32 %s5, 4
      %s83 = int_to_ptr.hbm [resolvable:$true] %s82
      %s84 = sshll.u32 [#allocation12], 4
      %s85 = int_to_ptr.vmem [resolvable:$true] %s84
      %90 = dma.hbm_to_vmem [thread:$0]  %s83, 2048, %s85, [#allocation13], 64, 64, 4
    $region25: #{tpu_custom_call.1} parent=1 // pred_fallthru
      _
    // Predicated region
    $region26: #{tpu_custom_call.1} parent=1 // pred_check
      _
    $region27: #{tpu_custom_call.1} parent=1 // pred_check_branch
      %92 = sbr.rel (0) target = $region29
    $region28: #{tpu_custom_call.1} parent=1 // pred_region
      %94 = vsyncadd [#allocation13], 0
      %s96 = sshll.u32 %s6, 4
      %s97 = int_to_ptr.hbm [resolvable:$true] %s96
      %s98 = sshll.u32 [#allocation14], 4
      %s99 = int_to_ptr.vmem [resolvable:$true] %s98
      %101 = dma.hbm_to_vmem [thread:$0]  %s97, 16, %s99, [#allocation13]
    $region29: #{tpu_custom_call.1} parent=1 // pred_fallthru
      _
    // Predicated region
    $region30: #{tpu_custom_call.1} parent=1 // pred_check
      _
    $region31: #{tpu_custom_call.1} parent=1 // pred_check_branch
      %103 = sbr.rel (0) target = $region33
    $region32: #{tpu_custom_call.1} parent=1 // pred_region
      %105 = dma.done [#allocation4], 16
    $region33: #{tpu_custom_call.1} parent=1 // pred_fallthru
      _
    // Predicated region
    $region34: #{tpu_custom_call.1} parent=1 // pred_check
      _
    $region35: #{tpu_custom_call.1} parent=1 // pred_check_branch
      %107 = sbr.rel (0) target = $region37
    $region36: #{tpu_custom_call.1} parent=1 // pred_region
      %109 = dma.done [#allocation7], 2048
    $region37: #{tpu_custom_call.1} parent=1 // pred_fallthru
      _
    // Predicated region
    $region38: #{tpu_custom_call.1} parent=1 // pred_check
      _
    $region39: #{tpu_custom_call.1} parent=1 // pred_check_branch
      %111 = sbr.rel (0) target = $region41
    $region40: #{tpu_custom_call.1} parent=1 // pred_region
      %113 = dma.done [#allocation7], 32
    $region41: #{tpu_custom_call.1} parent=1 // pred_fallthru
      _
    // Predicated region
    $region42: #{tpu_custom_call.1} parent=1 // pred_check
      _
    $region43: #{tpu_custom_call.1} parent=1 // pred_check_branch
      %115 = sbr.rel (0) target = $region45
    $region44: #{tpu_custom_call.1} parent=1 // pred_region
      %117 = dma.done [#allocation10], 40960
    $region45: #{tpu_custom_call.1} parent=1 // pred_fallthru
      _
    // Predicated region
    $region46: #{tpu_custom_call.1} parent=1 // pred_check
      _
    $region47: #{tpu_custom_call.1} parent=1 // pred_check_branch
      %119 = sbr.rel (0) target = $region49
    $region48: #{tpu_custom_call.1} parent=1 // pred_region
      %121 = dma.done [#allocation10], 320
    $region49: #{tpu_custom_call.1} parent=1 // pred_fallthru
      _
    // Predicated region
    $region50: #{tpu_custom_call.1} parent=1 // pred_check
      _
    $region51: #{tpu_custom_call.1} parent=1 // pred_check_branch
      %123 = sbr.rel (0) target = $region53
    $region52: #{tpu_custom_call.1} parent=1 // pred_region
      %125 = dma.done [#allocation13], 2048
    $region53: #{tpu_custom_call.1} parent=1 // pred_fallthru
      _
    // Predicated region
    $region54: #{tpu_custom_call.1} parent=1 // pred_check
      _
    $region55: #{tpu_custom_call.1} parent=1 // pred_check_branch
      %127 = sbr.rel (0) target = $region57
    $region56: #{tpu_custom_call.1} parent=1 // pred_region
      %129 = dma.done [#allocation13], 16
    $region57: #{tpu_custom_call.1} parent=1 // pred_fallthru
      _
    %v130 = vld [vmem:[#allocation3] sm:$0x1]
    %v131 = vld [vmem:[#allocation6] sm:$0xff]
    %v132 = vld [vmem:[#allocation6 + $0x8] sm:$0xff]
    %v133 = vld [vmem:[#allocation6 + $0x10] sm:$0xff]
    %v134 = vld [vmem:[#allocation6 + $0x18] sm:$0xff]
    %v135 = vld [vmem:[#allocation6 + $0x20] sm:$0xff]
    %v136 = vld [vmem:[#allocation6 + $0x28] sm:$0xff]
    %v137 = vld [vmem:[#allocation6 + $0x30] sm:$0xff]
    %v138 = vld [vmem:[#allocation6 + $0x38] sm:$0xff]
    %v139 = vld [vmem:[#allocation6 + $0x40] sm:$0xff]
    %v140 = vld [vmem:[#allocation6 + $0x48] sm:$0xff]
    %v141 = vld [vmem:[#allocation6 + $0x50] sm:$0xff]
    %v142 = vld [vmem:[#allocation6 + $0x58] sm:$0xff]
    %v143 = vld [vmem:[#allocation6 + $0x60] sm:$0xff]
    %v144 = vld [vmem:[#allocation6 + $0x68] sm:$0xff]
    %v145 = vld [vmem:[#allocation6 + $0x70] sm:$0xff]
    %v146 = vld [vmem:[#allocation6 + $0x78] sm:$0xff]
    %v147 = vld [vmem:[#allocation8] sm:$0x3]
    %v149 = vperm.slane %v147, 0
    %v150 = vperm.slane %v147, 1
    %v169 = vunpack.c.l.b16 %v131
    %v170 = vunpack.c.h.b16 %v131
    %v171 = vunpack.c.l.b16 %v132
    %v172 = vunpack.c.h.b16 %v132
    %v173 = vunpack.c.l.b16 %v133
    %v174 = vunpack.c.h.b16 %v133
    %v175 = vunpack.c.l.b16 %v134
    %v176 = vunpack.c.h.b16 %v134
    %v177 = vunpack.c.l.b16 %v135
    %v178 = vunpack.c.h.b16 %v135
    %v179 = vunpack.c.l.b16 %v136
    %v180 = vunpack.c.h.b16 %v136
    %v181 = vunpack.c.l.b16 %v137
    %v182 = vunpack.c.h.b16 %v137
    %v183 = vunpack.c.l.b16 %v138
    %v184 = vunpack.c.h.b16 %v138
    %v185 = vunpack.c.l.b16 %v139
    %v186 = vunpack.c.h.b16 %v139
    %v187 = vunpack.c.l.b16 %v140
    %v188 = vunpack.c.h.b16 %v140
    %v189 = vunpack.c.l.b16 %v141
    %v190 = vunpack.c.h.b16 %v141
    %v191 = vunpack.c.l.b16 %v142
    %v192 = vunpack.c.h.b16 %v142
    %v193 = vunpack.c.l.b16 %v143
    %v194 = vunpack.c.h.b16 %v143
    %v195 = vunpack.c.l.b16 %v144
    %v196 = vunpack.c.h.b16 %v144
    %v197 = vunpack.c.l.b16 %v145
    %v198 = vunpack.c.h.b16 %v145
    %v199 = vunpack.c.l.b16 %v146
    %v200 = vunpack.c.h.b16 %v146
    %v201 = vpack.c.b16 %v171, %v169
    %v202 = vpack.c.b16 %v172, %v170
    %v203 = vpack.c.b16 %v175, %v173
    %v204 = vpack.c.b16 %v176, %v174
    %v205 = vpack.c.b16 %v179, %v177
    %v206 = vpack.c.b16 %v180, %v178
    %v207 = vpack.c.b16 %v183, %v181
    %v208 = vpack.c.b16 %v184, %v182
    %v209 = vpack.c.b16 %v187, %v185
    %v210 = vpack.c.b16 %v188, %v186
    %v211 = vpack.c.b16 %v191, %v189
    %v212 = vpack.c.b16 %v192, %v190
    %v213 = vpack.c.b16 %v195, %v193
    %v214 = vpack.c.b16 %v196, %v194
    %v215 = vpack.c.b16 %v199, %v197
    %v216 = vpack.c.b16 %v200, %v198
    %233 = vmatpush.bf16.msra.mxu0 %v215
    %234 = vmatpush.bf16.msra.mxu0 %v213
    %235 = vmatpush.bf16.msra.mxu0 %v211
    %236 = vmatpush.bf16.msra.mxu0 %v209
    %237 = vmatpush.bf16.msra.mxu0 %v207
    %238 = vmatpush.bf16.msra.mxu0 %v205
    %239 = vmatpush.bf16.msra.mxu0 %v203
    %240 = vmatpush.bf16.msra.mxu0 %v201
    %241 = vmatmul.bf16.gmra.mxu0 %v130
    %v242 = vpop.f32.mrf.mxu0
    %v243 = vadd.f32 %v149, %v242
    %v244 = vpop.f32.mrf.mxu0
    %245 = vdwg.mxu0
    %246 = vmatpush.bf16.msra.mxu0 %v216
    %247 = vmatpush.bf16.msra.mxu0 %v214
    %248 = vmatpush.bf16.msra.mxu0 %v212
    %249 = vmatpush.bf16.msra.mxu0 %v210
    %250 = vmatpush.bf16.msra.mxu0 %v208
    %251 = vmatpush.bf16.msra.mxu0 %v206
    %252 = vmatpush.bf16.msra.mxu0 %v204
    %253 = vmatpush.bf16.msra.mxu0 %v202
    %254 = vmatmul.bf16.gmra.mxu0 %v130
    %v255 = vpop.f32.mrf.mxu0
    %v256 = vadd.f32 %v150, %v255
    %v257 = vpop.f32.mrf.mxu0
    %258 = vdwg.mxu0
    %v261 = vrot.slane %v256, 6
    %vm262 = vcmask 1041408
    %v263 = vsel %vm262, %v243, %v261
    %265 = vst [vmem:[#allocation2] sm:$0xf] %v263
    %v266 = vld [vmem:[#allocation2] sm:$0xf]
    %268 = vst [vmem:[#allocation1] ss:$4 sm:$0xff] %v266
    %v269 = vld.sshfl [vmem:[#allocation1] sm:$0xff pattern:$0x73625140]
    %v270 = vld.sshfl [vmem:[#allocation1 + $0x8] sm:$0xff pattern:$0x73625140]
    %v273 = vpack.c.bf16 %v270, %v269
    %v274 = vunpack.c.l.bf16 %v273
    %v275 = vunpack.c.h.bf16 %v273
    %v276 = vmax.f32 %v274, 0.0
    %v277 = vmax.f32 %v275, 0.0
    %v278 = vpack.c.bf16 %v276, %v276
    %v279 = vpack.c.bf16 %v277, %v277
    %v280 = vld [vmem:[#allocation9] sm:$0xff]
    %v281 = vld [vmem:[#allocation9 + $0x8] sm:$0xff]
    %v282 = vld [vmem:[#allocation9 + $0x10] sm:$0xff]
    %v283 = vld [vmem:[#allocation9 + $0x18] sm:$0xff]
    %v284 = vld [vmem:[#allocation9 + $0x20] sm:$0xff]
    %v285 = vld [vmem:[#allocation9 + $0x28] sm:$0xff]
    %v286 = vld [vmem:[#allocation9 + $0x30] sm:$0xff]
    %v287 = vld [vmem:[#allocation9 + $0x38] sm:$0xff]
    %v288 = vld [vmem:[#allocation9 + $0x40] sm:$0xff]
    %v289 = vld [vmem:[#allocation9 + $0x48] sm:$0xff]
    %v290 = vld [vmem:[#allocation9 + $0x50] sm:$0xff]
    %v291 = vld [vmem:[#allocation9 + $0x58] sm:$0xff]
    %v292 = vld [vmem:[#allocation9 + $0x60] sm:$0xff]
    %v293 = vld [vmem:[#allocation9 + $0x68] sm:$0xff]
    %v294 = vld [vmem:[#allocation9 + $0x70] sm:$0xff]
    %v295 = vld [vmem:[#allocation9 + $0x78] sm:$0xff]
    %v296 = vld [vmem:[#allocation9 + $0x80] sm:$0xff]
    %v297 = vld [vmem:[#allocation9 + $0x88] sm:$0xff]
    %v298 = vld [vmem:[#allocation9 + $0x90] sm:$0xff]
    %v299 = vld [vmem:[#allocation9 + $0x98] sm:$0xff]
    %v300 = vld [vmem:[#allocation9 + $0xa0] sm:$0xff]
    %v301 = vld [vmem:[#allocation9 + $0xa8] sm:$0xff]
    %v302 = vld [vmem:[#allocation9 + $0xb0] sm:$0xff]
    %v303 = vld [vmem:[#allocation9 + $0xb8] sm:$0xff]
    %v304 = vld [vmem:[#allocation9 + $0xc0] sm:$0xff]
    %v305 = vld [vmem:[#allocation9 + $0xc8] sm:$0xff]
    %v306 = vld [vmem:[#allocation9 + $0xd0] sm:$0xff]
    %v307 = vld [vmem:[#allocation9 + $0xd8] sm:$0xff]
    %v308 = vld [vmem:[#allocation9 + $0xe0] sm:$0xff]
    %v309 = vld [vmem:[#allocation9 + $0xe8] sm:$0xff]
    %v310 = vld [vmem:[#allocation9 + $0xf0] sm:$0xff]
    %v311 = vld [vmem:[#allocation9 + $0xf8] sm:$0xff]
    %v312 = vld [vmem:[#allocation11] sm:$0x3]
    %v314 = vperm.slane %v312, 0
    %v315 = vperm.slane %v312, 1
    %v350 = vunpack.c.l.b16 %v280
    %v351 = vunpack.c.h.b16 %v280
    %v352 = vunpack.c.l.b16 %v281
    %v353 = vunpack.c.h.b16 %v281
    %v354 = vunpack.c.l.b16 %v282
    %v355 = vunpack.c.h.b16 %v282
    %v356 = vunpack.c.l.b16 %v283
    %v357 = vunpack.c.h.b16 %v283
    %v358 = vunpack.c.l.b16 %v284
    %v359 = vunpack.c.h.b16 %v284
    %v360 = vunpack.c.l.b16 %v285
    %v361 = vunpack.c.h.b16 %v285
    %v362 = vunpack.c.l.b16 %v286
    %v363 = vunpack.c.h.b16 %v286
    %v364 = vunpack.c.l.b16 %v287
    %v365 = vunpack.c.h.b16 %v287
    %v366 = vunpack.c.l.b16 %v288
    %v367 = vunpack.c.h.b16 %v288
    %v368 = vunpack.c.l.b16 %v289
    %v369 = vunpack.c.h.b16 %v289
    %v370 = vunpack.c.l.b16 %v290
    %v371 = vunpack.c.h.b16 %v290
    %v372 = vunpack.c.l.b16 %v291
    %v373 = vunpack.c.h.b16 %v291
    %v374 = vunpack.c.l.b16 %v292
    %v375 = vunpack.c.h.b16 %v292
    %v376 = vunpack.c.l.b16 %v293
    %v377 = vunpack.c.h.b16 %v293
    %v378 = vunpack.c.l.b16 %v294
    %v379 = vunpack.c.h.b16 %v294
    %v380 = vunpack.c.l.b16 %v295
    %v381 = vunpack.c.h.b16 %v295
    %v382 = vunpack.c.l.b16 %v296
    %v383 = vunpack.c.h.b16 %v296
    %v384 = vunpack.c.l.b16 %v297
    %v385 = vunpack.c.h.b16 %v297
    %v386 = vunpack.c.l.b16 %v298
    %v387 = vunpack.c.h.b16 %v298
    %v388 = vunpack.c.l.b16 %v299
    %v389 = vunpack.c.h.b16 %v299
    %v390 = vunpack.c.l.b16 %v300
    %v391 = vunpack.c.h.b16 %v300
    %v392 = vunpack.c.l.b16 %v301
    %v393 = vunpack.c.h.b16 %v301
    %v394 = vunpack.c.l.b16 %v302
    %v395 = vunpack.c.h.b16 %v302
    %v396 = vunpack.c.l.b16 %v303
    %v397 = vunpack.c.h.b16 %v303
    %v398 = vunpack.c.l.b16 %v304
    %v399 = vunpack.c.h.b16 %v304
    %v400 = vunpack.c.l.b16 %v305
    %v401 = vunpack.c.h.b16 %v305
    %v402 = vunpack.c.l.b16 %v306
    %v403 = vunpack.c.h.b16 %v306
    %v404 = vunpack.c.l.b16 %v307
    %v405 = vunpack.c.h.b16 %v307
    %v406 = vunpack.c.l.b16 %v308
    %v407 = vunpack.c.h.b16 %v308
    %v408 = vunpack.c.l.b16 %v309
    %v409 = vunpack.c.h.b16 %v309
    %v410 = vunpack.c.l.b16 %v310
    %v411 = vunpack.c.h.b16 %v310
    %v412 = vunpack.c.l.b16 %v311
    %v413 = vunpack.c.h.b16 %v311
    %v414 = vpack.c.b16 %v352, %v350
    %v415 = vpack.c.b16 %v353, %v351
    %v416 = vpack.c.b16 %v356, %v354
    %v417 = vpack.c.b16 %v357, %v355
    %v418 = vpack.c.b16 %v360, %v358
    %v419 = vpack.c.b16 %v361, %v359
    %v420 = vpack.c.b16 %v364, %v362
    %v421 = vpack.c.b16 %v365, %v363
    %v422 = vpack.c.b16 %v368, %v366
    %v423 = vpack.c.b16 %v369, %v367
    %v424 = vpack.c.b16 %v372, %v370
    %v425 = vpack.c.b16 %v373, %v371
    %v426 = vpack.c.b16 %v376, %v374
    %v427 = vpack.c.b16 %v377, %v375
    %v428 = vpack.c.b16 %v380, %v378
    %v429 = vpack.c.b16 %v381, %v379
    %v430 = vpack.c.b16 %v384, %v382
    %v431 = vpack.c.b16 %v385, %v383
    %v432 = vpack.c.b16 %v388, %v386
    %v433 = vpack.c.b16 %v389, %v387
    %v434 = vpack.c.b16 %v392, %v390
    %v435 = vpack.c.b16 %v393, %v391
    %v436 = vpack.c.b16 %v396, %v394
    %v437 = vpack.c.b16 %v397, %v395
    %v438 = vpack.c.b16 %v400, %v398
    %v439 = vpack.c.b16 %v401, %v399
    %v440 = vpack.c.b16 %v404, %v402
    %v441 = vpack.c.b16 %v405, %v403
    %v442 = vpack.c.b16 %v408, %v406
    %v443 = vpack.c.b16 %v409, %v407
    %v444 = vpack.c.b16 %v412, %v410
    %v445 = vpack.c.b16 %v413, %v411
    %478 = vmatpush.bf16.msra.mxu0 %v428
    %479 = vmatpush.bf16.msra.mxu0 %v426
    %480 = vmatpush.bf16.msra.mxu0 %v424
    %481 = vmatpush.bf16.msra.mxu0 %v422
    %482 = vmatpush.bf16.msra.mxu0 %v420
    %483 = vmatpush.bf16.msra.mxu0 %v418
    %484 = vmatpush.bf16.msra.mxu0 %v416
    %485 = vmatpush.bf16.msra.mxu0 %v414
    %486 = vmatmul.bf16.gmra.mxu0 %v278
    %v487 = vpop.f32.mrf.mxu0
    %v488 = vadd.f32 %v314, %v487
    %v489 = vpop.f32.mrf.mxu0
    %490 = vdwg.mxu0
    %491 = vmatpush.bf16.msra.mxu0 %v444
    %492 = vmatpush.bf16.msra.mxu0 %v442
    %493 = vmatpush.bf16.msra.mxu0 %v440
    %494 = vmatpush.bf16.msra.mxu0 %v438
    %495 = vmatpush.bf16.msra.mxu0 %v436
    %496 = vmatpush.bf16.msra.mxu0 %v434
    %497 = vmatpush.bf16.msra.mxu0 %v432
    %498 = vmatpush.bf16.msra.mxu0 %v430
    %499 = vmatmul.bf16.gmra.mxu0 %v279
    %v500 = vpop.f32.mrf.mxu0
    %v501 = vadd.f32 %v488, %v500
    %v502 = vpop.f32.mrf.mxu0
    %503 = vdwg.mxu0
    %504 = vmatpush.bf16.msra.mxu0 %v429
    %505 = vmatpush.bf16.msra.mxu0 %v427
    %506 = vmatpush.bf16.msra.mxu0 %v425
    %507 = vmatpush.bf16.msra.mxu0 %v423
    %508 = vmatpush.bf16.msra.mxu0 %v421
    %509 = vmatpush.bf16.msra.mxu0 %v419
    %510 = vmatpush.bf16.msra.mxu0 %v417
    %511 = vmatpush.bf16.msra.mxu0 %v415
    %512 = vmatmul.bf16.gmra.mxu0 %v278
    %v513 = vpop.f32.mrf.mxu0
    %v514 = vadd.f32 %v315, %v513
    %v515 = vpop.f32.mrf.mxu0
    %516 = vdwg.mxu0
    %517 = vmatpush.bf16.msra.mxu0 %v445
    %518 = vmatpush.bf16.msra.mxu0 %v443
    %519 = vmatpush.bf16.msra.mxu0 %v441
    %520 = vmatpush.bf16.msra.mxu0 %v439
    %521 = vmatpush.bf16.msra.mxu0 %v437
    %522 = vmatpush.bf16.msra.mxu0 %v435
    %523 = vmatpush.bf16.msra.mxu0 %v433
    %524 = vmatpush.bf16.msra.mxu0 %v431
    %525 = vmatmul.bf16.gmra.mxu0 %v279
    %v526 = vpop.f32.mrf.mxu0
    %v527 = vadd.f32 %v514, %v526
    %v528 = vpop.f32.mrf.mxu0
    %529 = vdwg.mxu0
    %v530 = vpack.c.bf16 %v527, %v501
    %v531 = vunpack.c.l.bf16 %v530
    %v532 = vunpack.c.h.bf16 %v530
    %v533 = vmax.f32 %v531, 0.0
    %v534 = vmax.f32 %v532, 0.0
    %v535 = vpack.c.bf16 %v533, %v533
    %v536 = vpack.c.bf16 %v534, %v534
    %s537 = scalar_lea.vmem [#allocation9], 256
    %v538 = vld [vmem:[%s537] sm:$0xff]
    %v539 = vld [vmem:[%s537 + $0x8] sm:$0xff]
    %v540 = vld [vmem:[%s537 + $0x10] sm:$0xff]
    %v541 = vld [vmem:[%s537 + $0x18] sm:$0xff]
    %v542 = vld [vmem:[%s537 + $0x20] sm:$0xff]
    %v543 = vld [vmem:[%s537 + $0x28] sm:$0xff]
    %v544 = vld [vmem:[%s537 + $0x30] sm:$0xff]
    %v545 = vld [vmem:[%s537 + $0x38] sm:$0xff]
    %v546 = vld [vmem:[%s537 + $0x40] sm:$0xff]
    %v547 = vld [vmem:[%s537 + $0x48] sm:$0xff]
    %v548 = vld [vmem:[%s537 + $0x50] sm:$0xff]
    %v549 = vld [vmem:[%s537 + $0x58] sm:$0xff]
    %v550 = vld [vmem:[%s537 + $0x60] sm:$0xff]
    %v551 = vld [vmem:[%s537 + $0x68] sm:$0xff]
    %v552 = vld [vmem:[%s537 + $0x70] sm:$0xff]
    %v553 = vld [vmem:[%s537 + $0x78] sm:$0xff]
    %v554 = vld [vmem:[%s537 + $0x80] sm:$0xff]
    %v555 = vld [vmem:[%s537 + $0x88] sm:$0xff]
    %v556 = vld [vmem:[%s537 + $0x90] sm:$0xff]
    %v557 = vld [vmem:[%s537 + $0x98] sm:$0xff]
    %v558 = vld [vmem:[%s537 + $0xa0] sm:$0xff]
    %v559 = vld [vmem:[%s537 + $0xa8] sm:$0xff]
    %v560 = vld [vmem:[%s537 + $0xb0] sm:$0xff]
    %v561 = vld [vmem:[%s537 + $0xb8] sm:$0xff]
    %v562 = vld [vmem:[%s537 + $0xc0] sm:$0xff]
    %v563 = vld [vmem:[%s537 + $0xc8] sm:$0xff]
    %v564 = vld [vmem:[%s537 + $0xd0] sm:$0xff]
    %v565 = vld [vmem:[%s537 + $0xd8] sm:$0xff]
    %v566 = vld [vmem:[%s537 + $0xe0] sm:$0xff]
    %v567 = vld [vmem:[%s537 + $0xe8] sm:$0xff]
    %v568 = vld [vmem:[%s537 + $0xf0] sm:$0xff]
    %v569 = vld [vmem:[%s537 + $0xf8] sm:$0xff]
    %s570 = scalar_lea.vmem [#allocation11], 2
    %v571 = vld [vmem:[%s570] sm:$0x3]
    %v573 = vperm.slane %v571, 0
    %v574 = vperm.slane %v571, 1
    %v609 = vunpack.c.l.b16 %v538
    %v610 = vunpack.c.h.b16 %v538
    %v611 = vunpack.c.l.b16 %v539
    %v612 = vunpack.c.h.b16 %v539
    %v613 = vunpack.c.l.b16 %v540
    %v614 = vunpack.c.h.b16 %v540
    %v615 = vunpack.c.l.b16 %v541
    %v616 = vunpack.c.h.b16 %v541
    %v617 = vunpack.c.l.b16 %v542
    %v618 = vunpack.c.h.b16 %v542
    %v619 = vunpack.c.l.b16 %v543
    %v620 = vunpack.c.h.b16 %v543
    %v621 = vunpack.c.l.b16 %v544
    %v622 = vunpack.c.h.b16 %v544
    %v623 = vunpack.c.l.b16 %v545
    %v624 = vunpack.c.h.b16 %v545
    %v625 = vunpack.c.l.b16 %v546
    %v626 = vunpack.c.h.b16 %v546
    %v627 = vunpack.c.l.b16 %v547
    %v628 = vunpack.c.h.b16 %v547
    %v629 = vunpack.c.l.b16 %v548
    %v630 = vunpack.c.h.b16 %v548
    %v631 = vunpack.c.l.b16 %v549
    %v632 = vunpack.c.h.b16 %v549
    %v633 = vunpack.c.l.b16 %v550
    %v634 = vunpack.c.h.b16 %v550
    %v635 = vunpack.c.l.b16 %v551
    %v636 = vunpack.c.h.b16 %v551
    %v637 = vunpack.c.l.b16 %v552
    %v638 = vunpack.c.h.b16 %v552
    %v639 = vunpack.c.l.b16 %v553
    %v640 = vunpack.c.h.b16 %v553
    %v641 = vunpack.c.l.b16 %v554
    %v642 = vunpack.c.h.b16 %v554
    %v643 = vunpack.c.l.b16 %v555
    %v644 = vunpack.c.h.b16 %v555
    %v645 = vunpack.c.l.b16 %v556
    %v646 = vunpack.c.h.b16 %v556
    %v647 = vunpack.c.l.b16 %v557
    %v648 = vunpack.c.h.b16 %v557
    %v649 = vunpack.c.l.b16 %v558
    %v650 = vunpack.c.h.b16 %v558
    %v651 = vunpack.c.l.b16 %v559
    %v652 = vunpack.c.h.b16 %v559
    %v653 = vunpack.c.l.b16 %v560
    %v654 = vunpack.c.h.b16 %v560
    %v655 = vunpack.c.l.b16 %v561
    %v656 = vunpack.c.h.b16 %v561
    %v657 = vunpack.c.l.b16 %v562
    %v658 = vunpack.c.h.b16 %v562
    %v659 = vunpack.c.l.b16 %v563
    %v660 = vunpack.c.h.b16 %v563
    %v661 = vunpack.c.l.b16 %v564
    %v662 = vunpack.c.h.b16 %v564
    %v663 = vunpack.c.l.b16 %v565
    %v664 = vunpack.c.h.b16 %v565
    %v665 = vunpack.c.l.b16 %v566
    %v666 = vunpack.c.h.b16 %v566
    %v667 = vunpack.c.l.b16 %v567
    %v668 = vunpack.c.h.b16 %v567
    %v669 = vunpack.c.l.b16 %v568
    %v670 = vunpack.c.h.b16 %v568
    %v671 = vunpack.c.l.b16 %v569
    %v672 = vunpack.c.h.b16 %v569
    %v673 = vpack.c.b16 %v611, %v609
    %v674 = vpack.c.b16 %v612, %v610
    %v675 = vpack.c.b16 %v615, %v613
    %v676 = vpack.c.b16 %v616, %v614
    %v677 = vpack.c.b16 %v619, %v617
    %v678 = vpack.c.b16 %v620, %v618
    %v679 = vpack.c.b16 %v623, %v621
    %v680 = vpack.c.b16 %v624, %v622
    %v681 = vpack.c.b16 %v627, %v625
    %v682 = vpack.c.b16 %v628, %v626
    %v683 = vpack.c.b16 %v631, %v629
    %v684 = vpack.c.b16 %v632, %v630
    %v685 = vpack.c.b16 %v635, %v633
    %v686 = vpack.c.b16 %v636, %v634
    %v687 = vpack.c.b16 %v639, %v637
    %v688 = vpack.c.b16 %v640, %v638
    %v689 = vpack.c.b16 %v643, %v641
    %v690 = vpack.c.b16 %v644, %v642
    %v691 = vpack.c.b16 %v647, %v645
    %v692 = vpack.c.b16 %v648, %v646
    %v693 = vpack.c.b16 %v651, %v649
    %v694 = vpack.c.b16 %v652, %v650
    %v695 = vpack.c.b16 %v655, %v653
    %v696 = vpack.c.b16 %v656, %v654
    %v697 = vpack.c.b16 %v659, %v657
    %v698 = vpack.c.b16 %v660, %v658
    %v699 = vpack.c.b16 %v663, %v661
    %v700 = vpack.c.b16 %v664, %v662
    %v701 = vpack.c.b16 %v667, %v665
    %v702 = vpack.c.b16 %v668, %v666
    %v703 = vpack.c.b16 %v671, %v669
    %v704 = vpack.c.b16 %v672, %v670
    %737 = vmatpush.bf16.msra.mxu0 %v687
    %738 = vmatpush.bf16.msra.mxu0 %v685
    %739 = vmatpush.bf16.msra.mxu0 %v683
    %740 = vmatpush.bf16.msra.mxu0 %v681
    %741 = vmatpush.bf16.msra.mxu0 %v679
    %742 = vmatpush.bf16.msra.mxu0 %v677
    %743 = vmatpush.bf16.msra.mxu0 %v675
    %744 = vmatpush.bf16.msra.mxu0 %v673
    %745 = vmatmul.bf16.gmra.mxu0 %v535
    %v746 = vpop.f32.mrf.mxu0
    %v747 = vadd.f32 %v573, %v746
    %v748 = vpop.f32.mrf.mxu0
    %749 = vdwg.mxu0
    %750 = vmatpush.bf16.msra.mxu0 %v703
    %751 = vmatpush.bf16.msra.mxu0 %v701
    %752 = vmatpush.bf16.msra.mxu0 %v699
    %753 = vmatpush.bf16.msra.mxu0 %v697
    %754 = vmatpush.bf16.msra.mxu0 %v695
    %755 = vmatpush.bf16.msra.mxu0 %v693
    %756 = vmatpush.bf16.msra.mxu0 %v691
    %757 = vmatpush.bf16.msra.mxu0 %v689
    %758 = vmatmul.bf16.gmra.mxu0 %v536
    %v759 = vpop.f32.mrf.mxu0
    %v760 = vadd.f32 %v747, %v759
    %v761 = vpop.f32.mrf.mxu0
    %762 = vdwg.mxu0
    %763 = vmatpush.bf16.msra.mxu0 %v688
    %764 = vmatpush.bf16.msra.mxu0 %v686
    %765 = vmatpush.bf16.msra.mxu0 %v684
    %766 = vmatpush.bf16.msra.mxu0 %v682
    %767 = vmatpush.bf16.msra.mxu0 %v680
    %768 = vmatpush.bf16.msra.mxu0 %v678
    %769 = vmatpush.bf16.msra.mxu0 %v676
    %770 = vmatpush.bf16.msra.mxu0 %v674
    %771 = vmatmul.bf16.gmra.mxu0 %v535
    %v772 = vpop.f32.mrf.mxu0
    %v773 = vadd.f32 %v574, %v772
    %v774 = vpop.f32.mrf.mxu0
    %775 = vdwg.mxu0
    %776 = vmatpush.bf16.msra.mxu0 %v704
    %777 = vmatpush.bf16.msra.mxu0 %v702
    %778 = vmatpush.bf16.msra.mxu0 %v700
    %779 = vmatpush.bf16.msra.mxu0 %v698
    %780 = vmatpush.bf16.msra.mxu0 %v696
    %781 = vmatpush.bf16.msra.mxu0 %v694
    %782 = vmatpush.bf16.msra.mxu0 %v692
    %783 = vmatpush.bf16.msra.mxu0 %v690
    %784 = vmatmul.bf16.gmra.mxu0 %v536
    %v785 = vpop.f32.mrf.mxu0
    %v786 = vadd.f32 %v773, %v785
    %v787 = vpop.f32.mrf.mxu0
    %788 = vdwg.mxu0
    %v789 = vmul.f32 %v760, 0.3
    %v790 = vmul.f32 %v786, 0.3
    %v793 = vrot.slane %v790, 6
    %v794 = vsel %vm262, %v789, %v793
    %v796 = vadd.f32 %v266, %v794
    %797 = vst [vmem:[#allocation2] sm:$0xf] %v796
    %v798 = vld [vmem:[#allocation2] sm:$0xf]
    %800 = vst [vmem:[#allocation1] ss:$4 sm:$0xff] %v798
    %v801 = vld.sshfl [vmem:[#allocation1] sm:$0xff pattern:$0x73625140]
    %v802 = vld.sshfl [vmem:[#allocation1 + $0x8] sm:$0xff pattern:$0x73625140]
    %v805 = vpack.c.bf16 %v802, %v801
    %v806 = vunpack.c.l.bf16 %v805
    %v807 = vunpack.c.h.bf16 %v805
    %v808 = vmax.f32 %v806, 0.0
    %v809 = vmax.f32 %v807, 0.0
    %v810 = vpack.c.bf16 %v808, %v808
    %v811 = vpack.c.bf16 %v809, %v809
    %s812 = scalar_lea.vmem [#allocation9], 512
    %v813 = vld [vmem:[%s812] sm:$0xff]
    %v814 = vld [vmem:[%s812 + $0x8] sm:$0xff]
    %v815 = vld [vmem:[%s812 + $0x10] sm:$0xff]
    %v816 = vld [vmem:[%s812 + $0x18] sm:$0xff]
    %v817 = vld [vmem:[%s812 + $0x20] sm:$0xff]
    %v818 = vld [vmem:[%s812 + $0x28] sm:$0xff]
    %v819 = vld [vmem:[%s812 + $0x30] sm:$0xff]
    %v820 = vld [vmem:[%s812 + $0x38] sm:$0xff]
    %v821 = vld [vmem:[%s812 + $0x40] sm:$0xff]
    %v822 = vld [vmem:[%s812 + $0x48] sm:$0xff]
    %v823 = vld [vmem:[%s812 + $0x50] sm:$0xff]
    %v824 = vld [vmem:[%s812 + $0x58] sm:$0xff]
    %v825 = vld [vmem:[%s812 + $0x60] sm:$0xff]
    %v826 = vld [vmem:[%s812 + $0x68] sm:$0xff]
    %v827 = vld [vmem:[%s812 + $0x70] sm:$0xff]
    %v828 = vld [vmem:[%s812 + $0x78] sm:$0xff]
    %v829 = vld [vmem:[%s812 + $0x80] sm:$0xff]
    %v830 = vld [vmem:[%s812 + $0x88] sm:$0xff]
    %v831 = vld [vmem:[%s812 + $0x90] sm:$0xff]
    %v832 = vld [vmem:[%s812 + $0x98] sm:$0xff]
    %v833 = vld [vmem:[%s812 + $0xa0] sm:$0xff]
    %v834 = vld [vmem:[%s812 + $0xa8] sm:$0xff]
    %v835 = vld [vmem:[%s812 + $0xb0] sm:$0xff]
    %v836 = vld [vmem:[%s812 + $0xb8] sm:$0xff]
    %v837 = vld [vmem:[%s812 + $0xc0] sm:$0xff]
    %v838 = vld [vmem:[%s812 + $0xc8] sm:$0xff]
    %v839 = vld [vmem:[%s812 + $0xd0] sm:$0xff]
    %v840 = vld [vmem:[%s812 + $0xd8] sm:$0xff]
    %v841 = vld [vmem:[%s812 + $0xe0] sm:$0xff]
    %v842 = vld [vmem:[%s812 + $0xe8] sm:$0xff]
    %v843 = vld [vmem:[%s812 + $0xf0] sm:$0xff]
    %v844 = vld [vmem:[%s812 + $0xf8] sm:$0xff]
    %s845 = scalar_lea.vmem [#allocation11], 4
    %v846 = vld [vmem:[%s845] sm:$0x3]
    %v848 = vperm.slane %v846, 0
    %v849 = vperm.slane %v846, 1
    %v884 = vunpack.c.l.b16 %v813
    %v885 = vunpack.c.h.b16 %v813
    %v886 = vunpack.c.l.b16 %v814
    %v887 = vunpack.c.h.b16 %v814
    %v888 = vunpack.c.l.b16 %v815
    %v889 = vunpack.c.h.b16 %v815
    %v890 = vunpack.c.l.b16 %v816
    %v891 = vunpack.c.h.b16 %v816
    %v892 = vunpack.c.l.b16 %v817
    %v893 = vunpack.c.h.b16 %v817
    %v894 = vunpack.c.l.b16 %v818
    %v895 = vunpack.c.h.b16 %v818
    %v896 = vunpack.c.l.b16 %v819
    %v897 = vunpack.c.h.b16 %v819
    %v898 = vunpack.c.l.b16 %v820
    %v899 = vunpack.c.h.b16 %v820
    %v900 = vunpack.c.l.b16 %v821
    %v901 = vunpack.c.h.b16 %v821
    %v902 = vunpack.c.l.b16 %v822
    %v903 = vunpack.c.h.b16 %v822
    %v904 = vunpack.c.l.b16 %v823
    %v905 = vunpack.c.h.b16 %v823
    %v906 = vunpack.c.l.b16 %v824
    %v907 = vunpack.c.h.b16 %v824
    %v908 = vunpack.c.l.b16 %v825
    %v909 = vunpack.c.h.b16 %v825
    %v910 = vunpack.c.l.b16 %v826
    %v911 = vunpack.c.h.b16 %v826
    %v912 = vunpack.c.l.b16 %v827
    %v913 = vunpack.c.h.b16 %v827
    %v914 = vunpack.c.l.b16 %v828
    %v915 = vunpack.c.h.b16 %v828
    %v916 = vunpack.c.l.b16 %v829
    %v917 = vunpack.c.h.b16 %v829
    %v918 = vunpack.c.l.b16 %v830
    %v919 = vunpack.c.h.b16 %v830
    %v920 = vunpack.c.l.b16 %v831
    %v921 = vunpack.c.h.b16 %v831
    %v922 = vunpack.c.l.b16 %v832
    %v923 = vunpack.c.h.b16 %v832
    %v924 = vunpack.c.l.b16 %v833
    %v925 = vunpack.c.h.b16 %v833
    %v926 = vunpack.c.l.b16 %v834
    %v927 = vunpack.c.h.b16 %v834
    %v928 = vunpack.c.l.b16 %v835
    %v929 = vunpack.c.h.b16 %v835
    %v930 = vunpack.c.l.b16 %v836
    %v931 = vunpack.c.h.b16 %v836
    %v932 = vunpack.c.l.b16 %v837
    %v933 = vunpack.c.h.b16 %v837
    %v934 = vunpack.c.l.b16 %v838
    %v935 = vunpack.c.h.b16 %v838
    %v936 = vunpack.c.l.b16 %v839
    %v937 = vunpack.c.h.b16 %v839
    %v938 = vunpack.c.l.b16 %v840
    %v939 = vunpack.c.h.b16 %v840
    %v940 = vunpack.c.l.b16 %v841
    %v941 = vunpack.c.h.b16 %v841
    %v942 = vunpack.c.l.b16 %v842
    %v943 = vunpack.c.h.b16 %v842
    %v944 = vunpack.c.l.b16 %v843
    %v945 = vunpack.c.h.b16 %v843
    %v946 = vunpack.c.l.b16 %v844
    %v947 = vunpack.c.h.b16 %v844
    %v948 = vpack.c.b16 %v886, %v884
    %v949 = vpack.c.b16 %v887, %v885
    %v950 = vpack.c.b16 %v890, %v888
    %v951 = vpack.c.b16 %v891, %v889
    %v952 = vpack.c.b16 %v894, %v892
    %v953 = vpack.c.b16 %v895, %v893
    %v954 = vpack.c.b16 %v898, %v896
    %v955 = vpack.c.b16 %v899, %v897
    %v956 = vpack.c.b16 %v902, %v900
    %v957 = vpack.c.b16 %v903, %v901
    %v958 = vpack.c.b16 %v906, %v904
    %v959 = vpack.c.b16 %v907, %v905
    %v960 = vpack.c.b16 %v910, %v908
    %v961 = vpack.c.b16 %v911, %v909
    %v962 = vpack.c.b16 %v914, %v912
    %v963 = vpack.c.b16 %v915, %v913
    %v964 = vpack.c.b16 %v918, %v916
    %v965 = vpack.c.b16 %v919, %v917
    %v966 = vpack.c.b16 %v922, %v920
    %v967 = vpack.c.b16 %v923, %v921
    %v968 = vpack.c.b16 %v926, %v924
    %v969 = vpack.c.b16 %v927, %v925
    %v970 = vpack.c.b16 %v930, %v928
    %v971 = vpack.c.b16 %v931, %v929
    %v972 = vpack.c.b16 %v934, %v932
    %v973 = vpack.c.b16 %v935, %v933
    %v974 = vpack.c.b16 %v938, %v936
    %v975 = vpack.c.b16 %v939, %v937
    %v976 = vpack.c.b16 %v942, %v940
    %v977 = vpack.c.b16 %v943, %v941
    %v978 = vpack.c.b16 %v946, %v944
    %v979 = vpack.c.b16 %v947, %v945
    %1012 = vmatpush.bf16.msra.mxu0 %v962
    %1013 = vmatpush.bf16.msra.mxu0 %v960
    %1014 = vmatpush.bf16.msra.mxu0 %v958
    %1015 = vmatpush.bf16.msra.mxu0 %v956
    %1016 = vmatpush.bf16.msra.mxu0 %v954
    %1017 = vmatpush.bf16.msra.mxu0 %v952
    %1018 = vmatpush.bf16.msra.mxu0 %v950
    %1019 = vmatpush.bf16.msra.mxu0 %v948
    %1020 = vmatmul.bf16.gmra.mxu0 %v810
    %v1021 = vpop.f32.mrf.mxu0
    %v1022 = vadd.f32 %v848, %v1021
    %v1023 = vpop.f32.mrf.mxu0
    %1024 = vdwg.mxu0
    %1025 = vmatpush.bf16.msra.mxu0 %v978
    %1026 = vmatpush.bf16.msra.mxu0 %v976
    %1027 = vmatpush.bf16.msra.mxu0 %v974
    %1028 = vmatpush.bf16.msra.mxu0 %v972
    %1029 = vmatpush.bf16.msra.mxu0 %v970
    %1030 = vmatpush.bf16.msra.mxu0 %v968
    %1031 = vmatpush.bf16.msra.mxu0 %v966
    %1032 = vmatpush.bf16.msra.mxu0 %v964
    %1033 = vmatmul.bf16.gmra.mxu0 %v811
    %v1034 = vpop.f32.mrf.mxu0
    %v1035 = vadd.f32 %v1022, %v1034
    %v1036 = vpop.f32.mrf.mxu0
    %1037 = vdwg.mxu0
    %1038 = vmatpush.bf16.msra.mxu0 %v963
    %1039 = vmatpush.bf16.msra.mxu0 %v961
    %1040 = vmatpush.bf16.msra.mxu0 %v959
    %1041 = vmatpush.bf16.msra.mxu0 %v957
    %1042 = vmatpush.bf16.msra.mxu0 %v955
    %1043 = vmatpush.bf16.msra.mxu0 %v953
    %1044 = vmatpush.bf16.msra.mxu0 %v951
    %1045 = vmatpush.bf16.msra.mxu0 %v949
    %1046 = vmatmul.bf16.gmra.mxu0 %v810
    %v1047 = vpop.f32.mrf.mxu0
    %v1048 = vadd.f32 %v849, %v1047
    %v1049 = vpop.f32.mrf.mxu0
    %1050 = vdwg.mxu0
    %1051 = vmatpush.bf16.msra.mxu0 %v979
    %1052 = vmatpush.bf16.msra.mxu0 %v977
    %1053 = vmatpush.bf16.msra.mxu0 %v975
    %1054 = vmatpush.bf16.msra.mxu0 %v973
    %1055 = vmatpush.bf16.msra.mxu0 %v971
    %1056 = vmatpush.bf16.msra.mxu0 %v969
    %1057 = vmatpush.bf16.msra.mxu0 %v967
    %1058 = vmatpush.bf16.msra.mxu0 %v965
    %1059 = vmatmul.bf16.gmra.mxu0 %v811
    %v1060 = vpop.f32.mrf.mxu0
    %v1061 = vadd.f32 %v1048, %v1060
    %v1062 = vpop.f32.mrf.mxu0
    %1063 = vdwg.mxu0
    %v1064 = vpack.c.bf16 %v1061, %v1035
    %v1065 = vunpack.c.l.bf16 %v1064
    %v1066 = vunpack.c.h.bf16 %v1064
    %v1067 = vmax.f32 %v1065, 0.0
    %v1068 = vmax.f32 %v1066, 0.0
    %v1069 = vpack.c.bf16 %v1067, %v1067
    %v1070 = vpack.c.bf16 %v1068, %v1068
    %s1071 = scalar_lea.vmem [#allocation9], 768
    %v1072 = vld [vmem:[%s1071] sm:$0xff]
    %v1073 = vld [vmem:[%s1071 + $0x8] sm:$0xff]
    %v1074 = vld [vmem:[%s1071 + $0x10] sm:$0xff]
    %v1075 = vld [vmem:[%s1071 + $0x18] sm:$0xff]
    %v1076 = vld [vmem:[%s1071 + $0x20] sm:$0xff]
    %v1077 = vld [vmem:[%s1071 + $0x28] sm:$0xff]
    %v1078 = vld [vmem:[%s1071 + $0x30] sm:$0xff]
    %v1079 = vld [vmem:[%s1071 + $0x38] sm:$0xff]
    %v1080 = vld [vmem:[%s1071 + $0x40] sm:$0xff]
    %v1081 = vld [vmem:[%s1071 + $0x48] sm:$0xff]
    %v1082 = vld [vmem:[%s1071 + $0x50] sm:$0xff]
    %v1083 = vld [vmem:[%s1071 + $0x58] sm:$0xff]
    %v1084 = vld [vmem:[%s1071 + $0x60] sm:$0xff]
    %v1085 = vld [vmem:[%s1071 + $0x68] sm:$0xff]
    %v1086 = vld [vmem:[%s1071 + $0x70] sm:$0xff]
    %v1087 = vld [vmem:[%s1071 + $0x78] sm:$0xff]
    %v1088 = vld [vmem:[%s1071 + $0x80] sm:$0xff]
    %v1089 = vld [vmem:[%s1071 + $0x88] sm:$0xff]
    %v1090 = vld [vmem:[%s1071 + $0x90] sm:$0xff]
    %v1091 = vld [vmem:[%s1071 + $0x98] sm:$0xff]
    %v1092 = vld [vmem:[%s1071 + $0xa0] sm:$0xff]
    %v1093 = vld [vmem:[%s1071 + $0xa8] sm:$0xff]
    %v1094 = vld [vmem:[%s1071 + $0xb0] sm:$0xff]
    %v1095 = vld [vmem:[%s1071 + $0xb8] sm:$0xff]
    %v1096 = vld [vmem:[%s1071 + $0xc0] sm:$0xff]
    %v1097 = vld [vmem:[%s1071 + $0xc8] sm:$0xff]
    %v1098 = vld [vmem:[%s1071 + $0xd0] sm:$0xff]
    %v1099 = vld [vmem:[%s1071 + $0xd8] sm:$0xff]
    %v1100 = vld [vmem:[%s1071 + $0xe0] sm:$0xff]
    %v1101 = vld [vmem:[%s1071 + $0xe8] sm:$0xff]
    %v1102 = vld [vmem:[%s1071 + $0xf0] sm:$0xff]
    %v1103 = vld [vmem:[%s1071 + $0xf8] sm:$0xff]
    %s1104 = scalar_lea.vmem [#allocation11], 6
    %v1105 = vld [vmem:[%s1104] sm:$0x3]
    %v1107 = vperm.slane %v1105, 0
    %v1108 = vperm.slane %v1105, 1
    %v1143 = vunpack.c.l.b16 %v1072
    %v1144 = vunpack.c.h.b16 %v1072
    %v1145 = vunpack.c.l.b16 %v1073
    %v1146 = vunpack.c.h.b16 %v1073
    %v1147 = vunpack.c.l.b16 %v1074
    %v1148 = vunpack.c.h.b16 %v1074
    %v1149 = vunpack.c.l.b16 %v1075
    %v1150 = vunpack.c.h.b16 %v1075
    %v1151 = vunpack.c.l.b16 %v1076
    %v1152 = vunpack.c.h.b16 %v1076
    %v1153 = vunpack.c.l.b16 %v1077
    %v1154 = vunpack.c.h.b16 %v1077
    %v1155 = vunpack.c.l.b16 %v1078
    %v1156 = vunpack.c.h.b16 %v1078
    %v1157 = vunpack.c.l.b16 %v1079
    %v1158 = vunpack.c.h.b16 %v1079
    %v1159 = vunpack.c.l.b16 %v1080
    %v1160 = vunpack.c.h.b16 %v1080
    %v1161 = vunpack.c.l.b16 %v1081
    %v1162 = vunpack.c.h.b16 %v1081
    %v1163 = vunpack.c.l.b16 %v1082
    %v1164 = vunpack.c.h.b16 %v1082
    %v1165 = vunpack.c.l.b16 %v1083
    %v1166 = vunpack.c.h.b16 %v1083
    %v1167 = vunpack.c.l.b16 %v1084
    %v1168 = vunpack.c.h.b16 %v1084
    %v1169 = vunpack.c.l.b16 %v1085
    %v1170 = vunpack.c.h.b16 %v1085
    %v1171 = vunpack.c.l.b16 %v1086
    %v1172 = vunpack.c.h.b16 %v1086
    %v1173 = vunpack.c.l.b16 %v1087
    %v1174 = vunpack.c.h.b16 %v1087
    %v1175 = vunpack.c.l.b16 %v1088
    %v1176 = vunpack.c.h.b16 %v1088
    %v1177 = vunpack.c.l.b16 %v1089
    %v1178 = vunpack.c.h.b16 %v1089
    %v1179 = vunpack.c.l.b16 %v1090
    %v1180 = vunpack.c.h.b16 %v1090
    %v1181 = vunpack.c.l.b16 %v1091
    %v1182 = vunpack.c.h.b16 %v1091
    %v1183 = vunpack.c.l.b16 %v1092
    %v1184 = vunpack.c.h.b16 %v1092
    %v1185 = vunpack.c.l.b16 %v1093
    %v1186 = vunpack.c.h.b16 %v1093
    %v1187 = vunpack.c.l.b16 %v1094
    %v1188 = vunpack.c.h.b16 %v1094
    %v1189 = vunpack.c.l.b16 %v1095
    %v1190 = vunpack.c.h.b16 %v1095
    %v1191 = vunpack.c.l.b16 %v1096
    %v1192 = vunpack.c.h.b16 %v1096
    %v1193 = vunpack.c.l.b16 %v1097
    %v1194 = vunpack.c.h.b16 %v1097
    %v1195 = vunpack.c.l.b16 %v1098
    %v1196 = vunpack.c.h.b16 %v1098
    %v1197 = vunpack.c.l.b16 %v1099
    %v1198 = vunpack.c.h.b16 %v1099
    %v1199 = vunpack.c.l.b16 %v1100
    %v1200 = vunpack.c.h.b16 %v1100
    %v1201 = vunpack.c.l.b16 %v1101
    %v1202 = vunpack.c.h.b16 %v1101
    %v1203 = vunpack.c.l.b16 %v1102
    %v1204 = vunpack.c.h.b16 %v1102
    %v1205 = vunpack.c.l.b16 %v1103
    %v1206 = vunpack.c.h.b16 %v1103
    %v1207 = vpack.c.b16 %v1145, %v1143
    %v1208 = vpack.c.b16 %v1146, %v1144
    %v1209 = vpack.c.b16 %v1149, %v1147
    %v1210 = vpack.c.b16 %v1150, %v1148
    %v1211 = vpack.c.b16 %v1153, %v1151
    %v1212 = vpack.c.b16 %v1154, %v1152
    %v1213 = vpack.c.b16 %v1157, %v1155
    %v1214 = vpack.c.b16 %v1158, %v1156
    %v1215 = vpack.c.b16 %v1161, %v1159
    %v1216 = vpack.c.b16 %v1162, %v1160
    %v1217 = vpack.c.b16 %v1165, %v1163
    %v1218 = vpack.c.b16 %v1166, %v1164
    %v1219 = vpack.c.b16 %v1169, %v1167
    %v1220 = vpack.c.b16 %v1170, %v1168
    %v1221 = vpack.c.b16 %v1173, %v1171
    %v1222 = vpack.c.b16 %v1174, %v1172
    %v1223 = vpack.c.b16 %v1177, %v1175
    %v1224 = vpack.c.b16 %v1178, %v1176
    %v1225 = vpack.c.b16 %v1181, %v1179
    %v1226 = vpack.c.b16 %v1182, %v1180
    %v1227 = vpack.c.b16 %v1185, %v1183
    %v1228 = vpack.c.b16 %v1186, %v1184
    %v1229 = vpack.c.b16 %v1189, %v1187
    %v1230 = vpack.c.b16 %v1190, %v1188
    %v1231 = vpack.c.b16 %v1193, %v1191
    %v1232 = vpack.c.b16 %v1194, %v1192
    %v1233 = vpack.c.b16 %v1197, %v1195
    %v1234 = vpack.c.b16 %v1198, %v1196
    %v1235 = vpack.c.b16 %v1201, %v1199
    %v1236 = vpack.c.b16 %v1202, %v1200
    %v1237 = vpack.c.b16 %v1205, %v1203
    %v1238 = vpack.c.b16 %v1206, %v1204
    %1271 = vmatpush.bf16.msra.mxu0 %v1221
    %1272 = vmatpush.bf16.msra.mxu0 %v1219
    %1273 = vmatpush.bf16.msra.mxu0 %v1217
    %1274 = vmatpush.bf16.msra.mxu0 %v1215
    %1275 = vmatpush.bf16.msra.mxu0 %v1213
    %1276 = vmatpush.bf16.msra.mxu0 %v1211
    %1277 = vmatpush.bf16.msra.mxu0 %v1209
    %1278 = vmatpush.bf16.msra.mxu0 %v1207
    %1279 = vmatmul.bf16.gmra.mxu0 %v1069
    %v1280 = vpop.f32.mrf.mxu0
    %v1281 = vadd.f32 %v1107, %v1280
    %v1282 = vpop.f32.mrf.mxu0
    %1283 = vdwg.mxu0
    %1284 = vmatpush.bf16.msra.mxu0 %v1237
    %1285 = vmatpush.bf16.msra.mxu0 %v1235
    %1286 = vmatpush.bf16.msra.mxu0 %v1233
    %1287 = vmatpush.bf16.msra.mxu0 %v1231
    %1288 = vmatpush.bf16.msra.mxu0 %v1229
    %1289 = vmatpush.bf16.msra.mxu0 %v1227
    %1290 = vmatpush.bf16.msra.mxu0 %v1225
    %1291 = vmatpush.bf16.msra.mxu0 %v1223
    %1292 = vmatmul.bf16.gmra.mxu0 %v1070
    %v1293 = vpop.f32.mrf.mxu0
    %v1294 = vadd.f32 %v1281, %v1293
    %v1295 = vpop.f32.mrf.mxu0
    %1296 = vdwg.mxu0
    %1297 = vmatpush.bf16.msra.mxu0 %v1222
    %1298 = vmatpush.bf16.msra.mxu0 %v1220
    %1299 = vmatpush.bf16.msra.mxu0 %v1218
    %1300 = vmatpush.bf16.msra.mxu0 %v1216
    %1301 = vmatpush.bf16.msra.mxu0 %v1214
    %1302 = vmatpush.bf16.msra.mxu0 %v1212
    %1303 = vmatpush.bf16.msra.mxu0 %v1210
    %1304 = vmatpush.bf16.msra.mxu0 %v1208
    %1305 = vmatmul.bf16.gmra.mxu0 %v1069
    %v1306 = vpop.f32.mrf.mxu0
    %v1307 = vadd.f32 %v1108, %v1306
    %v1308 = vpop.f32.mrf.mxu0
    %1309 = vdwg.mxu0
    %1310 = vmatpush.bf16.msra.mxu0 %v1238
    %1311 = vmatpush.bf16.msra.mxu0 %v1236
    %1312 = vmatpush.bf16.msra.mxu0 %v1234
    %1313 = vmatpush.bf16.msra.mxu0 %v1232
    %1314 = vmatpush.bf16.msra.mxu0 %v1230
    %1315 = vmatpush.bf16.msra.mxu0 %v1228
    %1316 = vmatpush.bf16.msra.mxu0 %v1226
    %1317 = vmatpush.bf16.msra.mxu0 %v1224
    %1318 = vmatmul.bf16.gmra.mxu0 %v1070
    %v1319 = vpop.f32.mrf.mxu0
    %v1320 = vadd.f32 %v1307, %v1319
    %v1321 = vpop.f32.mrf.mxu0
    %1322 = vdwg.mxu0
    %v1323 = vmul.f32 %v1294, 0.3
    %v1324 = vmul.f32 %v1320, 0.3
    %v1327 = vrot.slane %v1324, 6
    %v1328 = vsel %vm262, %v1323, %v1327
    %v1330 = vadd.f32 %v798, %v1328
    %1331 = vst [vmem:[#allocation2] sm:$0xf] %v1330
    %v1332 = vld [vmem:[#allocation2] sm:$0xf]
    %1334 = vst [vmem:[#allocation1] ss:$4 sm:$0xff] %v1332
    %v1335 = vld.sshfl [vmem:[#allocation1] sm:$0xff pattern:$0x73625140]
    %v1336 = vld.sshfl [vmem:[#allocation1 + $0x8] sm:$0xff pattern:$0x73625140]
    %v1339 = vpack.c.bf16 %v1336, %v1335
    %v1340 = vunpack.c.l.bf16 %v1339
    %v1341 = vunpack.c.h.bf16 %v1339
    %v1342 = vmax.f32 %v1340, 0.0
    %v1343 = vmax.f32 %v1341, 0.0
    %v1344 = vpack.c.bf16 %v1342, %v1342
    %v1345 = vpack.c.bf16 %v1343, %v1343
    %s1346 = scalar_lea.vmem [#allocation9], 1024
    %v1347 = vld [vmem:[%s1346] sm:$0xff]
    %v1348 = vld [vmem:[%s1346 + $0x8] sm:$0xff]
    %v1349 = vld [vmem:[%s1346 + $0x10] sm:$0xff]
    %v1350 = vld [vmem:[%s1346 + $0x18] sm:$0xff]
    %v1351 = vld [vmem:[%s1346 + $0x20] sm:$0xff]
    %v1352 = vld [vmem:[%s1346 + $0x28] sm:$0xff]
    %v1353 = vld [vmem:[%s1346 + $0x30] sm:$0xff]
    %v1354 = vld [vmem:[%s1346 + $0x38] sm:$0xff]
    %v1355 = vld [vmem:[%s1346 + $0x40] sm:$0xff]
    %v1356 = vld [vmem:[%s1346 + $0x48] sm:$0xff]
    %v1357 = vld [vmem:[%s1346 + $0x50] sm:$0xff]
    %v1358 = vld [vmem:[%s1346 + $0x58] sm:$0xff]
    %v1359 = vld [vmem:[%s1346 + $0x60] sm:$0xff]
    %v1360 = vld [vmem:[%s1346 + $0x68] sm:$0xff]
    %v1361 = vld [vmem:[%s1346 + $0x70] sm:$0xff]
    %v1362 = vld [vmem:[%s1346 + $0x78] sm:$0xff]
    %v1363 = vld [vmem:[%s1346 + $0x80] sm:$0xff]
    %v1364 = vld [vmem:[%s1346 + $0x88] sm:$0xff]
    %v1365 = vld [vmem:[%s1346 + $0x90] sm:$0xff]
    %v1366 = vld [vmem:[%s1346 + $0x98] sm:$0xff]
    %v1367 = vld [vmem:[%s1346 + $0xa0] sm:$0xff]
    %v1368 = vld [vmem:[%s1346 + $0xa8] sm:$0xff]
    %v1369 = vld [vmem:[%s1346 + $0xb0] sm:$0xff]
    %v1370 = vld [vmem:[%s1346 + $0xb8] sm:$0xff]
    %v1371 = vld [vmem:[%s1346 + $0xc0] sm:$0xff]
    %v1372 = vld [vmem:[%s1346 + $0xc8] sm:$0xff]
    %v1373 = vld [vmem:[%s1346 + $0xd0] sm:$0xff]
    %v1374 = vld [vmem:[%s1346 + $0xd8] sm:$0xff]
    %v1375 = vld [vmem:[%s1346 + $0xe0] sm:$0xff]
    %v1376 = vld [vmem:[%s1346 + $0xe8] sm:$0xff]
    %v1377 = vld [vmem:[%s1346 + $0xf0] sm:$0xff]
    %v1378 = vld [vmem:[%s1346 + $0xf8] sm:$0xff]
    %s1379 = scalar_lea.vmem [#allocation11], 8
    %v1380 = vld [vmem:[%s1379] sm:$0x3]
    %v1382 = vperm.slane %v1380, 0
    %v1383 = vperm.slane %v1380, 1
    %v1418 = vunpack.c.l.b16 %v1347
    %v1419 = vunpack.c.h.b16 %v1347
    %v1420 = vunpack.c.l.b16 %v1348
    %v1421 = vunpack.c.h.b16 %v1348
    %v1422 = vunpack.c.l.b16 %v1349
    %v1423 = vunpack.c.h.b16 %v1349
    %v1424 = vunpack.c.l.b16 %v1350
    %v1425 = vunpack.c.h.b16 %v1350
    %v1426 = vunpack.c.l.b16 %v1351
    %v1427 = vunpack.c.h.b16 %v1351
    %v1428 = vunpack.c.l.b16 %v1352
    %v1429 = vunpack.c.h.b16 %v1352
    %v1430 = vunpack.c.l.b16 %v1353
    %v1431 = vunpack.c.h.b16 %v1353
    %v1432 = vunpack.c.l.b16 %v1354
    %v1433 = vunpack.c.h.b16 %v1354
    %v1434 = vunpack.c.l.b16 %v1355
    %v1435 = vunpack.c.h.b16 %v1355
    %v1436 = vunpack.c.l.b16 %v1356
    %v1437 = vunpack.c.h.b16 %v1356
    %v1438 = vunpack.c.l.b16 %v1357
    %v1439 = vunpack.c.h.b16 %v1357
    %v1440 = vunpack.c.l.b16 %v1358
    %v1441 = vunpack.c.h.b16 %v1358
    %v1442 = vunpack.c.l.b16 %v1359
    %v1443 = vunpack.c.h.b16 %v1359
    %v1444 = vunpack.c.l.b16 %v1360
    %v1445 = vunpack.c.h.b16 %v1360
    %v1446 = vunpack.c.l.b16 %v1361
    %v1447 = vunpack.c.h.b16 %v1361
    %v1448 = vunpack.c.l.b16 %v1362
    %v1449 = vunpack.c.h.b16 %v1362
    %v1450 = vunpack.c.l.b16 %v1363
    %v1451 = vunpack.c.h.b16 %v1363
    %v1452 = vunpack.c.l.b16 %v1364
    %v1453 = vunpack.c.h.b16 %v1364
    %v1454 = vunpack.c.l.b16 %v1365
    %v1455 = vunpack.c.h.b16 %v1365
    %v1456 = vunpack.c.l.b16 %v1366
    %v1457 = vunpack.c.h.b16 %v1366
    %v1458 = vunpack.c.l.b16 %v1367
    %v1459 = vunpack.c.h.b16 %v1367
    %v1460 = vunpack.c.l.b16 %v1368
    %v1461 = vunpack.c.h.b16 %v1368
    %v1462 = vunpack.c.l.b16 %v1369
    %v1463 = vunpack.c.h.b16 %v1369
    %v1464 = vunpack.c.l.b16 %v1370
    %v1465 = vunpack.c.h.b16 %v1370
    %v1466 = vunpack.c.l.b16 %v1371
    %v1467 = vunpack.c.h.b16 %v1371
    %v1468 = vunpack.c.l.b16 %v1372
    %v1469 = vunpack.c.h.b16 %v1372
    %v1470 = vunpack.c.l.b16 %v1373
    %v1471 = vunpack.c.h.b16 %v1373
    %v1472 = vunpack.c.l.b16 %v1374
    %v1473 = vunpack.c.h.b16 %v1374
    %v1474 = vunpack.c.l.b16 %v1375
    %v1475 = vunpack.c.h.b16 %v1375
    %v1476 = vunpack.c.l.b16 %v1376
    %v1477 = vunpack.c.h.b16 %v1376
    %v1478 = vunpack.c.l.b16 %v1377
    %v1479 = vunpack.c.h.b16 %v1377
    %v1480 = vunpack.c.l.b16 %v1378
    %v1481 = vunpack.c.h.b16 %v1378
    %v1482 = vpack.c.b16 %v1420, %v1418
    %v1483 = vpack.c.b16 %v1421, %v1419
    %v1484 = vpack.c.b16 %v1424, %v1422
    %v1485 = vpack.c.b16 %v1425, %v1423
    %v1486 = vpack.c.b16 %v1428, %v1426
    %v1487 = vpack.c.b16 %v1429, %v1427
    %v1488 = vpack.c.b16 %v1432, %v1430
    %v1489 = vpack.c.b16 %v1433, %v1431
    %v1490 = vpack.c.b16 %v1436, %v1434
    %v1491 = vpack.c.b16 %v1437, %v1435
    %v1492 = vpack.c.b16 %v1440, %v1438
    %v1493 = vpack.c.b16 %v1441, %v1439
    %v1494 = vpack.c.b16 %v1444, %v1442
    %v1495 = vpack.c.b16 %v1445, %v1443
    %v1496 = vpack.c.b16 %v1448, %v1446
    %v1497 = vpack.c.b16 %v1449, %v1447
    %v1498 = vpack.c.b16 %v1452, %v1450
    %v1499 = vpack.c.b16 %v1453, %v1451
    %v1500 = vpack.c.b16 %v1456, %v1454
    %v1501 = vpack.c.b16 %v1457, %v1455
    %v1502 = vpack.c.b16 %v1460, %v1458
    %v1503 = vpack.c.b16 %v1461, %v1459
    %v1504 = vpack.c.b16 %v1464, %v1462
    %v1505 = vpack.c.b16 %v1465, %v1463
    %v1506 = vpack.c.b16 %v1468, %v1466
    %v1507 = vpack.c.b16 %v1469, %v1467
    %v1508 = vpack.c.b16 %v1472, %v1470
    %v1509 = vpack.c.b16 %v1473, %v1471
    %v1510 = vpack.c.b16 %v1476, %v1474
    %v1511 = vpack.c.b16 %v1477, %v1475
    %v1512 = vpack.c.b16 %v1480, %v1478
    %v1513 = vpack.c.b16 %v1481, %v1479
    %1546 = vmatpush.bf16.msra.mxu0 %v1496
    %1547 = vmatpush.bf16.msra.mxu0 %v1494
    %1548 = vmatpush.bf16.msra.mxu0 %v1492
    %1549 = vmatpush.bf16.msra.mxu0 %v1490
    %1550 = vmatpush.bf16.msra.mxu0 %v1488
    %1551 = vmatpush.bf16.msra.mxu0 %v1486
    %1552 = vmatpush.bf16.msra.mxu0 %v1484
    %1553 = vmatpush.bf16.msra.mxu0 %v1482
    %1554 = vmatmul.bf16.gmra.mxu0 %v1344
    %v1555 = vpop.f32.mrf.mxu0
    %v1556 = vadd.f32 %v1382, %v1555
    %v1557 = vpop.f32.mrf.mxu0
    %1558 = vdwg.mxu0
    %1559 = vmatpush.bf16.msra.mxu0 %v1512
    %1560 = vmatpush.bf16.msra.mxu0 %v1510
    %1561 = vmatpush.bf16.msra.mxu0 %v1508
    %1562 = vmatpush.bf16.msra.mxu0 %v1506
    %1563 = vmatpush.bf16.msra.mxu0 %v1504
    %1564 = vmatpush.bf16.msra.mxu0 %v1502
    %1565 = vmatpush.bf16.msra.mxu0 %v1500
    %1566 = vmatpush.bf16.msra.mxu0 %v1498
    %1567 = vmatmul.bf16.gmra.mxu0 %v1345
    %v1568 = vpop.f32.mrf.mxu0
    %v1569 = vadd.f32 %v1556, %v1568
    %v1570 = vpop.f32.mrf.mxu0
    %1571 = vdwg.mxu0
    %1572 = vmatpush.bf16.msra.mxu0 %v1497
    %1573 = vmatpush.bf16.msra.mxu0 %v1495
    %1574 = vmatpush.bf16.msra.mxu0 %v1493
    %1575 = vmatpush.bf16.msra.mxu0 %v1491
    %1576 = vmatpush.bf16.msra.mxu0 %v1489
    %1577 = vmatpush.bf16.msra.mxu0 %v1487
    %1578 = vmatpush.bf16.msra.mxu0 %v1485
    %1579 = vmatpush.bf16.msra.mxu0 %v1483
    %1580 = vmatmul.bf16.gmra.mxu0 %v1344
    %v1581 = vpop.f32.mrf.mxu0
    %v1582 = vadd.f32 %v1383, %v1581
    %v1583 = vpop.f32.mrf.mxu0
    %1584 = vdwg.mxu0
    %1585 = vmatpush.bf16.msra.mxu0 %v1513
    %1586 = vmatpush.bf16.msra.mxu0 %v1511
    %1587 = vmatpush.bf16.msra.mxu0 %v1509
    %1588 = vmatpush.bf16.msra.mxu0 %v1507
    %1589 = vmatpush.bf16.msra.mxu0 %v1505
    %1590 = vmatpush.bf16.msra.mxu0 %v1503
    %1591 = vmatpush.bf16.msra.mxu0 %v1501
    %1592 = vmatpush.bf16.msra.mxu0 %v1499
    %1593 = vmatmul.bf16.gmra.mxu0 %v1345
    %v1594 = vpop.f32.mrf.mxu0
    %v1595 = vadd.f32 %v1582, %v1594
    %v1596 = vpop.f32.mrf.mxu0
    %1597 = vdwg.mxu0
    %v1598 = vpack.c.bf16 %v1595, %v1569
    %v1599 = vunpack.c.l.bf16 %v1598
    %v1600 = vunpack.c.h.bf16 %v1598
    %v1601 = vmax.f32 %v1599, 0.0
    %v1602 = vmax.f32 %v1600, 0.0
    %v1603 = vpack.c.bf16 %v1601, %v1601
    %v1604 = vpack.c.bf16 %v1602, %v1602
    %s1605 = scalar_lea.vmem [#allocation9], 1280
    %v1606 = vld [vmem:[%s1605] sm:$0xff]
    %v1607 = vld [vmem:[%s1605 + $0x8] sm:$0xff]
    %v1608 = vld [vmem:[%s1605 + $0x10] sm:$0xff]
    %v1609 = vld [vmem:[%s1605 + $0x18] sm:$0xff]
    %v1610 = vld [vmem:[%s1605 + $0x20] sm:$0xff]
    %v1611 = vld [vmem:[%s1605 + $0x28] sm:$0xff]
    %v1612 = vld [vmem:[%s1605 + $0x30] sm:$0xff]
    %v1613 = vld [vmem:[%s1605 + $0x38] sm:$0xff]
    %v1614 = vld [vmem:[%s1605 + $0x40] sm:$0xff]
    %v1615 = vld [vmem:[%s1605 + $0x48] sm:$0xff]
    %v1616 = vld [vmem:[%s1605 + $0x50] sm:$0xff]
    %v1617 = vld [vmem:[%s1605 + $0x58] sm:$0xff]
    %v1618 = vld [vmem:[%s1605 + $0x60] sm:$0xff]
    %v1619 = vld [vmem:[%s1605 + $0x68] sm:$0xff]
    %v1620 = vld [vmem:[%s1605 + $0x70] sm:$0xff]
    %v1621 = vld [vmem:[%s1605 + $0x78] sm:$0xff]
    %v1622 = vld [vmem:[%s1605 + $0x80] sm:$0xff]
    %v1623 = vld [vmem:[%s1605 + $0x88] sm:$0xff]
    %v1624 = vld [vmem:[%s1605 + $0x90] sm:$0xff]
    %v1625 = vld [vmem:[%s1605 + $0x98] sm:$0xff]
    %v1626 = vld [vmem:[%s1605 + $0xa0] sm:$0xff]
    %v1627 = vld [vmem:[%s1605 + $0xa8] sm:$0xff]
    %v1628 = vld [vmem:[%s1605 + $0xb0] sm:$0xff]
    %v1629 = vld [vmem:[%s1605 + $0xb8] sm:$0xff]
    %v1630 = vld [vmem:[%s1605 + $0xc0] sm:$0xff]
    %v1631 = vld [vmem:[%s1605 + $0xc8] sm:$0xff]
    %v1632 = vld [vmem:[%s1605 + $0xd0] sm:$0xff]
    %v1633 = vld [vmem:[%s1605 + $0xd8] sm:$0xff]
    %v1634 = vld [vmem:[%s1605 + $0xe0] sm:$0xff]
    %v1635 = vld [vmem:[%s1605 + $0xe8] sm:$0xff]
    %v1636 = vld [vmem:[%s1605 + $0xf0] sm:$0xff]
    %v1637 = vld [vmem:[%s1605 + $0xf8] sm:$0xff]
    %s1638 = scalar_lea.vmem [#allocation11], 10
    %v1639 = vld [vmem:[%s1638] sm:$0x3]
    %v1641 = vperm.slane %v1639, 0
    %v1642 = vperm.slane %v1639, 1
    %v1677 = vunpack.c.l.b16 %v1606
    %v1678 = vunpack.c.h.b16 %v1606
    %v1679 = vunpack.c.l.b16 %v1607
    %v1680 = vunpack.c.h.b16 %v1607
    %v1681 = vunpack.c.l.b16 %v1608
    %v1682 = vunpack.c.h.b16 %v1608
    %v1683 = vunpack.c.l.b16 %v1609
    %v1684 = vunpack.c.h.b16 %v1609
    %v1685 = vunpack.c.l.b16 %v1610
    %v1686 = vunpack.c.h.b16 %v1610
    %v1687 = vunpack.c.l.b16 %v1611
    %v1688 = vunpack.c.h.b16 %v1611
    %v1689 = vunpack.c.l.b16 %v1612
    %v1690 = vunpack.c.h.b16 %v1612
    %v1691 = vunpack.c.l.b16 %v1613
    %v1692 = vunpack.c.h.b16 %v1613
    %v1693 = vunpack.c.l.b16 %v1614
    %v1694 = vunpack.c.h.b16 %v1614
    %v1695 = vunpack.c.l.b16 %v1615
    %v1696 = vunpack.c.h.b16 %v1615
    %v1697 = vunpack.c.l.b16 %v1616
    %v1698 = vunpack.c.h.b16 %v1616
    %v1699 = vunpack.c.l.b16 %v1617
    %v1700 = vunpack.c.h.b16 %v1617
    %v1701 = vunpack.c.l.b16 %v1618
    %v1702 = vunpack.c.h.b16 %v1618
    %v1703 = vunpack.c.l.b16 %v1619
    %v1704 = vunpack.c.h.b16 %v1619
    %v1705 = vunpack.c.l.b16 %v1620
    %v1706 = vunpack.c.h.b16 %v1620
    %v1707 = vunpack.c.l.b16 %v1621
    %v1708 = vunpack.c.h.b16 %v1621
    %v1709 = vunpack.c.l.b16 %v1622
    %v1710 = vunpack.c.h.b16 %v1622
    %v1711 = vunpack.c.l.b16 %v1623
    %v1712 = vunpack.c.h.b16 %v1623
    %v1713 = vunpack.c.l.b16 %v1624
    %v1714 = vunpack.c.h.b16 %v1624
    %v1715 = vunpack.c.l.b16 %v1625
    %v1716 = vunpack.c.h.b16 %v1625
    %v1717 = vunpack.c.l.b16 %v1626
    %v1718 = vunpack.c.h.b16 %v1626
    %v1719 = vunpack.c.l.b16 %v1627
    %v1720 = vunpack.c.h.b16 %v1627
    %v1721 = vunpack.c.l.b16 %v1628
    %v1722 = vunpack.c.h.b16 %v1628
    %v1723 = vunpack.c.l.b16 %v1629
    %v1724 = vunpack.c.h.b16 %v1629
    %v1725 = vunpack.c.l.b16 %v1630
    %v1726 = vunpack.c.h.b16 %v1630
    %v1727 = vunpack.c.l.b16 %v1631
    %v1728 = vunpack.c.h.b16 %v1631
    %v1729 = vunpack.c.l.b16 %v1632
    %v1730 = vunpack.c.h.b16 %v1632
    %v1731 = vunpack.c.l.b16 %v1633
    %v1732 = vunpack.c.h.b16 %v1633
    %v1733 = vunpack.c.l.b16 %v1634
    %v1734 = vunpack.c.h.b16 %v1634
    %v1735 = vunpack.c.l.b16 %v1635
    %v1736 = vunpack.c.h.b16 %v1635
    %v1737 = vunpack.c.l.b16 %v1636
    %v1738 = vunpack.c.h.b16 %v1636
    %v1739 = vunpack.c.l.b16 %v1637
    %v1740 = vunpack.c.h.b16 %v1637
    %v1741 = vpack.c.b16 %v1679, %v1677
    %v1742 = vpack.c.b16 %v1680, %v1678
    %v1743 = vpack.c.b16 %v1683, %v1681
    %v1744 = vpack.c.b16 %v1684, %v1682
    %v1745 = vpack.c.b16 %v1687, %v1685
    %v1746 = vpack.c.b16 %v1688, %v1686
    %v1747 = vpack.c.b16 %v1691, %v1689
    %v1748 = vpack.c.b16 %v1692, %v1690
    %v1749 = vpack.c.b16 %v1695, %v1693
    %v1750 = vpack.c.b16 %v1696, %v1694
    %v1751 = vpack.c.b16 %v1699, %v1697
    %v1752 = vpack.c.b16 %v1700, %v1698
    %v1753 = vpack.c.b16 %v1703, %v1701
    %v1754 = vpack.c.b16 %v1704, %v1702
    %v1755 = vpack.c.b16 %v1707, %v1705
    %v1756 = vpack.c.b16 %v1708, %v1706
    %v1757 = vpack.c.b16 %v1711, %v1709
    %v1758 = vpack.c.b16 %v1712, %v1710
    %v1759 = vpack.c.b16 %v1715, %v1713
    %v1760 = vpack.c.b16 %v1716, %v1714
    %v1761 = vpack.c.b16 %v1719, %v1717
    %v1762 = vpack.c.b16 %v1720, %v1718
    %v1763 = vpack.c.b16 %v1723, %v1721
    %v1764 = vpack.c.b16 %v1724, %v1722
    %v1765 = vpack.c.b16 %v1727, %v1725
    %v1766 = vpack.c.b16 %v1728, %v1726
    %v1767 = vpack.c.b16 %v1731, %v1729
    %v1768 = vpack.c.b16 %v1732, %v1730
    %v1769 = vpack.c.b16 %v1735, %v1733
    %v1770 = vpack.c.b16 %v1736, %v1734
    %v1771 = vpack.c.b16 %v1739, %v1737
    %v1772 = vpack.c.b16 %v1740, %v1738
    %1805 = vmatpush.bf16.msra.mxu0 %v1755
    %1806 = vmatpush.bf16.msra.mxu0 %v1753
    %1807 = vmatpush.bf16.msra.mxu0 %v1751
    %1808 = vmatpush.bf16.msra.mxu0 %v1749
    %1809 = vmatpush.bf16.msra.mxu0 %v1747
    %1810 = vmatpush.bf16.msra.mxu0 %v1745
    %1811 = vmatpush.bf16.msra.mxu0 %v1743
    %1812 = vmatpush.bf16.msra.mxu0 %v1741
    %1813 = vmatmul.bf16.gmra.mxu0 %v1603
    %v1814 = vpop.f32.mrf.mxu0
    %v1815 = vadd.f32 %v1641, %v1814
    %v1816 = vpop.f32.mrf.mxu0
    %1817 = vdwg.mxu0
    %1818 = vmatpush.bf16.msra.mxu0 %v1771
    %1819 = vmatpush.bf16.msra.mxu0 %v1769
    %1820 = vmatpush.bf16.msra.mxu0 %v1767
    %1821 = vmatpush.bf16.msra.mxu0 %v1765
    %1822 = vmatpush.bf16.msra.mxu0 %v1763
    %1823 = vmatpush.bf16.msra.mxu0 %v1761
    %1824 = vmatpush.bf16.msra.mxu0 %v1759
    %1825 = vmatpush.bf16.msra.mxu0 %v1757
    %1826 = vmatmul.bf16.gmra.mxu0 %v1604
    %v1827 = vpop.f32.mrf.mxu0
    %v1828 = vadd.f32 %v1815, %v1827
    %v1829 = vpop.f32.mrf.mxu0
    %1830 = vdwg.mxu0
    %1831 = vmatpush.bf16.msra.mxu0 %v1756
    %1832 = vmatpush.bf16.msra.mxu0 %v1754
    %1833 = vmatpush.bf16.msra.mxu0 %v1752
    %1834 = vmatpush.bf16.msra.mxu0 %v1750
    %1835 = vmatpush.bf16.msra.mxu0 %v1748
    %1836 = vmatpush.bf16.msra.mxu0 %v1746
    %1837 = vmatpush.bf16.msra.mxu0 %v1744
    %1838 = vmatpush.bf16.msra.mxu0 %v1742
    %1839 = vmatmul.bf16.gmra.mxu0 %v1603
    %v1840 = vpop.f32.mrf.mxu0
    %v1841 = vadd.f32 %v1642, %v1840
    %v1842 = vpop.f32.mrf.mxu0
    %1843 = vdwg.mxu0
    %1844 = vmatpush.bf16.msra.mxu0 %v1772
    %1845 = vmatpush.bf16.msra.mxu0 %v1770
    %1846 = vmatpush.bf16.msra.mxu0 %v1768
    %1847 = vmatpush.bf16.msra.mxu0 %v1766
    %1848 = vmatpush.bf16.msra.mxu0 %v1764
    %1849 = vmatpush.bf16.msra.mxu0 %v1762
    %1850 = vmatpush.bf16.msra.mxu0 %v1760
    %1851 = vmatpush.bf16.msra.mxu0 %v1758
    %1852 = vmatmul.bf16.gmra.mxu0 %v1604
    %v1853 = vpop.f32.mrf.mxu0
    %v1854 = vadd.f32 %v1841, %v1853
    %v1855 = vpop.f32.mrf.mxu0
    %1856 = vdwg.mxu0
    %v1857 = vmul.f32 %v1828, 0.3
    %v1858 = vmul.f32 %v1854, 0.3
    %v1861 = vrot.slane %v1858, 6
    %v1862 = vsel %vm262, %v1857, %v1861
    %v1864 = vadd.f32 %v1332, %v1862
    %1865 = vst [vmem:[#allocation2] sm:$0xf] %v1864
    %v1866 = vld [vmem:[#allocation2] sm:$0xf]
    %1868 = vst [vmem:[#allocation1] ss:$4 sm:$0xff] %v1866
    %v1869 = vld.sshfl [vmem:[#allocation1] sm:$0xff pattern:$0x73625140]
    %v1870 = vld.sshfl [vmem:[#allocation1 + $0x8] sm:$0xff pattern:$0x73625140]
    %v1873 = vpack.c.bf16 %v1870, %v1869
    %v1874 = vunpack.c.l.bf16 %v1873
    %v1875 = vunpack.c.h.bf16 %v1873
    %v1876 = vmax.f32 %v1874, 0.0
    %v1877 = vmax.f32 %v1875, 0.0
    %v1878 = vpack.c.bf16 %v1876, %v1876
    %v1879 = vpack.c.bf16 %v1877, %v1877
    %s1880 = scalar_lea.vmem [#allocation9], 1536
    %v1881 = vld [vmem:[%s1880] sm:$0xff]
    %v1882 = vld [vmem:[%s1880 + $0x8] sm:$0xff]
    %v1883 = vld [vmem:[%s1880 + $0x10] sm:$0xff]
    %v1884 = vld [vmem:[%s1880 + $0x18] sm:$0xff]
    %v1885 = vld [vmem:[%s1880 + $0x20] sm:$0xff]
    %v1886 = vld [vmem:[%s1880 + $0x28] sm:$0xff]
    %v1887 = vld [vmem:[%s1880 + $0x30] sm:$0xff]
    %v1888 = vld [vmem:[%s1880 + $0x38] sm:$0xff]
    %v1889 = vld [vmem:[%s1880 + $0x40] sm:$0xff]
    %v1890 = vld [vmem:[%s1880 + $0x48] sm:$0xff]
    %v1891 = vld [vmem:[%s1880 + $0x50] sm:$0xff]
    %v1892 = vld [vmem:[%s1880 + $0x58] sm:$0xff]
    %v1893 = vld [vmem:[%s1880 + $0x60] sm:$0xff]
    %v1894 = vld [vmem:[%s1880 + $0x68] sm:$0xff]
    %v1895 = vld [vmem:[%s1880 + $0x70] sm:$0xff]
    %v1896 = vld [vmem:[%s1880 + $0x78] sm:$0xff]
    %v1897 = vld [vmem:[%s1880 + $0x80] sm:$0xff]
    %v1898 = vld [vmem:[%s1880 + $0x88] sm:$0xff]
    %v1899 = vld [vmem:[%s1880 + $0x90] sm:$0xff]
    %v1900 = vld [vmem:[%s1880 + $0x98] sm:$0xff]
    %v1901 = vld [vmem:[%s1880 + $0xa0] sm:$0xff]
    %v1902 = vld [vmem:[%s1880 + $0xa8] sm:$0xff]
    %v1903 = vld [vmem:[%s1880 + $0xb0] sm:$0xff]
    %v1904 = vld [vmem:[%s1880 + $0xb8] sm:$0xff]
    %v1905 = vld [vmem:[%s1880 + $0xc0] sm:$0xff]
    %v1906 = vld [vmem:[%s1880 + $0xc8] sm:$0xff]
    %v1907 = vld [vmem:[%s1880 + $0xd0] sm:$0xff]
    %v1908 = vld [vmem:[%s1880 + $0xd8] sm:$0xff]
    %v1909 = vld [vmem:[%s1880 + $0xe0] sm:$0xff]
    %v1910 = vld [vmem:[%s1880 + $0xe8] sm:$0xff]
    %v1911 = vld [vmem:[%s1880 + $0xf0] sm:$0xff]
    %v1912 = vld [vmem:[%s1880 + $0xf8] sm:$0xff]
    %s1913 = scalar_lea.vmem [#allocation11], 12
    %v1914 = vld [vmem:[%s1913] sm:$0x3]
    %v1916 = vperm.slane %v1914, 0
    %v1917 = vperm.slane %v1914, 1
    %v1952 = vunpack.c.l.b16 %v1881
    %v1953 = vunpack.c.h.b16 %v1881
    %v1954 = vunpack.c.l.b16 %v1882
    %v1955 = vunpack.c.h.b16 %v1882
    %v1956 = vunpack.c.l.b16 %v1883
    %v1957 = vunpack.c.h.b16 %v1883
    %v1958 = vunpack.c.l.b16 %v1884
    %v1959 = vunpack.c.h.b16 %v1884
    %v1960 = vunpack.c.l.b16 %v1885
    %v1961 = vunpack.c.h.b16 %v1885
    %v1962 = vunpack.c.l.b16 %v1886
    %v1963 = vunpack.c.h.b16 %v1886
    %v1964 = vunpack.c.l.b16 %v1887
    %v1965 = vunpack.c.h.b16 %v1887
    %v1966 = vunpack.c.l.b16 %v1888
    %v1967 = vunpack.c.h.b16 %v1888
    %v1968 = vunpack.c.l.b16 %v1889
    %v1969 = vunpack.c.h.b16 %v1889
    %v1970 = vunpack.c.l.b16 %v1890
    %v1971 = vunpack.c.h.b16 %v1890
    %v1972 = vunpack.c.l.b16 %v1891
    %v1973 = vunpack.c.h.b16 %v1891
    %v1974 = vunpack.c.l.b16 %v1892
    %v1975 = vunpack.c.h.b16 %v1892
    %v1976 = vunpack.c.l.b16 %v1893
    %v1977 = vunpack.c.h.b16 %v1893
    %v1978 = vunpack.c.l.b16 %v1894
    %v1979 = vunpack.c.h.b16 %v1894
    %v1980 = vunpack.c.l.b16 %v1895
    %v1981 = vunpack.c.h.b16 %v1895
    %v1982 = vunpack.c.l.b16 %v1896
    %v1983 = vunpack.c.h.b16 %v1896
    %v1984 = vunpack.c.l.b16 %v1897
    %v1985 = vunpack.c.h.b16 %v1897
    %v1986 = vunpack.c.l.b16 %v1898
    %v1987 = vunpack.c.h.b16 %v1898
    %v1988 = vunpack.c.l.b16 %v1899
    %v1989 = vunpack.c.h.b16 %v1899
    %v1990 = vunpack.c.l.b16 %v1900
    %v1991 = vunpack.c.h.b16 %v1900
    %v1992 = vunpack.c.l.b16 %v1901
    %v1993 = vunpack.c.h.b16 %v1901
    %v1994 = vunpack.c.l.b16 %v1902
    %v1995 = vunpack.c.h.b16 %v1902
    %v1996 = vunpack.c.l.b16 %v1903
    %v1997 = vunpack.c.h.b16 %v1903
    %v1998 = vunpack.c.l.b16 %v1904
    %v1999 = vunpack.c.h.b16 %v1904
    %v2000 = vunpack.c.l.b16 %v1905
    %v2001 = vunpack.c.h.b16 %v1905
    %v2002 = vunpack.c.l.b16 %v1906
    %v2003 = vunpack.c.h.b16 %v1906
    %v2004 = vunpack.c.l.b16 %v1907
    %v2005 = vunpack.c.h.b16 %v1907
    %v2006 = vunpack.c.l.b16 %v1908
    %v2007 = vunpack.c.h.b16 %v1908
    %v2008 = vunpack.c.l.b16 %v1909
    %v2009 = vunpack.c.h.b16 %v1909
    %v2010 = vunpack.c.l.b16 %v1910
    %v2011 = vunpack.c.h.b16 %v1910
    %v2012 = vunpack.c.l.b16 %v1911
    %v2013 = vunpack.c.h.b16 %v1911
    %v2014 = vunpack.c.l.b16 %v1912
    %v2015 = vunpack.c.h.b16 %v1912
    %v2016 = vpack.c.b16 %v1954, %v1952
    %v2017 = vpack.c.b16 %v1955, %v1953
    %v2018 = vpack.c.b16 %v1958, %v1956
    %v2019 = vpack.c.b16 %v1959, %v1957
    %v2020 = vpack.c.b16 %v1962, %v1960
    %v2021 = vpack.c.b16 %v1963, %v1961
    %v2022 = vpack.c.b16 %v1966, %v1964
    %v2023 = vpack.c.b16 %v1967, %v1965
    %v2024 = vpack.c.b16 %v1970, %v1968
    %v2025 = vpack.c.b16 %v1971, %v1969
    %v2026 = vpack.c.b16 %v1974, %v1972
    %v2027 = vpack.c.b16 %v1975, %v1973
    %v2028 = vpack.c.b16 %v1978, %v1976
    %v2029 = vpack.c.b16 %v1979, %v1977
    %v2030 = vpack.c.b16 %v1982, %v1980
    %v2031 = vpack.c.b16 %v1983, %v1981
    %v2032 = vpack.c.b16 %v1986, %v1984
    %v2033 = vpack.c.b16 %v1987, %v1985
    %v2034 = vpack.c.b16 %v1990, %v1988
    %v2035 = vpack.c.b16 %v1991, %v1989
    %v2036 = vpack.c.b16 %v1994, %v1992
    %v2037 = vpack.c.b16 %v1995, %v1993
    %v2038 = vpack.c.b16 %v1998, %v1996
    %v2039 = vpack.c.b16 %v1999, %v1997
    %v2040 = vpack.c.b16 %v2002, %v2000
    %v2041 = vpack.c.b16 %v2003, %v2001
    %v2042 = vpack.c.b16 %v2006, %v2004
    %v2043 = vpack.c.b16 %v2007, %v2005
    %v2044 = vpack.c.b16 %v2010, %v2008
    %v2045 = vpack.c.b16 %v2011, %v2009
    %v2046 = vpack.c.b16 %v2014, %v2012
    %v2047 = vpack.c.b16 %v2015, %v2013
    %2080 = vmatpush.bf16.msra.mxu0 %v2030
    %2081 = vmatpush.bf16.msra.mxu0 %v2028
    %2082 = vmatpush.bf16.msra.mxu0 %v2026
    %2083 = vmatpush.bf16.msra.mxu0 %v2024
    %2084 = vmatpush.bf16.msra.mxu0 %v2022
    %2085 = vmatpush.bf16.msra.mxu0 %v2020
    %2086 = vmatpush.bf16.msra.mxu0 %v2018
    %2087 = vmatpush.bf16.msra.mxu0 %v2016
    %2088 = vmatmul.bf16.gmra.mxu0 %v1878
    %v2089 = vpop.f32.mrf.mxu0
    %v2090 = vadd.f32 %v1916, %v2089
    %v2091 = vpop.f32.mrf.mxu0
    %2092 = vdwg.mxu0
    %2093 = vmatpush.bf16.msra.mxu0 %v2046
    %2094 = vmatpush.bf16.msra.mxu0 %v2044
    %2095 = vmatpush.bf16.msra.mxu0 %v2042
    %2096 = vmatpush.bf16.msra.mxu0 %v2040
    %2097 = vmatpush.bf16.msra.mxu0 %v2038
    %2098 = vmatpush.bf16.msra.mxu0 %v2036
    %2099 = vmatpush.bf16.msra.mxu0 %v2034
    %2100 = vmatpush.bf16.msra.mxu0 %v2032
    %2101 = vmatmul.bf16.gmra.mxu0 %v1879
    %v2102 = vpop.f32.mrf.mxu0
    %v2103 = vadd.f32 %v2090, %v2102
    %v2104 = vpop.f32.mrf.mxu0
    %2105 = vdwg.mxu0
    %2106 = vmatpush.bf16.msra.mxu0 %v2031
    %2107 = vmatpush.bf16.msra.mxu0 %v2029
    %2108 = vmatpush.bf16.msra.mxu0 %v2027
    %2109 = vmatpush.bf16.msra.mxu0 %v2025
    %2110 = vmatpush.bf16.msra.mxu0 %v2023
    %2111 = vmatpush.bf16.msra.mxu0 %v2021
    %2112 = vmatpush.bf16.msra.mxu0 %v2019
    %2113 = vmatpush.bf16.msra.mxu0 %v2017
    %2114 = vmatmul.bf16.gmra.mxu0 %v1878
    %v2115 = vpop.f32.mrf.mxu0
    %v2116 = vadd.f32 %v1917, %v2115
    %v2117 = vpop.f32.mrf.mxu0
    %2118 = vdwg.mxu0
    %2119 = vmatpush.bf16.msra.mxu0 %v2047
    %2120 = vmatpush.bf16.msra.mxu0 %v2045
    %2121 = vmatpush.bf16.msra.mxu0 %v2043
    %2122 = vmatpush.bf16.msra.mxu0 %v2041
    %2123 = vmatpush.bf16.msra.mxu0 %v2039
    %2124 = vmatpush.bf16.msra.mxu0 %v2037
    %2125 = vmatpush.bf16.msra.mxu0 %v2035
    %2126 = vmatpush.bf16.msra.mxu0 %v2033
    %2127 = vmatmul.bf16.gmra.mxu0 %v1879
    %v2128 = vpop.f32.mrf.mxu0
    %v2129 = vadd.f32 %v2116, %v2128
    %v2130 = vpop.f32.mrf.mxu0
    %2131 = vdwg.mxu0
    %v2132 = vpack.c.bf16 %v2129, %v2103
    %v2133 = vunpack.c.l.bf16 %v2132
    %v2134 = vunpack.c.h.bf16 %v2132
    %v2135 = vmax.f32 %v2133, 0.0
    %v2136 = vmax.f32 %v2134, 0.0
    %v2137 = vpack.c.bf16 %v2135, %v2135
    %v2138 = vpack.c.bf16 %v2136, %v2136
    %s2139 = scalar_lea.vmem [#allocation9], 1792
    %v2140 = vld [vmem:[%s2139] sm:$0xff]
    %v2141 = vld [vmem:[%s2139 + $0x8] sm:$0xff]
    %v2142 = vld [vmem:[%s2139 + $0x10] sm:$0xff]
    %v2143 = vld [vmem:[%s2139 + $0x18] sm:$0xff]
    %v2144 = vld [vmem:[%s2139 + $0x20] sm:$0xff]
    %v2145 = vld [vmem:[%s2139 + $0x28] sm:$0xff]
    %v2146 = vld [vmem:[%s2139 + $0x30] sm:$0xff]
    %v2147 = vld [vmem:[%s2139 + $0x38] sm:$0xff]
    %v2148 = vld [vmem:[%s2139 + $0x40] sm:$0xff]
    %v2149 = vld [vmem:[%s2139 + $0x48] sm:$0xff]
    %v2150 = vld [vmem:[%s2139 + $0x50] sm:$0xff]
    %v2151 = vld [vmem:[%s2139 + $0x58] sm:$0xff]
    %v2152 = vld [vmem:[%s2139 + $0x60] sm:$0xff]
    %v2153 = vld [vmem:[%s2139 + $0x68] sm:$0xff]
    %v2154 = vld [vmem:[%s2139 + $0x70] sm:$0xff]
    %v2155 = vld [vmem:[%s2139 + $0x78] sm:$0xff]
    %v2156 = vld [vmem:[%s2139 + $0x80] sm:$0xff]
    %v2157 = vld [vmem:[%s2139 + $0x88] sm:$0xff]
    %v2158 = vld [vmem:[%s2139 + $0x90] sm:$0xff]
    %v2159 = vld [vmem:[%s2139 + $0x98] sm:$0xff]
    %v2160 = vld [vmem:[%s2139 + $0xa0] sm:$0xff]
    %v2161 = vld [vmem:[%s2139 + $0xa8] sm:$0xff]
    %v2162 = vld [vmem:[%s2139 + $0xb0] sm:$0xff]
    %v2163 = vld [vmem:[%s2139 + $0xb8] sm:$0xff]
    %v2164 = vld [vmem:[%s2139 + $0xc0] sm:$0xff]
    %v2165 = vld [vmem:[%s2139 + $0xc8] sm:$0xff]
    %v2166 = vld [vmem:[%s2139 + $0xd0] sm:$0xff]
    %v2167 = vld [vmem:[%s2139 + $0xd8] sm:$0xff]
    %v2168 = vld [vmem:[%s2139 + $0xe0] sm:$0xff]
    %v2169 = vld [vmem:[%s2139 + $0xe8] sm:$0xff]
    %v2170 = vld [vmem:[%s2139 + $0xf0] sm:$0xff]
    %v2171 = vld [vmem:[%s2139 + $0xf8] sm:$0xff]
    %s2172 = scalar_lea.vmem [#allocation11], 14
    %v2173 = vld [vmem:[%s2172] sm:$0x3]
    %v2175 = vperm.slane %v2173, 0
    %v2176 = vperm.slane %v2173, 1
    %v2211 = vunpack.c.l.b16 %v2140
    %v2212 = vunpack.c.h.b16 %v2140
    %v2213 = vunpack.c.l.b16 %v2141
    %v2214 = vunpack.c.h.b16 %v2141
    %v2215 = vunpack.c.l.b16 %v2142
    %v2216 = vunpack.c.h.b16 %v2142
    %v2217 = vunpack.c.l.b16 %v2143
    %v2218 = vunpack.c.h.b16 %v2143
    %v2219 = vunpack.c.l.b16 %v2144
    %v2220 = vunpack.c.h.b16 %v2144
    %v2221 = vunpack.c.l.b16 %v2145
    %v2222 = vunpack.c.h.b16 %v2145
    %v2223 = vunpack.c.l.b16 %v2146
    %v2224 = vunpack.c.h.b16 %v2146
    %v2225 = vunpack.c.l.b16 %v2147
    %v2226 = vunpack.c.h.b16 %v2147
    %v2227 = vunpack.c.l.b16 %v2148
    %v2228 = vunpack.c.h.b16 %v2148
    %v2229 = vunpack.c.l.b16 %v2149
    %v2230 = vunpack.c.h.b16 %v2149
    %v2231 = vunpack.c.l.b16 %v2150
    %v2232 = vunpack.c.h.b16 %v2150
    %v2233 = vunpack.c.l.b16 %v2151
    %v2234 = vunpack.c.h.b16 %v2151
    %v2235 = vunpack.c.l.b16 %v2152
    %v2236 = vunpack.c.h.b16 %v2152
    %v2237 = vunpack.c.l.b16 %v2153
    %v2238 = vunpack.c.h.b16 %v2153
    %v2239 = vunpack.c.l.b16 %v2154
    %v2240 = vunpack.c.h.b16 %v2154
    %v2241 = vunpack.c.l.b16 %v2155
    %v2242 = vunpack.c.h.b16 %v2155
    %v2243 = vunpack.c.l.b16 %v2156
    %v2244 = vunpack.c.h.b16 %v2156
    %v2245 = vunpack.c.l.b16 %v2157
    %v2246 = vunpack.c.h.b16 %v2157
    %v2247 = vunpack.c.l.b16 %v2158
    %v2248 = vunpack.c.h.b16 %v2158
    %v2249 = vunpack.c.l.b16 %v2159
    %v2250 = vunpack.c.h.b16 %v2159
    %v2251 = vunpack.c.l.b16 %v2160
    %v2252 = vunpack.c.h.b16 %v2160
    %v2253 = vunpack.c.l.b16 %v2161
    %v2254 = vunpack.c.h.b16 %v2161
    %v2255 = vunpack.c.l.b16 %v2162
    %v2256 = vunpack.c.h.b16 %v2162
    %v2257 = vunpack.c.l.b16 %v2163
    %v2258 = vunpack.c.h.b16 %v2163
    %v2259 = vunpack.c.l.b16 %v2164
    %v2260 = vunpack.c.h.b16 %v2164
    %v2261 = vunpack.c.l.b16 %v2165
    %v2262 = vunpack.c.h.b16 %v2165
    %v2263 = vunpack.c.l.b16 %v2166
    %v2264 = vunpack.c.h.b16 %v2166
    %v2265 = vunpack.c.l.b16 %v2167
    %v2266 = vunpack.c.h.b16 %v2167
    %v2267 = vunpack.c.l.b16 %v2168
    %v2268 = vunpack.c.h.b16 %v2168
    %v2269 = vunpack.c.l.b16 %v2169
    %v2270 = vunpack.c.h.b16 %v2169
    %v2271 = vunpack.c.l.b16 %v2170
    %v2272 = vunpack.c.h.b16 %v2170
    %v2273 = vunpack.c.l.b16 %v2171
    %v2274 = vunpack.c.h.b16 %v2171
    %v2275 = vpack.c.b16 %v2213, %v2211
    %v2276 = vpack.c.b16 %v2214, %v2212
    %v2277 = vpack.c.b16 %v2217, %v2215
    %v2278 = vpack.c.b16 %v2218, %v2216
    %v2279 = vpack.c.b16 %v2221, %v2219
    %v2280 = vpack.c.b16 %v2222, %v2220
    %v2281 = vpack.c.b16 %v2225, %v2223
    %v2282 = vpack.c.b16 %v2226, %v2224
    %v2283 = vpack.c.b16 %v2229, %v2227
    %v2284 = vpack.c.b16 %v2230, %v2228
    %v2285 = vpack.c.b16 %v2233, %v2231
    %v2286 = vpack.c.b16 %v2234, %v2232
    %v2287 = vpack.c.b16 %v2237, %v2235
    %v2288 = vpack.c.b16 %v2238, %v2236
    %v2289 = vpack.c.b16 %v2241, %v2239
    %v2290 = vpack.c.b16 %v2242, %v2240
    %v2291 = vpack.c.b16 %v2245, %v2243
    %v2292 = vpack.c.b16 %v2246, %v2244
    %v2293 = vpack.c.b16 %v2249, %v2247
    %v2294 = vpack.c.b16 %v2250, %v2248
    %v2295 = vpack.c.b16 %v2253, %v2251
    %v2296 = vpack.c.b16 %v2254, %v2252
    %v2297 = vpack.c.b16 %v2257, %v2255
    %v2298 = vpack.c.b16 %v2258, %v2256
    %v2299 = vpack.c.b16 %v2261, %v2259
    %v2300 = vpack.c.b16 %v2262, %v2260
    %v2301 = vpack.c.b16 %v2265, %v2263
    %v2302 = vpack.c.b16 %v2266, %v2264
    %v2303 = vpack.c.b16 %v2269, %v2267
    %v2304 = vpack.c.b16 %v2270, %v2268
    %v2305 = vpack.c.b16 %v2273, %v2271
    %v2306 = vpack.c.b16 %v2274, %v2272
    %2339 = vmatpush.bf16.msra.mxu0 %v2289
    %2340 = vmatpush.bf16.msra.mxu0 %v2287
    %2341 = vmatpush.bf16.msra.mxu0 %v2285
    %2342 = vmatpush.bf16.msra.mxu0 %v2283
    %2343 = vmatpush.bf16.msra.mxu0 %v2281
    %2344 = vmatpush.bf16.msra.mxu0 %v2279
    %2345 = vmatpush.bf16.msra.mxu0 %v2277
    %2346 = vmatpush.bf16.msra.mxu0 %v2275
    %2347 = vmatmul.bf16.gmra.mxu0 %v2137
    %v2348 = vpop.f32.mrf.mxu0
    %v2349 = vadd.f32 %v2175, %v2348
    %v2350 = vpop.f32.mrf.mxu0
    %2351 = vdwg.mxu0
    %2352 = vmatpush.bf16.msra.mxu0 %v2305
    %2353 = vmatpush.bf16.msra.mxu0 %v2303
    %2354 = vmatpush.bf16.msra.mxu0 %v2301
    %2355 = vmatpush.bf16.msra.mxu0 %v2299
    %2356 = vmatpush.bf16.msra.mxu0 %v2297
    %2357 = vmatpush.bf16.msra.mxu0 %v2295
    %2358 = vmatpush.bf16.msra.mxu0 %v2293
    %2359 = vmatpush.bf16.msra.mxu0 %v2291
    %2360 = vmatmul.bf16.gmra.mxu0 %v2138
    %v2361 = vpop.f32.mrf.mxu0
    %v2362 = vadd.f32 %v2349, %v2361
    %v2363 = vpop.f32.mrf.mxu0
    %2364 = vdwg.mxu0
    %2365 = vmatpush.bf16.msra.mxu0 %v2290
    %2366 = vmatpush.bf16.msra.mxu0 %v2288
    %2367 = vmatpush.bf16.msra.mxu0 %v2286
    %2368 = vmatpush.bf16.msra.mxu0 %v2284
    %2369 = vmatpush.bf16.msra.mxu0 %v2282
    %2370 = vmatpush.bf16.msra.mxu0 %v2280
    %2371 = vmatpush.bf16.msra.mxu0 %v2278
    %2372 = vmatpush.bf16.msra.mxu0 %v2276
    %2373 = vmatmul.bf16.gmra.mxu0 %v2137
    %v2374 = vpop.f32.mrf.mxu0
    %v2375 = vadd.f32 %v2176, %v2374
    %v2376 = vpop.f32.mrf.mxu0
    %2377 = vdwg.mxu0
    %2378 = vmatpush.bf16.msra.mxu0 %v2306
    %2379 = vmatpush.bf16.msra.mxu0 %v2304
    %2380 = vmatpush.bf16.msra.mxu0 %v2302
    %2381 = vmatpush.bf16.msra.mxu0 %v2300
    %2382 = vmatpush.bf16.msra.mxu0 %v2298
    %2383 = vmatpush.bf16.msra.mxu0 %v2296
    %2384 = vmatpush.bf16.msra.mxu0 %v2294
    %2385 = vmatpush.bf16.msra.mxu0 %v2292
    %2386 = vmatmul.bf16.gmra.mxu0 %v2138
    %v2387 = vpop.f32.mrf.mxu0
    %v2388 = vadd.f32 %v2375, %v2387
    %v2389 = vpop.f32.mrf.mxu0
    %2390 = vdwg.mxu0
    %v2391 = vmul.f32 %v2362, 0.3
    %v2392 = vmul.f32 %v2388, 0.3
    %v2395 = vrot.slane %v2392, 6
    %v2396 = vsel %vm262, %v2391, %v2395
    %v2398 = vadd.f32 %v1866, %v2396
    %2399 = vst [vmem:[#allocation2] sm:$0xf] %v2398
    %v2400 = vld [vmem:[#allocation2] sm:$0xf]
    %2402 = vst [vmem:[#allocation1] ss:$4 sm:$0xff] %v2400
    %v2403 = vld.sshfl [vmem:[#allocation1] sm:$0xff pattern:$0x73625140]
    %v2404 = vld.sshfl [vmem:[#allocation1 + $0x8] sm:$0xff pattern:$0x73625140]
    %v2407 = vpack.c.bf16 %v2404, %v2403
    %v2408 = vunpack.c.l.bf16 %v2407
    %v2409 = vunpack.c.h.bf16 %v2407
    %v2410 = vmax.f32 %v2408, 0.0
    %v2411 = vmax.f32 %v2409, 0.0
    %v2412 = vpack.c.bf16 %v2410, %v2410
    %v2413 = vpack.c.bf16 %v2411, %v2411
    %s2414 = scalar_lea.vmem [#allocation9], 2048
    %v2415 = vld [vmem:[%s2414] sm:$0xff]
    %v2416 = vld [vmem:[%s2414 + $0x8] sm:$0xff]
    %v2417 = vld [vmem:[%s2414 + $0x10] sm:$0xff]
    %v2418 = vld [vmem:[%s2414 + $0x18] sm:$0xff]
    %v2419 = vld [vmem:[%s2414 + $0x20] sm:$0xff]
    %v2420 = vld [vmem:[%s2414 + $0x28] sm:$0xff]
    %v2421 = vld [vmem:[%s2414 + $0x30] sm:$0xff]
    %v2422 = vld [vmem:[%s2414 + $0x38] sm:$0xff]
    %v2423 = vld [vmem:[%s2414 + $0x40] sm:$0xff]
    %v2424 = vld [vmem:[%s2414 + $0x48] sm:$0xff]
    %v2425 = vld [vmem:[%s2414 + $0x50] sm:$0xff]
    %v2426 = vld [vmem:[%s2414 + $0x58] sm:$0xff]
    %v2427 = vld [vmem:[%s2414 + $0x60] sm:$0xff]
    %v2428 = vld [vmem:[%s2414 + $0x68] sm:$0xff]
    %v2429 = vld [vmem:[%s2414 + $0x70] sm:$0xff]
    %v2430 = vld [vmem:[%s2414 + $0x78] sm:$0xff]
    %v2431 = vld [vmem:[%s2414 + $0x80] sm:$0xff]
    %v2432 = vld [vmem:[%s2414 + $0x88] sm:$0xff]
    %v2433 = vld [vmem:[%s2414 + $0x90] sm:$0xff]
    %v2434 = vld [vmem:[%s2414 + $0x98] sm:$0xff]
    %v2435 = vld [vmem:[%s2414 + $0xa0] sm:$0xff]
    %v2436 = vld [vmem:[%s2414 + $0xa8] sm:$0xff]
    %v2437 = vld [vmem:[%s2414 + $0xb0] sm:$0xff]
    %v2438 = vld [vmem:[%s2414 + $0xb8] sm:$0xff]
    %v2439 = vld [vmem:[%s2414 + $0xc0] sm:$0xff]
    %v2440 = vld [vmem:[%s2414 + $0xc8] sm:$0xff]
    %v2441 = vld [vmem:[%s2414 + $0xd0] sm:$0xff]
    %v2442 = vld [vmem:[%s2414 + $0xd8] sm:$0xff]
    %v2443 = vld [vmem:[%s2414 + $0xe0] sm:$0xff]
    %v2444 = vld [vmem:[%s2414 + $0xe8] sm:$0xff]
    %v2445 = vld [vmem:[%s2414 + $0xf0] sm:$0xff]
    %v2446 = vld [vmem:[%s2414 + $0xf8] sm:$0xff]
    %s2447 = scalar_lea.vmem [#allocation11], 16
    %v2448 = vld [vmem:[%s2447] sm:$0x3]
    %v2450 = vperm.slane %v2448, 0
    %v2451 = vperm.slane %v2448, 1
    %v2486 = vunpack.c.l.b16 %v2415
    %v2487 = vunpack.c.h.b16 %v2415
    %v2488 = vunpack.c.l.b16 %v2416
    %v2489 = vunpack.c.h.b16 %v2416
    %v2490 = vunpack.c.l.b16 %v2417
    %v2491 = vunpack.c.h.b16 %v2417
    %v2492 = vunpack.c.l.b16 %v2418
    %v2493 = vunpack.c.h.b16 %v2418
    %v2494 = vunpack.c.l.b16 %v2419
    %v2495 = vunpack.c.h.b16 %v2419
    %v2496 = vunpack.c.l.b16 %v2420
    %v2497 = vunpack.c.h.b16 %v2420
    %v2498 = vunpack.c.l.b16 %v2421
    %v2499 = vunpack.c.h.b16 %v2421
    %v2500 = vunpack.c.l.b16 %v2422
    %v2501 = vunpack.c.h.b16 %v2422
    %v2502 = vunpack.c.l.b16 %v2423
    %v2503 = vunpack.c.h.b16 %v2423
    %v2504 = vunpack.c.l.b16 %v2424
    %v2505 = vunpack.c.h.b16 %v2424
    %v2506 = vunpack.c.l.b16 %v2425
    %v2507 = vunpack.c.h.b16 %v2425
    %v2508 = vunpack.c.l.b16 %v2426
    %v2509 = vunpack.c.h.b16 %v2426
    %v2510 = vunpack.c.l.b16 %v2427
    %v2511 = vunpack.c.h.b16 %v2427
    %v2512 = vunpack.c.l.b16 %v2428
    %v2513 = vunpack.c.h.b16 %v2428
    %v2514 = vunpack.c.l.b16 %v2429
    %v2515 = vunpack.c.h.b16 %v2429
    %v2516 = vunpack.c.l.b16 %v2430
    %v2517 = vunpack.c.h.b16 %v2430
    %v2518 = vunpack.c.l.b16 %v2431
    %v2519 = vunpack.c.h.b16 %v2431
    %v2520 = vunpack.c.l.b16 %v2432
    %v2521 = vunpack.c.h.b16 %v2432
    %v2522 = vunpack.c.l.b16 %v2433
    %v2523 = vunpack.c.h.b16 %v2433
    %v2524 = vunpack.c.l.b16 %v2434
    %v2525 = vunpack.c.h.b16 %v2434
    %v2526 = vunpack.c.l.b16 %v2435
    %v2527 = vunpack.c.h.b16 %v2435
    %v2528 = vunpack.c.l.b16 %v2436
    %v2529 = vunpack.c.h.b16 %v2436
    %v2530 = vunpack.c.l.b16 %v2437
    %v2531 = vunpack.c.h.b16 %v2437
    %v2532 = vunpack.c.l.b16 %v2438
    %v2533 = vunpack.c.h.b16 %v2438
    %v2534 = vunpack.c.l.b16 %v2439
    %v2535 = vunpack.c.h.b16 %v2439
    %v2536 = vunpack.c.l.b16 %v2440
    %v2537 = vunpack.c.h.b16 %v2440
    %v2538 = vunpack.c.l.b16 %v2441
    %v2539 = vunpack.c.h.b16 %v2441
    %v2540 = vunpack.c.l.b16 %v2442
    %v2541 = vunpack.c.h.b16 %v2442
    %v2542 = vunpack.c.l.b16 %v2443
    %v2543 = vunpack.c.h.b16 %v2443
    %v2544 = vunpack.c.l.b16 %v2444
    %v2545 = vunpack.c.h.b16 %v2444
    %v2546 = vunpack.c.l.b16 %v2445
    %v2547 = vunpack.c.h.b16 %v2445
    %v2548 = vunpack.c.l.b16 %v2446
    %v2549 = vunpack.c.h.b16 %v2446
    %v2550 = vpack.c.b16 %v2488, %v2486
    %v2551 = vpack.c.b16 %v2489, %v2487
    %v2552 = vpack.c.b16 %v2492, %v2490
    %v2553 = vpack.c.b16 %v2493, %v2491
    %v2554 = vpack.c.b16 %v2496, %v2494
    %v2555 = vpack.c.b16 %v2497, %v2495
    %v2556 = vpack.c.b16 %v2500, %v2498
    %v2557 = vpack.c.b16 %v2501, %v2499
    %v2558 = vpack.c.b16 %v2504, %v2502
    %v2559 = vpack.c.b16 %v2505, %v2503
    %v2560 = vpack.c.b16 %v2508, %v2506
    %v2561 = vpack.c.b16 %v2509, %v2507
    %v2562 = vpack.c.b16 %v2512, %v2510
    %v2563 = vpack.c.b16 %v2513, %v2511
    %v2564 = vpack.c.b16 %v2516, %v2514
    %v2565 = vpack.c.b16 %v2517, %v2515
    %v2566 = vpack.c.b16 %v2520, %v2518
    %v2567 = vpack.c.b16 %v2521, %v2519
    %v2568 = vpack.c.b16 %v2524, %v2522
    %v2569 = vpack.c.b16 %v2525, %v2523
    %v2570 = vpack.c.b16 %v2528, %v2526
    %v2571 = vpack.c.b16 %v2529, %v2527
    %v2572 = vpack.c.b16 %v2532, %v2530
    %v2573 = vpack.c.b16 %v2533, %v2531
    %v2574 = vpack.c.b16 %v2536, %v2534
    %v2575 = vpack.c.b16 %v2537, %v2535
    %v2576 = vpack.c.b16 %v2540, %v2538
    %v2577 = vpack.c.b16 %v2541, %v2539
    %v2578 = vpack.c.b16 %v2544, %v2542
    %v2579 = vpack.c.b16 %v2545, %v2543
    %v2580 = vpack.c.b16 %v2548, %v2546
    %v2581 = vpack.c.b16 %v2549, %v2547
    %2614 = vmatpush.bf16.msra.mxu0 %v2564
    %2615 = vmatpush.bf16.msra.mxu0 %v2562
    %2616 = vmatpush.bf16.msra.mxu0 %v2560
    %2617 = vmatpush.bf16.msra.mxu0 %v2558
    %2618 = vmatpush.bf16.msra.mxu0 %v2556
    %2619 = vmatpush.bf16.msra.mxu0 %v2554
    %2620 = vmatpush.bf16.msra.mxu0 %v2552
    %2621 = vmatpush.bf16.msra.mxu0 %v2550
    %2622 = vmatmul.bf16.gmra.mxu0 %v2412
    %v2623 = vpop.f32.mrf.mxu0
    %v2624 = vadd.f32 %v2450, %v2623
    %v2625 = vpop.f32.mrf.mxu0
    %2626 = vdwg.mxu0
    %2627 = vmatpush.bf16.msra.mxu0 %v2580
    %2628 = vmatpush.bf16.msra.mxu0 %v2578
    %2629 = vmatpush.bf16.msra.mxu0 %v2576
    %2630 = vmatpush.bf16.msra.mxu0 %v2574
    %2631 = vmatpush.bf16.msra.mxu0 %v2572
    %2632 = vmatpush.bf16.msra.mxu0 %v2570
    %2633 = vmatpush.bf16.msra.mxu0 %v2568
    %2634 = vmatpush.bf16.msra.mxu0 %v2566
    %2635 = vmatmul.bf16.gmra.mxu0 %v2413
    %v2636 = vpop.f32.mrf.mxu0
    %v2637 = vadd.f32 %v2624, %v2636
    %v2638 = vpop.f32.mrf.mxu0
    %2639 = vdwg.mxu0
    %2640 = vmatpush.bf16.msra.mxu0 %v2565
    %2641 = vmatpush.bf16.msra.mxu0 %v2563
    %2642 = vmatpush.bf16.msra.mxu0 %v2561
    %2643 = vmatpush.bf16.msra.mxu0 %v2559
    %2644 = vmatpush.bf16.msra.mxu0 %v2557
    %2645 = vmatpush.bf16.msra.mxu0 %v2555
    %2646 = vmatpush.bf16.msra.mxu0 %v2553
    %2647 = vmatpush.bf16.msra.mxu0 %v2551
    %2648 = vmatmul.bf16.gmra.mxu0 %v2412
    %v2649 = vpop.f32.mrf.mxu0
    %v2650 = vadd.f32 %v2451, %v2649
    %v2651 = vpop.f32.mrf.mxu0
    %2652 = vdwg.mxu0
    %2653 = vmatpush.bf16.msra.mxu0 %v2581
    %2654 = vmatpush.bf16.msra.mxu0 %v2579
    %2655 = vmatpush.bf16.msra.mxu0 %v2577
    %2656 = vmatpush.bf16.msra.mxu0 %v2575
    %2657 = vmatpush.bf16.msra.mxu0 %v2573
    %2658 = vmatpush.bf16.msra.mxu0 %v2571
    %2659 = vmatpush.bf16.msra.mxu0 %v2569
    %2660 = vmatpush.bf16.msra.mxu0 %v2567
    %2661 = vmatmul.bf16.gmra.mxu0 %v2413
    %v2662 = vpop.f32.mrf.mxu0
    %v2663 = vadd.f32 %v2650, %v2662
    %v2664 = vpop.f32.mrf.mxu0
    %2665 = vdwg.mxu0
    %v2666 = vpack.c.bf16 %v2663, %v2637
    %v2667 = vunpack.c.l.bf16 %v2666
    %v2668 = vunpack.c.h.bf16 %v2666
    %v2669 = vmax.f32 %v2667, 0.0
    %v2670 = vmax.f32 %v2668, 0.0
    %v2671 = vpack.c.bf16 %v2669, %v2669
    %v2672 = vpack.c.bf16 %v2670, %v2670
    %s2673 = scalar_lea.vmem [#allocation9], 2304
    %v2674 = vld [vmem:[%s2673] sm:$0xff]
    %v2675 = vld [vmem:[%s2673 + $0x8] sm:$0xff]
    %v2676 = vld [vmem:[%s2673 + $0x10] sm:$0xff]
    %v2677 = vld [vmem:[%s2673 + $0x18] sm:$0xff]
    %v2678 = vld [vmem:[%s2673 + $0x20] sm:$0xff]
    %v2679 = vld [vmem:[%s2673 + $0x28] sm:$0xff]
    %v2680 = vld [vmem:[%s2673 + $0x30] sm:$0xff]
    %v2681 = vld [vmem:[%s2673 + $0x38] sm:$0xff]
    %v2682 = vld [vmem:[%s2673 + $0x40] sm:$0xff]
    %v2683 = vld [vmem:[%s2673 + $0x48] sm:$0xff]
    %v2684 = vld [vmem:[%s2673 + $0x50] sm:$0xff]
    %v2685 = vld [vmem:[%s2673 + $0x58] sm:$0xff]
    %v2686 = vld [vmem:[%s2673 + $0x60] sm:$0xff]
    %v2687 = vld [vmem:[%s2673 + $0x68] sm:$0xff]
    %v2688 = vld [vmem:[%s2673 + $0x70] sm:$0xff]
    %v2689 = vld [vmem:[%s2673 + $0x78] sm:$0xff]
    %v2690 = vld [vmem:[%s2673 + $0x80] sm:$0xff]
    %v2691 = vld [vmem:[%s2673 + $0x88] sm:$0xff]
    %v2692 = vld [vmem:[%s2673 + $0x90] sm:$0xff]
    %v2693 = vld [vmem:[%s2673 + $0x98] sm:$0xff]
    %v2694 = vld [vmem:[%s2673 + $0xa0] sm:$0xff]
    %v2695 = vld [vmem:[%s2673 + $0xa8] sm:$0xff]
    %v2696 = vld [vmem:[%s2673 + $0xb0] sm:$0xff]
    %v2697 = vld [vmem:[%s2673 + $0xb8] sm:$0xff]
    %v2698 = vld [vmem:[%s2673 + $0xc0] sm:$0xff]
    %v2699 = vld [vmem:[%s2673 + $0xc8] sm:$0xff]
    %v2700 = vld [vmem:[%s2673 + $0xd0] sm:$0xff]
    %v2701 = vld [vmem:[%s2673 + $0xd8] sm:$0xff]
    %v2702 = vld [vmem:[%s2673 + $0xe0] sm:$0xff]
    %v2703 = vld [vmem:[%s2673 + $0xe8] sm:$0xff]
    %v2704 = vld [vmem:[%s2673 + $0xf0] sm:$0xff]
    %v2705 = vld [vmem:[%s2673 + $0xf8] sm:$0xff]
    %s2706 = scalar_lea.vmem [#allocation11], 18
    %v2707 = vld [vmem:[%s2706] sm:$0x3]
    %v2709 = vperm.slane %v2707, 0
    %v2710 = vperm.slane %v2707, 1
    %v2745 = vunpack.c.l.b16 %v2674
    %v2746 = vunpack.c.h.b16 %v2674
    %v2747 = vunpack.c.l.b16 %v2675
    %v2748 = vunpack.c.h.b16 %v2675
    %v2749 = vunpack.c.l.b16 %v2676
    %v2750 = vunpack.c.h.b16 %v2676
    %v2751 = vunpack.c.l.b16 %v2677
    %v2752 = vunpack.c.h.b16 %v2677
    %v2753 = vunpack.c.l.b16 %v2678
    %v2754 = vunpack.c.h.b16 %v2678
    %v2755 = vunpack.c.l.b16 %v2679
    %v2756 = vunpack.c.h.b16 %v2679
    %v2757 = vunpack.c.l.b16 %v2680
    %v2758 = vunpack.c.h.b16 %v2680
    %v2759 = vunpack.c.l.b16 %v2681
    %v2760 = vunpack.c.h.b16 %v2681
    %v2761 = vunpack.c.l.b16 %v2682
    %v2762 = vunpack.c.h.b16 %v2682
    %v2763 = vunpack.c.l.b16 %v2683
    %v2764 = vunpack.c.h.b16 %v2683
    %v2765 = vunpack.c.l.b16 %v2684
    %v2766 = vunpack.c.h.b16 %v2684
    %v2767 = vunpack.c.l.b16 %v2685
    %v2768 = vunpack.c.h.b16 %v2685
    %v2769 = vunpack.c.l.b16 %v2686
    %v2770 = vunpack.c.h.b16 %v2686
    %v2771 = vunpack.c.l.b16 %v2687
    %v2772 = vunpack.c.h.b16 %v2687
    %v2773 = vunpack.c.l.b16 %v2688
    %v2774 = vunpack.c.h.b16 %v2688
    %v2775 = vunpack.c.l.b16 %v2689
    %v2776 = vunpack.c.h.b16 %v2689
    %v2777 = vunpack.c.l.b16 %v2690
    %v2778 = vunpack.c.h.b16 %v2690
    %v2779 = vunpack.c.l.b16 %v2691
    %v2780 = vunpack.c.h.b16 %v2691
    %v2781 = vunpack.c.l.b16 %v2692
    %v2782 = vunpack.c.h.b16 %v2692
    %v2783 = vunpack.c.l.b16 %v2693
    %v2784 = vunpack.c.h.b16 %v2693
    %v2785 = vunpack.c.l.b16 %v2694
    %v2786 = vunpack.c.h.b16 %v2694
    %v2787 = vunpack.c.l.b16 %v2695
    %v2788 = vunpack.c.h.b16 %v2695
    %v2789 = vunpack.c.l.b16 %v2696
    %v2790 = vunpack.c.h.b16 %v2696
    %v2791 = vunpack.c.l.b16 %v2697
    %v2792 = vunpack.c.h.b16 %v2697
    %v2793 = vunpack.c.l.b16 %v2698
    %v2794 = vunpack.c.h.b16 %v2698
    %v2795 = vunpack.c.l.b16 %v2699
    %v2796 = vunpack.c.h.b16 %v2699
    %v2797 = vunpack.c.l.b16 %v2700
    %v2798 = vunpack.c.h.b16 %v2700
    %v2799 = vunpack.c.l.b16 %v2701
    %v2800 = vunpack.c.h.b16 %v2701
    %v2801 = vunpack.c.l.b16 %v2702
    %v2802 = vunpack.c.h.b16 %v2702
    %v2803 = vunpack.c.l.b16 %v2703
    %v2804 = vunpack.c.h.b16 %v2703
    %v2805 = vunpack.c.l.b16 %v2704
    %v2806 = vunpack.c.h.b16 %v2704
    %v2807 = vunpack.c.l.b16 %v2705
    %v2808 = vunpack.c.h.b16 %v2705
    %v2809 = vpack.c.b16 %v2747, %v2745
    %v2810 = vpack.c.b16 %v2748, %v2746
    %v2811 = vpack.c.b16 %v2751, %v2749
    %v2812 = vpack.c.b16 %v2752, %v2750
    %v2813 = vpack.c.b16 %v2755, %v2753
    %v2814 = vpack.c.b16 %v2756, %v2754
    %v2815 = vpack.c.b16 %v2759, %v2757
    %v2816 = vpack.c.b16 %v2760, %v2758
    %v2817 = vpack.c.b16 %v2763, %v2761
    %v2818 = vpack.c.b16 %v2764, %v2762
    %v2819 = vpack.c.b16 %v2767, %v2765
    %v2820 = vpack.c.b16 %v2768, %v2766
    %v2821 = vpack.c.b16 %v2771, %v2769
    %v2822 = vpack.c.b16 %v2772, %v2770
    %v2823 = vpack.c.b16 %v2775, %v2773
    %v2824 = vpack.c.b16 %v2776, %v2774
    %v2825 = vpack.c.b16 %v2779, %v2777
    %v2826 = vpack.c.b16 %v2780, %v2778
    %v2827 = vpack.c.b16 %v2783, %v2781
    %v2828 = vpack.c.b16 %v2784, %v2782
    %v2829 = vpack.c.b16 %v2787, %v2785
    %v2830 = vpack.c.b16 %v2788, %v2786
    %v2831 = vpack.c.b16 %v2791, %v2789
    %v2832 = vpack.c.b16 %v2792, %v2790
    %v2833 = vpack.c.b16 %v2795, %v2793
    %v2834 = vpack.c.b16 %v2796, %v2794
    %v2835 = vpack.c.b16 %v2799, %v2797
    %v2836 = vpack.c.b16 %v2800, %v2798
    %v2837 = vpack.c.b16 %v2803, %v2801
    %v2838 = vpack.c.b16 %v2804, %v2802
    %v2839 = vpack.c.b16 %v2807, %v2805
    %v2840 = vpack.c.b16 %v2808, %v2806
    %2873 = vmatpush.bf16.msra.mxu0 %v2823
    %2874 = vmatpush.bf16.msra.mxu0 %v2821
    %2875 = vmatpush.bf16.msra.mxu0 %v2819
    %2876 = vmatpush.bf16.msra.mxu0 %v2817
    %2877 = vmatpush.bf16.msra.mxu0 %v2815
    %2878 = vmatpush.bf16.msra.mxu0 %v2813
    %2879 = vmatpush.bf16.msra.mxu0 %v2811
    %2880 = vmatpush.bf16.msra.mxu0 %v2809
    %2881 = vmatmul.bf16.gmra.mxu0 %v2671
    %v2882 = vpop.f32.mrf.mxu0
    %v2883 = vadd.f32 %v2709, %v2882
    %v2884 = vpop.f32.mrf.mxu0
    %2885 = vdwg.mxu0
    %2886 = vmatpush.bf16.msra.mxu0 %v2839
    %2887 = vmatpush.bf16.msra.mxu0 %v2837
    %2888 = vmatpush.bf16.msra.mxu0 %v2835
    %2889 = vmatpush.bf16.msra.mxu0 %v2833
    %2890 = vmatpush.bf16.msra.mxu0 %v2831
    %2891 = vmatpush.bf16.msra.mxu0 %v2829
    %2892 = vmatpush.bf16.msra.mxu0 %v2827
    %2893 = vmatpush.bf16.msra.mxu0 %v2825
    %2894 = vmatmul.bf16.gmra.mxu0 %v2672
    %v2895 = vpop.f32.mrf.mxu0
    %v2896 = vadd.f32 %v2883, %v2895
    %v2897 = vpop.f32.mrf.mxu0
    %2898 = vdwg.mxu0
    %2899 = vmatpush.bf16.msra.mxu0 %v2824
    %2900 = vmatpush.bf16.msra.mxu0 %v2822
    %2901 = vmatpush.bf16.msra.mxu0 %v2820
    %2902 = vmatpush.bf16.msra.mxu0 %v2818
    %2903 = vmatpush.bf16.msra.mxu0 %v2816
    %2904 = vmatpush.bf16.msra.mxu0 %v2814
    %2905 = vmatpush.bf16.msra.mxu0 %v2812
    %2906 = vmatpush.bf16.msra.mxu0 %v2810
    %2907 = vmatmul.bf16.gmra.mxu0 %v2671
    %v2908 = vpop.f32.mrf.mxu0
    %v2909 = vadd.f32 %v2710, %v2908
    %v2910 = vpop.f32.mrf.mxu0
    %2911 = vdwg.mxu0
    %2912 = vmatpush.bf16.msra.mxu0 %v2840
    %2913 = vmatpush.bf16.msra.mxu0 %v2838
    %2914 = vmatpush.bf16.msra.mxu0 %v2836
    %2915 = vmatpush.bf16.msra.mxu0 %v2834
    %2916 = vmatpush.bf16.msra.mxu0 %v2832
    %2917 = vmatpush.bf16.msra.mxu0 %v2830
    %2918 = vmatpush.bf16.msra.mxu0 %v2828
    %2919 = vmatpush.bf16.msra.mxu0 %v2826
    %2920 = vmatmul.bf16.gmra.mxu0 %v2672
    %v2921 = vpop.f32.mrf.mxu0
    %v2922 = vadd.f32 %v2909, %v2921
    %v2923 = vpop.f32.mrf.mxu0
    %2924 = vdwg.mxu0
    %v2925 = vmul.f32 %v2896, 0.3
    %v2926 = vmul.f32 %v2922, 0.3
    %v2929 = vrot.slane %v2926, 6
    %v2930 = vsel %vm262, %v2925, %v2929
    %v2932 = vadd.f32 %v2400, %v2930
    %2933 = vst [vmem:[#allocation2] sm:$0xf] %v2932
    %v2934 = vld [vmem:[#allocation2] sm:$0xf]
    %2936 = vst [vmem:[#allocation1] ss:$4 sm:$0xff] %v2934
    %v2937 = vld.sshfl [vmem:[#allocation1] sm:$0xff pattern:$0x73625140]
    %v2938 = vld.sshfl [vmem:[#allocation1 + $0x8] sm:$0xff pattern:$0x73625140]
    %v2941 = vpack.c.bf16 %v2937, %v2937
    %v2942 = vpack.c.bf16 %v2938, %v2938
    %v2943 = vld [vmem:[#allocation12] sm:$0xf]
    %v2944 = vld [vmem:[#allocation12 + $0x4] sm:$0xf]
    %v2945 = vld [vmem:[#allocation12 + $0x8] sm:$0xf]
    %v2946 = vld [vmem:[#allocation12 + $0xc] sm:$0xf]
    %v2947 = vld [vmem:[#allocation12 + $0x10] sm:$0xf]
    %v2948 = vld [vmem:[#allocation12 + $0x14] sm:$0xf]
    %v2949 = vld [vmem:[#allocation12 + $0x18] sm:$0xf]
    %v2950 = vld [vmem:[#allocation12 + $0x1c] sm:$0xf]
    %v2951 = vld [vmem:[#allocation12 + $0x20] sm:$0xf]
    %v2952 = vld [vmem:[#allocation12 + $0x24] sm:$0xf]
    %v2953 = vld [vmem:[#allocation12 + $0x28] sm:$0xf]
    %v2954 = vld [vmem:[#allocation12 + $0x2c] sm:$0xf]
    %v2955 = vld [vmem:[#allocation12 + $0x30] sm:$0xf]
    %v2956 = vld [vmem:[#allocation12 + $0x34] sm:$0xf]
    %v2957 = vld [vmem:[#allocation12 + $0x38] sm:$0xf]
    %v2958 = vld [vmem:[#allocation12 + $0x3c] sm:$0xf]
    %v2959 = vld [vmem:[#allocation12 + $0x40] sm:$0xf]
    %v2960 = vld [vmem:[#allocation12 + $0x44] sm:$0xf]
    %v2961 = vld [vmem:[#allocation12 + $0x48] sm:$0xf]
    %v2962 = vld [vmem:[#allocation12 + $0x4c] sm:$0xf]
    %v2963 = vld [vmem:[#allocation12 + $0x50] sm:$0xf]
    %v2964 = vld [vmem:[#allocation12 + $0x54] sm:$0xf]
    %v2965 = vld [vmem:[#allocation12 + $0x58] sm:$0xf]
    %v2966 = vld [vmem:[#allocation12 + $0x5c] sm:$0xf]
    %v2967 = vld [vmem:[#allocation12 + $0x60] sm:$0xf]
    %v2968 = vld [vmem:[#allocation12 + $0x64] sm:$0xf]
    %v2969 = vld [vmem:[#allocation12 + $0x68] sm:$0xf]
    %v2970 = vld [vmem:[#allocation12 + $0x6c] sm:$0xf]
    %v2971 = vld [vmem:[#allocation12 + $0x70] sm:$0xf]
    %v2972 = vld [vmem:[#allocation12 + $0x74] sm:$0xf]
    %v2973 = vld [vmem:[#allocation12 + $0x78] sm:$0xf]
    %v2974 = vld [vmem:[#allocation12 + $0x7c] sm:$0xf]
    %v2975 = vld [vmem:[#allocation14] sm:$0x1]
    %v2977 = vperm.slane %v2975, 0
    %v3011 = vunpack.c.l.b16 %v2943
    %v3012 = vunpack.c.l.b16 %v2944
    %v3013 = vunpack.c.l.b16 %v2945
    %v3014 = vunpack.c.l.b16 %v2946
    %v3015 = vunpack.c.l.b16 %v2947
    %v3016 = vunpack.c.l.b16 %v2948
    %v3017 = vunpack.c.l.b16 %v2949
    %v3018 = vunpack.c.l.b16 %v2950
    %v3019 = vunpack.c.l.b16 %v2951
    %v3020 = vunpack.c.l.b16 %v2952
    %v3021 = vunpack.c.l.b16 %v2953
    %v3022 = vunpack.c.l.b16 %v2954
    %v3023 = vunpack.c.l.b16 %v2955
    %v3024 = vunpack.c.l.b16 %v2956
    %v3025 = vunpack.c.l.b16 %v2957
    %v3026 = vunpack.c.l.b16 %v2958
    %v3027 = vunpack.c.l.b16 %v2959
    %v3028 = vunpack.c.l.b16 %v2960
    %v3029 = vunpack.c.l.b16 %v2961
    %v3030 = vunpack.c.l.b16 %v2962
    %v3031 = vunpack.c.l.b16 %v2963
    %v3032 = vunpack.c.l.b16 %v2964
    %v3033 = vunpack.c.l.b16 %v2965
    %v3034 = vunpack.c.l.b16 %v2966
    %v3035 = vunpack.c.l.b16 %v2967
    %v3036 = vunpack.c.l.b16 %v2968
    %v3037 = vunpack.c.l.b16 %v2969
    %v3038 = vunpack.c.l.b16 %v2970
    %v3039 = vunpack.c.l.b16 %v2971
    %v3040 = vunpack.c.l.b16 %v2972
    %v3041 = vunpack.c.l.b16 %v2973
    %v3042 = vunpack.c.l.b16 %v2974
    %v3043 = vpack.c.b16 %v3012, %v3011
    %v3044 = vpack.c.b16 %v3014, %v3013
    %v3045 = vpack.c.b16 %v3016, %v3015
    %v3046 = vpack.c.b16 %v3018, %v3017
    %v3047 = vpack.c.b16 %v3020, %v3019
    %v3048 = vpack.c.b16 %v3022, %v3021
    %v3049 = vpack.c.b16 %v3024, %v3023
    %v3050 = vpack.c.b16 %v3026, %v3025
    %v3051 = vpack.c.b16 %v3028, %v3027
    %v3052 = vpack.c.b16 %v3030, %v3029
    %v3053 = vpack.c.b16 %v3032, %v3031
    %v3054 = vpack.c.b16 %v3034, %v3033
    %v3055 = vpack.c.b16 %v3036, %v3035
    %v3056 = vpack.c.b16 %v3038, %v3037
    %v3057 = vpack.c.b16 %v3040, %v3039
    %v3058 = vpack.c.b16 %v3042, %v3041
    %3075 = vmatpush.bf16.msra.mxu0 %v3050
    %3076 = vmatpush.bf16.msra.mxu0 %v3049
    %3077 = vmatpush.bf16.msra.mxu0 %v3048
    %3078 = vmatpush.bf16.msra.mxu0 %v3047
    %3079 = vmatpush.bf16.msra.mxu0 %v3046
    %3080 = vmatpush.bf16.msra.mxu0 %v3045
    %3081 = vmatpush.bf16.msra.mxu0 %v3044
    %3082 = vmatpush.bf16.msra.mxu0 %v3043
    %3083 = vmatmul.bf16.gmra.mxu0 %v2941
    %v3084 = vpop.f32.mrf.mxu0
    %v3085 = vadd.f32 %v2977, %v3084
    %v3086 = vpop.f32.mrf.mxu0
    %3087 = vdwg.mxu0
    %3088 = vmatpush.bf16.msra.mxu0 %v3058
    %3089 = vmatpush.bf16.msra.mxu0 %v3057
    %3090 = vmatpush.bf16.msra.mxu0 %v3056
    %3091 = vmatpush.bf16.msra.mxu0 %v3055
    %3092 = vmatpush.bf16.msra.mxu0 %v3054
    %3093 = vmatpush.bf16.msra.mxu0 %v3053
    %3094 = vmatpush.bf16.msra.mxu0 %v3052
    %3095 = vmatpush.bf16.msra.mxu0 %v3051
    %3096 = vmatmul.bf16.gmra.mxu0 %v2942
    %v3097 = vpop.f32.mrf.mxu0
    %v3098 = vadd.f32 %v3085, %v3097
    %v3099 = vpop.f32.mrf.mxu0
    %3100 = vdwg.mxu0
    %v3101 = vtanh.pop %v3098
    %3102 = vst [vmem:[#allocation15] sm:$0x3] %v3101
    // Predicated region
    $region58: #{tpu_custom_call.1} parent=1 // pred_check
      _
    $region59: #{tpu_custom_call.1} parent=1 // pred_check_branch
      %3104 = sbr.rel (0) target = $region61
    $region60: #{tpu_custom_call.1} parent=1 // pred_region
      %3106 = vsyncadd [#allocation5], 0
      %s3108 = sshll.u32 [#allocation15], 4
      %s3109 = int_to_ptr.vmem [resolvable:$true] %s3108
      %s3110 = sshll.u32 %s7, 4
      %s3111 = int_to_ptr.hbm [resolvable:$true] %s3110
      %3113 = dma.vmem_to_hbm [thread:$0]  %s3109, 32, %s3111, [#allocation5]
    $region61: #{tpu_custom_call.1} parent=1 // pred_fallthru
      _
    // Predicated region
    $region62: #{tpu_custom_call.1} parent=1 // pred_check
      _
    $region63: #{tpu_custom_call.1} parent=1 // pred_check_branch
      %3115 = sbr.rel (0) target = $region65
    $region64: #{tpu_custom_call.1} parent=1 // pred_region
      %3117 = dma.done [#allocation5], 32
    $region65: #{tpu_custom_call.1} parent=1 // pred_fallthru
      _
    %3118 = vsyncpa [#allocation4], 1
    %3119 = vsyncpa [#allocation7], 1
    %3120 = vsyncpa [#allocation10], 1
    %3121 = vsyncpa [#allocation13], 1
    %3122 = vsyncpa [#allocation5], 1

// kernel: tpu_custom_call.1
$region0: #{tpu_custom_call.1}
  #allocation0 [shape = 'u32[]', space=smem, size = 0x4, offset = 0x4, fixed_abs, tag = 'smem constant byte address 0x4 - core index']
  #allocation1 [shape = 'u32[72,128]{1,0:T(1,128)}', space=vmem, size = 0x9000, scoped, tag = 'internal scratch']
  #allocation2 [shape = 'f32[2,256]{1,0:T(2,128)}', space=vmem, size = 0x800, scoped, tag = 'scratch operand']
  %s0 = inlined_call_operand.hbm [shape: bf16[2,128], index: 0, kind: input, shape index: {}]
  %s1 = inlined_call_operand.hbm [shape: bf16[128,256], index: 1, kind: input, shape index: {}]
  %s2 = inlined_call_operand.hbm [shape: f32[1,256], index: 2, kind: input, shape index: {}]
  %s3 = inlined_call_operand.hbm [shape: bf16[5,2,256,256], index: 3, kind: input, shape index: {}]
  %s4 = inlined_call_operand.hbm [shape: f32[5,2,1,256], index: 4, kind: input, shape index: {}]
  %s5 = inlined_call_operand.hbm [shape: bf16[256,128], index: 5, kind: input, shape index: {}]
  %s6 = inlined_call_operand.hbm [shape: f32[1,128], index: 6, kind: input, shape index: {}]
  %s7 = inlined_call_operand.hbm [shape: f32[2,128], index: 7, kind: output, shape index: {}]
  %s8 = sld [smem:[#allocation0]]
  $region66: #{tpu_custom_call.1} parent=0
    _
  %s10 = ssub.s32 1, %s8
  %s11 = scalar_select 0, %s10, %s8
  $region1: #{tpu_custom_call.1} parent=0
    #allocation3 [shape = 'u8[512]{0}', space=vmem, size = 0x400, scoped, tag = 'input window, operand 0, single buffered']
    #allocation4 [shape = 's32[1]{0}', space=sflag, size = 0x4, scoped, tag = 'scoped memory for tpu_custom_call.1']
    #allocation5 [shape = 's32[1]{0}', space=sflag, size = 0x4, scoped, tag = 'scoped memory for tpu_custom_call.1']
    #allocation6 [shape = 'u8[65536]{0}', space=vmem, size = 0x10000, scoped, tag = 'input window, operand 1, single buffered']
    #allocation7 [shape = 's32[1]{0}', space=sflag, size = 0x4, scoped, tag = 'scoped memory for tpu_custom_call.1']
    #allocation8 [shape = 'u8[1024]{0}', space=vmem, size = 0x400, scoped, tag = 'input window, operand 2, single buffered']
    #allocation9 [shape = 'u8[1310720]{0}', space=vmem, size = 0x140000, scoped, tag = 'input window, operand 3, single buffered']
    #allocation10 [shape = 's32[1]{0}', space=sflag, size = 0x4, scoped, tag = 'scoped memory for tpu_custom_call.1']
    #allocation11 [shape = 'u8[10240]{0}', space=vmem, size = 0x2800, scoped, tag = 'input window, operand 4, single buffered']
    #allocation12 [shape = 'u8[65536]{0}', space=vmem, size = 0x10000, scoped, tag = 'input window, operand 5, single buffered']
    #allocation13 [shape = 's32[1]{0}', space=sflag, size = 0x4, scoped, tag = 'scoped memory for tpu_custom_call.1']
    #allocation14 [shape = 'u8[512]{0}', space=vmem, size = 0x400, scoped, tag = 'input window, operand 6, single buffered']
    #allocation15 [shape = 'u8[1024]{0}', space=vmem, size = 0x400, scoped, tag = 'output window, operand 0, single buffered']
    %12 = vsyncpa [#allocation4], 0
    %13 = vsyncpa [#allocation7], 0
    %14 = vsyncpa [#allocation10], 0
    %15 = vsyncpa [#allocation13], 0
    %16 = vsyncpa [#allocation5], 0
    // Predicated region
    $region2: #{tpu_custom_call.1} parent=1 // pred_check
      _
    $region3: #{tpu_custom_call.1} parent=1 // pred_check_branch
      %18 = sbr.rel (0) target = $region5
    $region4: #{tpu_custom_call.1} parent=1 // pred_region
      %20 = vsyncadd [#allocation4], 0
      %s22 = sshll.u32 %s0, 4
      %s23 = int_to_ptr.hbm [resolvable:$true] %s22
      %s24 = sshll.u32 [#allocation3], 4
      %s25 = int_to_ptr.vmem [resolvable:$true] %s24
      %27 = dma.hbm_to_vmem [thread:$0]  %s23, 16, %s25, [#allocation4]
    $region5: #{tpu_custom_call.1} parent=1 // pred_fallthru
      _
    // Predicated region
    $region6: #{tpu_custom_call.1} parent=1 // pred_check
      _
    $region7: #{tpu_custom_call.1} parent=1 // pred_check_branch
      %29 = sbr.rel (0) target = $region9
    $region8: #{tpu_custom_call.1} parent=1 // pred_region
      %31 = vsyncadd [#allocation7], 0
      %s32 = sshll.u32 %s1, 4
      %s33 = int_to_ptr.hbm [resolvable:$true] %s32
      %s34 = sshll.u32 [#allocation6], 4
      %s35 = int_to_ptr.vmem [resolvable:$true] %s34
      %40 = dma.hbm_to_vmem [thread:$0]  %s33, 2048, %s35, [#allocation7], 128, 128, 8
    $region9: #{tpu_custom_call.1} parent=1 // pred_fallthru
      _
    // Predicated region
    $region10: #{tpu_custom_call.1} parent=1 // pred_check
      _
    $region11: #{tpu_custom_call.1} parent=1 // pred_check_branch
      %42 = sbr.rel (0) target = $region13
    $region12: #{tpu_custom_call.1} parent=1 // pred_region
      %44 = vsyncadd [#allocation7], 0
      %s46 = sshll.u32 %s2, 4
      %s47 = int_to_ptr.hbm [resolvable:$true] %s46
      %s48 = sshll.u32 [#allocation8], 4
      %s49 = int_to_ptr.vmem [resolvable:$true] %s48
      %51 = dma.hbm_to_vmem [thread:$0]  %s47, 32, %s49, [#allocation7]
    $region13: #{tpu_custom_call.1} parent=1 // pred_fallthru
      _
    // Predicated region
    $region14: #{tpu_custom_call.1} parent=1 // pred_check
      _
    $region15: #{tpu_custom_call.1} parent=1 // pred_check_branch
      %53 = sbr.rel (0) target = $region17
    $region16: #{tpu_custom_call.1} parent=1 // pred_region
      %55 = vsyncadd [#allocation10], 0
      %s56 = sshll.u32 %s3, 4
      %s57 = int_to_ptr.hbm [resolvable:$true] %s56
      %s58 = sshll.u32 [#allocation9], 4
      %s59 = int_to_ptr.vmem [resolvable:$true] %s58
      %64 = dma.hbm_to_vmem [thread:$0]  %s57, 40960, %s59, [#allocation10], 128, 128, 8
    $region17: #{tpu_custom_call.1} parent=1 // pred_fallthru
      _
    // Predicated region
    $region18: #{tpu_custom_call.1} parent=1 // pred_check
      _
    $region19: #{tpu_custom_call.1} parent=1 // pred_check_branch
      %66 = sbr.rel (0) target = $region21
    $region20: #{tpu_custom_call.1} parent=1 // pred_region
      %68 = vsyncadd [#allocation10], 0
      %s69 = sshll.u32 %s4, 4
      %s70 = int_to_ptr.hbm [resolvable:$true] %s69
      %s71 = sshll.u32 [#allocation11], 4
      %s72 = int_to_ptr.vmem [resolvable:$true] %s71
      %77 = dma.hbm_to_vmem [thread:$0]  %s70, 320, %s72, [#allocation10], 32, 32, 2
    $region21: #{tpu_custom_call.1} parent=1 // pred_fallthru
      _
    // Predicated region
    $region22: #{tpu_custom_call.1} parent=1 // pred_check
      _
    $region23: #{tpu_custom_call.1} parent=1 // pred_check_branch
      %79 = sbr.rel (0) target = $region25
    $region24: #{tpu_custom_call.1} parent=1 // pred_region
      %81 = vsyncadd [#allocation13], 0
      %s82 = sshll.u32 %s5, 4
      %s83 = int_to_ptr.hbm [resolvable:$true] %s82
      %s84 = sshll.u32 [#allocation12], 4
      %s85 = int_to_ptr.vmem [resolvable:$true] %s84
      %90 = dma.hbm_to_vmem [thread:$0]  %s83, 2048, %s85, [#allocation13], 64, 64, 4
    $region25: #{tpu_custom_call.1} parent=1 // pred_fallthru
      _
    // Predicated region
    $region26: #{tpu_custom_call.1} parent=1 // pred_check
      _
    $region27: #{tpu_custom_call.1} parent=1 // pred_check_branch
      %92 = sbr.rel (0) target = $region29
    $region28: #{tpu_custom_call.1} parent=1 // pred_region
      %94 = vsyncadd [#allocation13], 0
      %s96 = sshll.u32 %s6, 4
      %s97 = int_to_ptr.hbm [resolvable:$true] %s96
      %s98 = sshll.u32 [#allocation14], 4
      %s99 = int_to_ptr.vmem [resolvable:$true] %s98
      %101 = dma.hbm_to_vmem [thread:$0]  %s97, 16, %s99, [#allocation13]
    $region29: #{tpu_custom_call.1} parent=1 // pred_fallthru
      _
    // Predicated region
    $region30: #{tpu_custom_call.1} parent=1 // pred_check
      _
    $region31: #{tpu_custom_call.1} parent=1 // pred_check_branch
      %103 = sbr.rel (0) target = $region33
    $region32: #{tpu_custom_call.1} parent=1 // pred_region
      %105 = dma.done [#allocation4], 16
    $region33: #{tpu_custom_call.1} parent=1 // pred_fallthru
      _
    // Predicated region
    $region34: #{tpu_custom_call.1} parent=1 // pred_check
      _
    $region35: #{tpu_custom_call.1} parent=1 // pred_check_branch
      %107 = sbr.rel (0) target = $region37
    $region36: #{tpu_custom_call.1} parent=1 // pred_region
      %109 = dma.done [#allocation7], 2048
    $region37: #{tpu_custom_call.1} parent=1 // pred_fallthru
      _
    // Predicated region
    $region38: #{tpu_custom_call.1} parent=1 // pred_check
      _
    $region39: #{tpu_custom_call.1} parent=1 // pred_check_branch
      %111 = sbr.rel (0) target = $region41
    $region40: #{tpu_custom_call.1} parent=1 // pred_region
      %113 = dma.done [#allocation7], 32
    $region41: #{tpu_custom_call.1} parent=1 // pred_fallthru
      _
    // Predicated region
    $region42: #{tpu_custom_call.1} parent=1 // pred_check
      _
    $region43: #{tpu_custom_call.1} parent=1 // pred_check_branch
      %115 = sbr.rel (0) target = $region45
    $region44: #{tpu_custom_call.1} parent=1 // pred_region
      %117 = dma.done [#allocation10], 40960
    $region45: #{tpu_custom_call.1} parent=1 // pred_fallthru
      _
    // Predicated region
    $region46: #{tpu_custom_call.1} parent=1 // pred_check
      _
    $region47: #{tpu_custom_call.1} parent=1 // pred_check_branch
      %119 = sbr.rel (0) target = $region49
    $region48: #{tpu_custom_call.1} parent=1 // pred_region
      %121 = dma.done [#allocation10], 320
    $region49: #{tpu_custom_call.1} parent=1 // pred_fallthru
      _
    // Predicated region
    $region50: #{tpu_custom_call.1} parent=1 // pred_check
      _
    $region51: #{tpu_custom_call.1} parent=1 // pred_check_branch
      %123 = sbr.rel (0) target = $region53
    $region52: #{tpu_custom_call.1} parent=1 // pred_region
      %125 = dma.done [#allocation13], 2048
    $region53: #{tpu_custom_call.1} parent=1 // pred_fallthru
      _
    // Predicated region
    $region54: #{tpu_custom_call.1} parent=1 // pred_check
      _
    $region55: #{tpu_custom_call.1} parent=1 // pred_check_branch
      %127 = sbr.rel (0) target = $region57
    $region56: #{tpu_custom_call.1} parent=1 // pred_region
      %129 = dma.done [#allocation13], 16
    $region57: #{tpu_custom_call.1} parent=1 // pred_fallthru
      _
    %v130 = vld [vmem:[#allocation3] sm:$0x1]
    %v131 = vld [vmem:[#allocation6] sm:$0xff]
    %v132 = vld [vmem:[#allocation6 + $0x8] sm:$0xff]
    %v133 = vld [vmem:[#allocation6 + $0x10] sm:$0xff]
    %v134 = vld [vmem:[#allocation6 + $0x18] sm:$0xff]
    %v135 = vld [vmem:[#allocation6 + $0x20] sm:$0xff]
    %v136 = vld [vmem:[#allocation6 + $0x28] sm:$0xff]
    %v137 = vld [vmem:[#allocation6 + $0x30] sm:$0xff]
    %v138 = vld [vmem:[#allocation6 + $0x38] sm:$0xff]
    %v139 = vld [vmem:[#allocation6 + $0x40] sm:$0xff]
    %v140 = vld [vmem:[#allocation6 + $0x48] sm:$0xff]
    %v141 = vld [vmem:[#allocation6 + $0x50] sm:$0xff]
    %v142 = vld [vmem:[#allocation6 + $0x58] sm:$0xff]
    %v143 = vld [vmem:[#allocation6 + $0x60] sm:$0xff]
    %v144 = vld [vmem:[#allocation6 + $0x68] sm:$0xff]
    %v145 = vld [vmem:[#allocation6 + $0x70] sm:$0xff]
    %v146 = vld [vmem:[#allocation6 + $0x78] sm:$0xff]
    %v147 = vld [vmem:[#allocation8] sm:$0x3]
    %v149 = vperm.slane %v147, 0
    %v150 = vperm.slane %v147, 1
    %v169 = vunpack.c.l.b16 %v131
    %v170 = vunpack.c.h.b16 %v131
    %v171 = vunpack.c.l.b16 %v132
    %v172 = vunpack.c.h.b16 %v132
    %v173 = vunpack.c.l.b16 %v133
    %v174 = vunpack.c.h.b16 %v133
    %v175 = vunpack.c.l.b16 %v134
    %v176 = vunpack.c.h.b16 %v134
    %v177 = vunpack.c.l.b16 %v135
    %v178 = vunpack.c.h.b16 %v135
    %v179 = vunpack.c.l.b16 %v136
    %v180 = vunpack.c.h.b16 %v136
    %v181 = vunpack.c.l.b16 %v137
    %v182 = vunpack.c.h.b16 %v137
    %v183 = vunpack.c.l.b16 %v138
    %v184 = vunpack.c.h.b16 %v138
    %v185 = vunpack.c.l.b16 %v139
    %v186 = vunpack.c.h.b16 %v139
    %v187 = vunpack.c.l.b16 %v140
    %v188 = vunpack.c.h.b16 %v140
    %v189 = vunpack.c.l.b16 %v141
    %v190 = vunpack.c.h.b16 %v141
    %v191 = vunpack.c.l.b16 %v142
    %v192 = vunpack.c.h.b16 %v142
    %v193 = vunpack.c.l.b16 %v143
    %v194 = vunpack.c.h.b16 %v143
    %v195 = vunpack.c.l.b16 %v144
    %v196 = vunpack.c.h.b16 %v144
    %v197 = vunpack.c.l.b16 %v145
    %v198 = vunpack.c.h.b16 %v145
    %v199 = vunpack.c.l.b16 %v146
    %v200 = vunpack.c.h.b16 %v146
    %v201 = vpack.c.b16 %v171, %v169
    %v202 = vpack.c.b16 %v172, %v170
    %v203 = vpack.c.b16 %v175, %v173
    %v204 = vpack.c.b16 %v176, %v174
    %v205 = vpack.c.b16 %v179, %v177
    %v206 = vpack.c.b16 %v180, %v178
    %v207 = vpack.c.b16 %v183, %v181
    %v208 = vpack.c.b16 %v184, %v182
    %v209 = vpack.c.b16 %v187, %v185
    %v210 = vpack.c.b16 %v188, %v186
    %v211 = vpack.c.b16 %v191, %v189
    %v212 = vpack.c.b16 %v192, %v190
    %v213 = vpack.c.b16 %v195, %v193
    %v214 = vpack.c.b16 %v196, %v194
    %v215 = vpack.c.b16 %v199, %v197
    %v216 = vpack.c.b16 %v200, %v198
    %233 = vmatpush.bf16.msra.mxu0 %v215
    %234 = vmatpush.bf16.msra.mxu0 %v213
    %235 = vmatpush.bf16.msra.mxu0 %v211
    %236 = vmatpush.bf16.msra.mxu0 %v209
    %237 = vmatpush.bf16.msra.mxu0 %v207
    %238 = vmatpush.bf16.msra.mxu0 %v205
    %239 = vmatpush.bf16.msra.mxu0 %v203
    %240 = vmatpush.bf16.msra.mxu0 %v201
    %241 = vmatmul.bf16.gmra.mxu0 %v130
    %v242 = vpop.f32.mrf.mxu0
    %v243 = vadd.f32 %v149, %v242
    %v244 = vpop.f32.mrf.mxu0
    %245 = vdwg.mxu0
    %246 = vmatpush.bf16.msra.mxu0 %v216
    %247 = vmatpush.bf16.msra.mxu0 %v214
    %248 = vmatpush.bf16.msra.mxu0 %v212
    %249 = vmatpush.bf16.msra.mxu0 %v210
    %250 = vmatpush.bf16.msra.mxu0 %v208
    %251 = vmatpush.bf16.msra.mxu0 %v206
    %252 = vmatpush.bf16.msra.mxu0 %v204
    %253 = vmatpush.bf16.msra.mxu0 %v202
    %254 = vmatmul.bf16.gmra.mxu0 %v130
    %v255 = vpop.f32.mrf.mxu0
    %v256 = vadd.f32 %v150, %v255
    %v257 = vpop.f32.mrf.mxu0
    %258 = vdwg.mxu0
    %v261 = vrot.slane %v256, 6
    %vm262 = vcmask 1041408
    %v263 = vsel %vm262, %v243, %v261
    %265 = vst [vmem:[#allocation2] sm:$0xf] %v263
    %v266 = vld [vmem:[#allocation2] sm:$0xf]
    %268 = vst [vmem:[#allocation1] ss:$4 sm:$0xff] %v266
    %v269 = vld.sshfl [vmem:[#allocation1] sm:$0xff pattern:$0x73625140]
    %v270 = vld.sshfl [vmem:[#allocation1 + $0x8] sm:$0xff pattern:$0x73625140]
    %v273 = vpack.c.bf16 %v270, %v269
    %v274 = vunpack.c.l.bf16 %v273
    %v275 = vunpack.c.h.bf16 %v273
    %v276 = vmax.f32 %v274, 0.0
    %v277 = vmax.f32 %v275, 0.0
    %v278 = vpack.c.bf16 %v276, %v276
    %v279 = vpack.c.bf16 %v277, %v277
    %v280 = vld [vmem:[#allocation9] sm:$0xff]
    %v281 = vld [vmem:[#allocation9 + $0x8] sm:$0xff]
    %v282 = vld [vmem:[#allocation9 + $0x10] sm:$0xff]
    %v283 = vld [vmem:[#allocation9 + $0x18] sm:$0xff]
    %v284 = vld [vmem:[#allocation9 + $0x20] sm:$0xff]
    %v285 = vld [vmem:[#allocation9 + $0x28] sm:$0xff]
    %v286 = vld [vmem:[#allocation9 + $0x30] sm:$0xff]
    %v287 = vld [vmem:[#allocation9 + $0x38] sm:$0xff]
    %v288 = vld [vmem:[#allocation9 + $0x40] sm:$0xff]
    %v289 = vld [vmem:[#allocation9 + $0x48] sm:$0xff]
    %v290 = vld [vmem:[#allocation9 + $0x50] sm:$0xff]
    %v291 = vld [vmem:[#allocation9 + $0x58] sm:$0xff]
    %v292 = vld [vmem:[#allocation9 + $0x60] sm:$0xff]
    %v293 = vld [vmem:[#allocation9 + $0x68] sm:$0xff]
    %v294 = vld [vmem:[#allocation9 + $0x70] sm:$0xff]
    %v295 = vld [vmem:[#allocation9 + $0x78] sm:$0xff]
    %v296 = vld [vmem:[#allocation9 + $0x80] sm:$0xff]
    %v297 = vld [vmem:[#allocation9 + $0x88] sm:$0xff]
    %v298 = vld [vmem:[#allocation9 + $0x90] sm:$0xff]
    %v299 = vld [vmem:[#allocation9 + $0x98] sm:$0xff]
    %v300 = vld [vmem:[#allocation9 + $0xa0] sm:$0xff]
    %v301 = vld [vmem:[#allocation9 + $0xa8] sm:$0xff]
    %v302 = vld [vmem:[#allocation9 + $0xb0] sm:$0xff]
    %v303 = vld [vmem:[#allocation9 + $0xb8] sm:$0xff]
    %v304 = vld [vmem:[#allocation9 + $0xc0] sm:$0xff]
    %v305 = vld [vmem:[#allocation9 + $0xc8] sm:$0xff]
    %v306 = vld [vmem:[#allocation9 + $0xd0] sm:$0xff]
    %v307 = vld [vmem:[#allocation9 + $0xd8] sm:$0xff]
    %v308 = vld [vmem:[#allocation9 + $0xe0] sm:$0xff]
    %v309 = vld [vmem:[#allocation9 + $0xe8] sm:$0xff]
    %v310 = vld [vmem:[#allocation9 + $0xf0] sm:$0xff]
    %v311 = vld [vmem:[#allocation9 + $0xf8] sm:$0xff]
    %v312 = vld [vmem:[#allocation11] sm:$0x3]
    %v314 = vperm.slane %v312, 0
    %v315 = vperm.slane %v312, 1
    %v350 = vunpack.c.l.b16 %v280
    %v351 = vunpack.c.h.b16 %v280
    %v352 = vunpack.c.l.b16 %v281
    %v353 = vunpack.c.h.b16 %v281
    %v354 = vunpack.c.l.b16 %v282
    %v355 = vunpack.c.h.b16 %v282
    %v356 = vunpack.c.l.b16 %v283
    %v357 = vunpack.c.h.b16 %v283
    %v358 = vunpack.c.l.b16 %v284
    %v359 = vunpack.c.h.b16 %v284
    %v360 = vunpack.c.l.b16 %v285
    %v361 = vunpack.c.h.b16 %v285
    %v362 = vunpack.c.l.b16 %v286
    %v363 = vunpack.c.h.b16 %v286
    %v364 = vunpack.c.l.b16 %v287
    %v365 = vunpack.c.h.b16 %v287
    %v366 = vunpack.c.l.b16 %v288
    %v367 = vunpack.c.h.b16 %v288
    %v368 = vunpack.c.l.b16 %v289
    %v369 = vunpack.c.h.b16 %v289
    %v370 = vunpack.c.l.b16 %v290
    %v371 = vunpack.c.h.b16 %v290
    %v372 = vunpack.c.l.b16 %v291
    %v373 = vunpack.c.h.b16 %v291
    %v374 = vunpack.c.l.b16 %v292
    %v375 = vunpack.c.h.b16 %v292
    %v376 = vunpack.c.l.b16 %v293
    %v377 = vunpack.c.h.b16 %v293
    %v378 = vunpack.c.l.b16 %v294
    %v379 = vunpack.c.h.b16 %v294
    %v380 = vunpack.c.l.b16 %v295
    %v381 = vunpack.c.h.b16 %v295
    %v382 = vunpack.c.l.b16 %v296
    %v383 = vunpack.c.h.b16 %v296
    %v384 = vunpack.c.l.b16 %v297
    %v385 = vunpack.c.h.b16 %v297
    %v386 = vunpack.c.l.b16 %v298
    %v387 = vunpack.c.h.b16 %v298
    %v388 = vunpack.c.l.b16 %v299
    %v389 = vunpack.c.h.b16 %v299
    %v390 = vunpack.c.l.b16 %v300
    %v391 = vunpack.c.h.b16 %v300
    %v392 = vunpack.c.l.b16 %v301
    %v393 = vunpack.c.h.b16 %v301
    %v394 = vunpack.c.l.b16 %v302
    %v395 = vunpack.c.h.b16 %v302
    %v396 = vunpack.c.l.b16 %v303
    %v397 = vunpack.c.h.b16 %v303
    %v398 = vunpack.c.l.b16 %v304
    %v399 = vunpack.c.h.b16 %v304
    %v400 = vunpack.c.l.b16 %v305
    %v401 = vunpack.c.h.b16 %v305
    %v402 = vunpack.c.l.b16 %v306
    %v403 = vunpack.c.h.b16 %v306
    %v404 = vunpack.c.l.b16 %v307
    %v405 = vunpack.c.h.b16 %v307
    %v406 = vunpack.c.l.b16 %v308
    %v407 = vunpack.c.h.b16 %v308
    %v408 = vunpack.c.l.b16 %v309
    %v409 = vunpack.c.h.b16 %v309
    %v410 = vunpack.c.l.b16 %v310
    %v411 = vunpack.c.h.b16 %v310
    %v412 = vunpack.c.l.b16 %v311
    %v413 = vunpack.c.h.b16 %v311
    %v414 = vpack.c.b16 %v352, %v350
    %v415 = vpack.c.b16 %v353, %v351
    %v416 = vpack.c.b16 %v356, %v354
    %v417 = vpack.c.b16 %v357, %v355
    %v418 = vpack.c.b16 %v360, %v358
    %v419 = vpack.c.b16 %v361, %v359
    %v420 = vpack.c.b16 %v364, %v362
    %v421 = vpack.c.b16 %v365, %v363
    %v422 = vpack.c.b16 %v368, %v366
    %v423 = vpack.c.b16 %v369, %v367
    %v424 = vpack.c.b16 %v372, %v370
    %v425 = vpack.c.b16 %v373, %v371
    %v426 = vpack.c.b16 %v376, %v374
    %v427 = vpack.c.b16 %v377, %v375
    %v428 = vpack.c.b16 %v380, %v378
    %v429 = vpack.c.b16 %v381, %v379
    %v430 = vpack.c.b16 %v384, %v382
    %v431 = vpack.c.b16 %v385, %v383
    %v432 = vpack.c.b16 %v388, %v386
    %v433 = vpack.c.b16 %v389, %v387
    %v434 = vpack.c.b16 %v392, %v390
    %v435 = vpack.c.b16 %v393, %v391
    %v436 = vpack.c.b16 %v396, %v394
    %v437 = vpack.c.b16 %v397, %v395
    %v438 = vpack.c.b16 %v400, %v398
    %v439 = vpack.c.b16 %v401, %v399
    %v440 = vpack.c.b16 %v404, %v402
    %v441 = vpack.c.b16 %v405, %v403
    %v442 = vpack.c.b16 %v408, %v406
    %v443 = vpack.c.b16 %v409, %v407
    %v444 = vpack.c.b16 %v412, %v410
    %v445 = vpack.c.b16 %v413, %v411
    %478 = vmatpush.bf16.msra.mxu0 %v428
    %479 = vmatpush.bf16.msra.mxu0 %v426
    %480 = vmatpush.bf16.msra.mxu0 %v424
    %481 = vmatpush.bf16.msra.mxu0 %v422
    %482 = vmatpush.bf16.msra.mxu0 %v420
    %483 = vmatpush.bf16.msra.mxu0 %v418
    %484 = vmatpush.bf16.msra.mxu0 %v416
    %485 = vmatpush.bf16.msra.mxu0 %v414
    %486 = vmatmul.bf16.gmra.mxu0 %v278
    %v487 = vpop.f32.mrf.mxu0
    %v488 = vadd.f32 %v314, %v487
    %v489 = vpop.f32.mrf.mxu0
    %490 = vdwg.mxu0
    %491 = vmatpush.bf16.msra.mxu0 %v444
    %492 = vmatpush.bf16.msra.mxu0 %v442
    %493 = vmatpush.bf16.msra.mxu0 %v440
    %494 = vmatpush.bf16.msra.mxu0 %v438
    %495 = vmatpush.bf16.msra.mxu0 %v436
    %496 = vmatpush.bf16.msra.mxu0 %v434
    %497 = vmatpush.bf16.msra.mxu0 %v432
    %498 = vmatpush.bf16.msra.mxu0 %v430
    %499 = vmatmul.bf16.gmra.mxu0 %v279
    %v500 = vpop.f32.mrf.mxu0
    %v501 = vadd.f32 %v488, %v500
    %v502 = vpop.f32.mrf.mxu0
    %503 = vdwg.mxu0
    %504 = vmatpush.bf16.msra.mxu0 %v429
    %505 = vmatpush.bf16.msra.mxu0 %v427
    %506 = vmatpush.bf16.msra.mxu0 %v425
    %507 = vmatpush.bf16.msra.mxu0 %v423
    %508 = vmatpush.bf16.msra.mxu0 %v421
    %509 = vmatpush.bf16.msra.mxu0 %v419
    %510 = vmatpush.bf16.msra.mxu0 %v417
    %511 = vmatpush.bf16.msra.mxu0 %v415
    %512 = vmatmul.bf16.gmra.mxu0 %v278
    %v513 = vpop.f32.mrf.mxu0
    %v514 = vadd.f32 %v315, %v513
    %v515 = vpop.f32.mrf.mxu0
    %516 = vdwg.mxu0
    %517 = vmatpush.bf16.msra.mxu0 %v445
    %518 = vmatpush.bf16.msra.mxu0 %v443
    %519 = vmatpush.bf16.msra.mxu0 %v441
    %520 = vmatpush.bf16.msra.mxu0 %v439
    %521 = vmatpush.bf16.msra.mxu0 %v437
    %522 = vmatpush.bf16.msra.mxu0 %v435
    %523 = vmatpush.bf16.msra.mxu0 %v433
    %524 = vmatpush.bf16.msra.mxu0 %v431
    %525 = vmatmul.bf16.gmra.mxu0 %v279
    %v526 = vpop.f32.mrf.mxu0
    %v527 = vadd.f32 %v514, %v526
    %v528 = vpop.f32.mrf.mxu0
    %529 = vdwg.mxu0
    %v530 = vpack.c.bf16 %v527, %v501
    %v531 = vunpack.c.l.bf16 %v530
    %v532 = vunpack.c.h.bf16 %v530
    %v533 = vmax.f32 %v531, 0.0
    %v534 = vmax.f32 %v532, 0.0
    %v535 = vpack.c.bf16 %v533, %v533
    %v536 = vpack.c.bf16 %v534, %v534
    %s537 = scalar_lea.vmem [#allocation9], 256
    %v538 = vld [vmem:[%s537] sm:$0xff]
    %v539 = vld [vmem:[%s537 + $0x8] sm:$0xff]
    %v540 = vld [vmem:[%s537 + $0x10] sm:$0xff]
    %v541 = vld [vmem:[%s537 + $0x18] sm:$0xff]
    %v542 = vld [vmem:[%s537 + $0x20] sm:$0xff]
    %v543 = vld [vmem:[%s537 + $0x28] sm:$0xff]
    %v544 = vld [vmem:[%s537 + $0x30] sm:$0xff]
    %v545 = vld [vmem:[%s537 + $0x38] sm:$0xff]
    %v546 = vld [vmem:[%s537 + $0x40] sm:$0xff]
    %v547 = vld [vmem:[%s537 + $0x48] sm:$0xff]
    %v548 = vld [vmem:[%s537 + $0x50] sm:$0xff]
    %v549 = vld [vmem:[%s537 + $0x58] sm:$0xff]
    %v550 = vld [vmem:[%s537 + $0x60] sm:$0xff]
    %v551 = vld [vmem:[%s537 + $0x68] sm:$0xff]
    %v552 = vld [vmem:[%s537 + $0x70] sm:$0xff]
    %v553 = vld [vmem:[%s537 + $0x78] sm:$0xff]
    %v554 = vld [vmem:[%s537 + $0x80] sm:$0xff]
    %v555 = vld [vmem:[%s537 + $0x88] sm:$0xff]
    %v556 = vld [vmem:[%s537 + $0x90] sm:$0xff]
    %v557 = vld [vmem:[%s537 + $0x98] sm:$0xff]
    %v558 = vld [vmem:[%s537 + $0xa0] sm:$0xff]
    %v559 = vld [vmem:[%s537 + $0xa8] sm:$0xff]
    %v560 = vld [vmem:[%s537 + $0xb0] sm:$0xff]
    %v561 = vld [vmem:[%s537 + $0xb8] sm:$0xff]
    %v562 = vld [vmem:[%s537 + $0xc0] sm:$0xff]
    %v563 = vld [vmem:[%s537 + $0xc8] sm:$0xff]
    %v564 = vld [vmem:[%s537 + $0xd0] sm:$0xff]
    %v565 = vld [vmem:[%s537 + $0xd8] sm:$0xff]
    %v566 = vld [vmem:[%s537 + $0xe0] sm:$0xff]
    %v567 = vld [vmem:[%s537 + $0xe8] sm:$0xff]
    %v568 = vld [vmem:[%s537 + $0xf0] sm:$0xff]
    %v569 = vld [vmem:[%s537 + $0xf8] sm:$0xff]
    %s570 = scalar_lea.vmem [#allocation11], 2
    %v571 = vld [vmem:[%s570] sm:$0x3]
    %v573 = vperm.slane %v571, 0
    %v574 = vperm.slane %v571, 1
    %v609 = vunpack.c.l.b16 %v538
    %v610 = vunpack.c.h.b16 %v538
    %v611 = vunpack.c.l.b16 %v539
    %v612 = vunpack.c.h.b16 %v539
    %v613 = vunpack.c.l.b16 %v540
    %v614 = vunpack.c.h.b16 %v540
    %v615 = vunpack.c.l.b16 %v541
    %v616 = vunpack.c.h.b16 %v541
    %v617 = vunpack.c.l.b16 %v542
    %v618 = vunpack.c.h.b16 %v542
    %v619 = vunpack.c.l.b16 %v543
    %v620 = vunpack.c.h.b16 %v543
    %v621 = vunpack.c.l.b16 %v544
    %v622 = vunpack.c.h.b16 %v544
    %v623 = vunpack.c.l.b16 %v545
    %v624 = vunpack.c.h.b16 %v545
    %v625 = vunpack.c.l.b16 %v546
    %v626 = vunpack.c.h.b16 %v546
    %v627 = vunpack.c.l.b16 %v547
    %v628 = vunpack.c.h.b16 %v547
    %v629 = vunpack.c.l.b16 %v548
    %v630 = vunpack.c.h.b16 %v548
    %v631 = vunpack.c.l.b16 %v549
    %v632 = vunpack.c.h.b16 %v549
    %v633 = vunpack.c.l.b16 %v550
    %v634 = vunpack.c.h.b16 %v550
    %v635 = vunpack.c.l.b16 %v551
    %v636 = vunpack.c.h.b16 %v551
    %v637 = vunpack.c.l.b16 %v552
    %v638 = vunpack.c.h.b16 %v552
    %v639 = vunpack.c.l.b16 %v553
    %v640 = vunpack.c.h.b16 %v553
    %v641 = vunpack.c.l.b16 %v554
    %v642 = vunpack.c.h.b16 %v554
    %v643 = vunpack.c.l.b16 %v555
    %v644 = vunpack.c.h.b16 %v555
    %v645 = vunpack.c.l.b16 %v556
    %v646 = vunpack.c.h.b16 %v556
    %v647 = vunpack.c.l.b16 %v557
    %v648 = vunpack.c.h.b16 %v557
    %v649 = vunpack.c.l.b16 %v558
    %v650 = vunpack.c.h.b16 %v558
    %v651 = vunpack.c.l.b16 %v559
    %v652 = vunpack.c.h.b16 %v559
    %v653 = vunpack.c.l.b16 %v560
    %v654 = vunpack.c.h.b16 %v560
    %v655 = vunpack.c.l.b16 %v561
    %v656 = vunpack.c.h.b16 %v561
    %v657 = vunpack.c.l.b16 %v562
    %v658 = vunpack.c.h.b16 %v562
    %v659 = vunpack.c.l.b16 %v563
    %v660 = vunpack.c.h.b16 %v563
    %v661 = vunpack.c.l.b16 %v564
    %v662 = vunpack.c.h.b16 %v564
    %v663 = vunpack.c.l.b16 %v565
    %v664 = vunpack.c.h.b16 %v565
    %v665 = vunpack.c.l.b16 %v566
    %v666 = vunpack.c.h.b16 %v566
    %v667 = vunpack.c.l.b16 %v567
    %v668 = vunpack.c.h.b16 %v567
    %v669 = vunpack.c.l.b16 %v568
    %v670 = vunpack.c.h.b16 %v568
    %v671 = vunpack.c.l.b16 %v569
    %v672 = vunpack.c.h.b16 %v569
    %v673 = vpack.c.b16 %v611, %v609
    %v674 = vpack.c.b16 %v612, %v610
    %v675 = vpack.c.b16 %v615, %v613
    %v676 = vpack.c.b16 %v616, %v614
    %v677 = vpack.c.b16 %v619, %v617
    %v678 = vpack.c.b16 %v620, %v618
    %v679 = vpack.c.b16 %v623, %v621
    %v680 = vpack.c.b16 %v624, %v622
    %v681 = vpack.c.b16 %v627, %v625
    %v682 = vpack.c.b16 %v628, %v626
    %v683 = vpack.c.b16 %v631, %v629
    %v684 = vpack.c.b16 %v632, %v630
    %v685 = vpack.c.b16 %v635, %v633
    %v686 = vpack.c.b16 %v636, %v634
    %v687 = vpack.c.b16 %v639, %v637
    %v688 = vpack.c.b16 %v640, %v638
    %v689 = vpack.c.b16 %v643, %v641
    %v690 = vpack.c.b16 %v644, %v642
    %v691 = vpack.c.b16 %v647, %v645
    %v692 = vpack.c.b16 %v648, %v646
    %v693 = vpack.c.b16 %v651, %v649
    %v694 = vpack.c.b16 %v652, %v650
    %v695 = vpack.c.b16 %v655, %v653
    %v696 = vpack.c.b16 %v656, %v654
    %v697 = vpack.c.b16 %v659, %v657
    %v698 = vpack.c.b16 %v660, %v658
    %v699 = vpack.c.b16 %v663, %v661
    %v700 = vpack.c.b16 %v664, %v662
    %v701 = vpack.c.b16 %v667, %v665
    %v702 = vpack.c.b16 %v668, %v666
    %v703 = vpack.c.b16 %v671, %v669
    %v704 = vpack.c.b16 %v672, %v670
    %737 = vmatpush.bf16.msra.mxu0 %v687
    %738 = vmatpush.bf16.msra.mxu0 %v685
    %739 = vmatpush.bf16.msra.mxu0 %v683
    %740 = vmatpush.bf16.msra.mxu0 %v681
    %741 = vmatpush.bf16.msra.mxu0 %v679
    %742 = vmatpush.bf16.msra.mxu0 %v677
    %743 = vmatpush.bf16.msra.mxu0 %v675
    %744 = vmatpush.bf16.msra.mxu0 %v673
    %745 = vmatmul.bf16.gmra.mxu0 %v535
    %v746 = vpop.f32.mrf.mxu0
    %v747 = vadd.f32 %v573, %v746
    %v748 = vpop.f32.mrf.mxu0
    %749 = vdwg.mxu0
    %750 = vmatpush.bf16.msra.mxu0 %v703
    %751 = vmatpush.bf16.msra.mxu0 %v701
    %752 = vmatpush.bf16.msra.mxu0 %v699
    %753 = vmatpush.bf16.msra.mxu0 %v697
    %754 = vmatpush.bf16.msra.mxu0 %v695
    %755 = vmatpush.bf16.msra.mxu0 %v693
    %756 = vmatpush.bf16.msra.mxu0 %v691
    %757 = vmatpush.bf16.msra.mxu0 %v689
    %758 = vmatmul.bf16.gmra.mxu0 %v536
    %v759 = vpop.f32.mrf.mxu0
    %v760 = vadd.f32 %v747, %v759
    %v761 = vpop.f32.mrf.mxu0
    %762 = vdwg.mxu0
    %763 = vmatpush.bf16.msra.mxu0 %v688
    %764 = vmatpush.bf16.msra.mxu0 %v686
    %765 = vmatpush.bf16.msra.mxu0 %v684
    %766 = vmatpush.bf16.msra.mxu0 %v682
    %767 = vmatpush.bf16.msra.mxu0 %v680
    %768 = vmatpush.bf16.msra.mxu0 %v678
    %769 = vmatpush.bf16.msra.mxu0 %v676
    %770 = vmatpush.bf16.msra.mxu0 %v674
    %771 = vmatmul.bf16.gmra.mxu0 %v535
    %v772 = vpop.f32.mrf.mxu0
    %v773 = vadd.f32 %v574, %v772
    %v774 = vpop.f32.mrf.mxu0
    %775 = vdwg.mxu0
    %776 = vmatpush.bf16.msra.mxu0 %v704
    %777 = vmatpush.bf16.msra.mxu0 %v702
    %778 = vmatpush.bf16.msra.mxu0 %v700
    %779 = vmatpush.bf16.msra.mxu0 %v698
    %780 = vmatpush.bf16.msra.mxu0 %v696
    %781 = vmatpush.bf16.msra.mxu0 %v694
    %782 = vmatpush.bf16.msra.mxu0 %v692
    %783 = vmatpush.bf16.msra.mxu0 %v690
    %784 = vmatmul.bf16.gmra.mxu0 %v536
    %v785 = vpop.f32.mrf.mxu0
    %v786 = vadd.f32 %v773, %v785
    %v787 = vpop.f32.mrf.mxu0
    %788 = vdwg.mxu0
    %v789 = vmul.f32 %v760, 0.3
    %v790 = vmul.f32 %v786, 0.3
    %v793 = vrot.slane %v790, 6
    %v794 = vsel %vm262, %v789, %v793
    %v796 = vadd.f32 %v266, %v794
    %797 = vst [vmem:[#allocation2] sm:$0xf] %v796
    %v798 = vld [vmem:[#allocation2] sm:$0xf]
    %800 = vst [vmem:[#allocation1] ss:$4 sm:$0xff] %v798
    %v801 = vld.sshfl [vmem:[#allocation1] sm:$0xff pattern:$0x73625140]
    %v802 = vld.sshfl [vmem:[#allocation1 + $0x8] sm:$0xff pattern:$0x73625140]
    %v805 = vpack.c.bf16 %v802, %v801
    %v806 = vunpack.c.l.bf16 %v805
    %v807 = vunpack.c.h.bf16 %v805
    %v808 = vmax.f32 %v806, 0.0
    %v809 = vmax.f32 %v807, 0.0
    %v810 = vpack.c.bf16 %v808, %v808
    %v811 = vpack.c.bf16 %v809, %v809
    %s812 = scalar_lea.vmem [#allocation9], 512
    %v813 = vld [vmem:[%s812] sm:$0xff]
    %v814 = vld [vmem:[%s812 + $0x8] sm:$0xff]
    %v815 = vld [vmem:[%s812 + $0x10] sm:$0xff]
    %v816 = vld [vmem:[%s812 + $0x18] sm:$0xff]
    %v817 = vld [vmem:[%s812 + $0x20] sm:$0xff]
    %v818 = vld [vmem:[%s812 + $0x28] sm:$0xff]
    %v819 = vld [vmem:[%s812 + $0x30] sm:$0xff]
    %v820 = vld [vmem:[%s812 + $0x38] sm:$0xff]
    %v821 = vld [vmem:[%s812 + $0x40] sm:$0xff]
    %v822 = vld [vmem:[%s812 + $0x48] sm:$0xff]
    %v823 = vld [vmem:[%s812 + $0x50] sm:$0xff]
    %v824 = vld [vmem:[%s812 + $0x58] sm:$0xff]
    %v825 = vld [vmem:[%s812 + $0x60] sm:$0xff]
    %v826 = vld [vmem:[%s812 + $0x68] sm:$0xff]
    %v827 = vld [vmem:[%s812 + $0x70] sm:$0xff]
    %v828 = vld [vmem:[%s812 + $0x78] sm:$0xff]
    %v829 = vld [vmem:[%s812 + $0x80] sm:$0xff]
    %v830 = vld [vmem:[%s812 + $0x88] sm:$0xff]
    %v831 = vld [vmem:[%s812 + $0x90] sm:$0xff]
    %v832 = vld [vmem:[%s812 + $0x98] sm:$0xff]
    %v833 = vld [vmem:[%s812 + $0xa0] sm:$0xff]
    %v834 = vld [vmem:[%s812 + $0xa8] sm:$0xff]
    %v835 = vld [vmem:[%s812 + $0xb0] sm:$0xff]
    %v836 = vld [vmem:[%s812 + $0xb8] sm:$0xff]
    %v837 = vld [vmem:[%s812 + $0xc0] sm:$0xff]
    %v838 = vld [vmem:[%s812 + $0xc8] sm:$0xff]
    %v839 = vld [vmem:[%s812 + $0xd0] sm:$0xff]
    %v840 = vld [vmem:[%s812 + $0xd8] sm:$0xff]
    %v841 = vld [vmem:[%s812 + $0xe0] sm:$0xff]
    %v842 = vld [vmem:[%s812 + $0xe8] sm:$0xff]
    %v843 = vld [vmem:[%s812 + $0xf0] sm:$0xff]
    %v844 = vld [vmem:[%s812 + $0xf8] sm:$0xff]
    %s845 = scalar_lea.vmem [#allocation11], 4
    %v846 = vld [vmem:[%s845] sm:$0x3]
    %v848 = vperm.slane %v846, 0
    %v849 = vperm.slane %v846, 1
    %v884 = vunpack.c.l.b16 %v813
    %v885 = vunpack.c.h.b16 %v813
    %v886 = vunpack.c.l.b16 %v814
    %v887 = vunpack.c.h.b16 %v814
    %v888 = vunpack.c.l.b16 %v815
    %v889 = vunpack.c.h.b16 %v815
    %v890 = vunpack.c.l.b16 %v816
    %v891 = vunpack.c.h.b16 %v816
    %v892 = vunpack.c.l.b16 %v817
    %v893 = vunpack.c.h.b16 %v817
    %v894 = vunpack.c.l.b16 %v818
    %v895 = vunpack.c.h.b16 %v818
    %v896 = vunpack.c.l.b16 %v819
    %v897 = vunpack.c.h.b16 %v819
    %v898 = vunpack.c.l.b16 %v820
    %v899 = vunpack.c.h.b16 %v820
    %v900 = vunpack.c.l.b16 %v821
    %v901 = vunpack.c.h.b16 %v821
    %v902 = vunpack.c.l.b16 %v822
    %v903 = vunpack.c.h.b16 %v822
    %v904 = vunpack.c.l.b16 %v823
    %v905 = vunpack.c.h.b16 %v823
    %v906 = vunpack.c.l.b16 %v824
    %v907 = vunpack.c.h.b16 %v824
    %v908 = vunpack.c.l.b16 %v825
    %v909 = vunpack.c.h.b16 %v825
    %v910 = vunpack.c.l.b16 %v826
    %v911 = vunpack.c.h.b16 %v826
    %v912 = vunpack.c.l.b16 %v827
    %v913 = vunpack.c.h.b16 %v827
    %v914 = vunpack.c.l.b16 %v828
    %v915 = vunpack.c.h.b16 %v828
    %v916 = vunpack.c.l.b16 %v829
    %v917 = vunpack.c.h.b16 %v829
    %v918 = vunpack.c.l.b16 %v830
    %v919 = vunpack.c.h.b16 %v830
    %v920 = vunpack.c.l.b16 %v831
    %v921 = vunpack.c.h.b16 %v831
    %v922 = vunpack.c.l.b16 %v832
    %v923 = vunpack.c.h.b16 %v832
    %v924 = vunpack.c.l.b16 %v833
    %v925 = vunpack.c.h.b16 %v833
    %v926 = vunpack.c.l.b16 %v834
    %v927 = vunpack.c.h.b16 %v834
    %v928 = vunpack.c.l.b16 %v835
    %v929 = vunpack.c.h.b16 %v835
    %v930 = vunpack.c.l.b16 %v836
    %v931 = vunpack.c.h.b16 %v836
    %v932 = vunpack.c.l.b16 %v837
    %v933 = vunpack.c.h.b16 %v837
    %v934 = vunpack.c.l.b16 %v838
    %v935 = vunpack.c.h.b16 %v838
    %v936 = vunpack.c.l.b16 %v839
    %v937 = vunpack.c.h.b16 %v839
    %v938 = vunpack.c.l.b16 %v840
    %v939 = vunpack.c.h.b16 %v840
    %v940 = vunpack.c.l.b16 %v841
    %v941 = vunpack.c.h.b16 %v841
    %v942 = vunpack.c.l.b16 %v842
    %v943 = vunpack.c.h.b16 %v842
    %v944 = vunpack.c.l.b16 %v843
    %v945 = vunpack.c.h.b16 %v843
    %v946 = vunpack.c.l.b16 %v844
    %v947 = vunpack.c.h.b16 %v844
    %v948 = vpack.c.b16 %v886, %v884
    %v949 = vpack.c.b16 %v887, %v885
    %v950 = vpack.c.b16 %v890, %v888
    %v951 = vpack.c.b16 %v891, %v889
    %v952 = vpack.c.b16 %v894, %v892
    %v953 = vpack.c.b16 %v895, %v893
    %v954 = vpack.c.b16 %v898, %v896
    %v955 = vpack.c.b16 %v899, %v897
    %v956 = vpack.c.b16 %v902, %v900
    %v957 = vpack.c.b16 %v903, %v901
    %v958 = vpack.c.b16 %v906, %v904
    %v959 = vpack.c.b16 %v907, %v905
    %v960 = vpack.c.b16 %v910, %v908
    %v961 = vpack.c.b16 %v911, %v909
    %v962 = vpack.c.b16 %v914, %v912
    %v963 = vpack.c.b16 %v915, %v913
    %v964 = vpack.c.b16 %v918, %v916
    %v965 = vpack.c.b16 %v919, %v917
    %v966 = vpack.c.b16 %v922, %v920
    %v967 = vpack.c.b16 %v923, %v921
    %v968 = vpack.c.b16 %v926, %v924
    %v969 = vpack.c.b16 %v927, %v925
    %v970 = vpack.c.b16 %v930, %v928
    %v971 = vpack.c.b16 %v931, %v929
    %v972 = vpack.c.b16 %v934, %v932
    %v973 = vpack.c.b16 %v935, %v933
    %v974 = vpack.c.b16 %v938, %v936
    %v975 = vpack.c.b16 %v939, %v937
    %v976 = vpack.c.b16 %v942, %v940
    %v977 = vpack.c.b16 %v943, %v941
    %v978 = vpack.c.b16 %v946, %v944
    %v979 = vpack.c.b16 %v947, %v945
    %1012 = vmatpush.bf16.msra.mxu0 %v962
    %1013 = vmatpush.bf16.msra.mxu0 %v960
    %1014 = vmatpush.bf16.msra.mxu0 %v958
    %1015 = vmatpush.bf16.msra.mxu0 %v956
    %1016 = vmatpush.bf16.msra.mxu0 %v954
    %1017 = vmatpush.bf16.msra.mxu0 %v952
    %1018 = vmatpush.bf16.msra.mxu0 %v950
    %1019 = vmatpush.bf16.msra.mxu0 %v948
    %1020 = vmatmul.bf16.gmra.mxu0 %v810
    %v1021 = vpop.f32.mrf.mxu0
    %v1022 = vadd.f32 %v848, %v1021
    %v1023 = vpop.f32.mrf.mxu0
    %1024 = vdwg.mxu0
    %1025 = vmatpush.bf16.msra.mxu0 %v978
    %1026 = vmatpush.bf16.msra.mxu0 %v976
    %1027 = vmatpush.bf16.msra.mxu0 %v974
    %1028 = vmatpush.bf16.msra.mxu0 %v972
    %1029 = vmatpush.bf16.msra.mxu0 %v970
    %1030 = vmatpush.bf16.msra.mxu0 %v968
    %1031 = vmatpush.bf16.msra.mxu0 %v966
    %1032 = vmatpush.bf16.msra.mxu0 %v964
    %1033 = vmatmul.bf16.gmra.mxu0 %v811
    %v1034 = vpop.f32.mrf.mxu0
    %v1035 = vadd.f32 %v1022, %v1034
    %v1036 = vpop.f32.mrf.mxu0
    %1037 = vdwg.mxu0
    %1038 = vmatpush.bf16.msra.mxu0 %v963
    %1039 = vmatpush.bf16.msra.mxu0 %v961
    %1040 = vmatpush.bf16.msra.mxu0 %v959
    %1041 = vmatpush.bf16.msra.mxu0 %v957
    %1042 = vmatpush.bf16.msra.mxu0 %v955
    %1043 = vmatpush.bf16.msra.mxu0 %v953
    %1044 = vmatpush.bf16.msra.mxu0 %v951
    %1045 = vmatpush.bf16.msra.mxu0 %v949
    %1046 = vmatmul.bf16.gmra.mxu0 %v810
    %v1047 = vpop.f32.mrf.mxu0
    %v1048 = vadd.f32 %v849, %v1047
    %v1049 = vpop.f32.mrf.mxu0
    %1050 = vdwg.mxu0
    %1051 = vmatpush.bf16.msra.mxu0 %v979
    %1052 = vmatpush.bf16.msra.mxu0 %v977
    %1053 = vmatpush.bf16.msra.mxu0 %v975
    %1054 = vmatpush.bf16.msra.mxu0 %v973
    %1055 = vmatpush.bf16.msra.mxu0 %v971
    %1056 = vmatpush.bf16.msra.mxu0 %v969
    %1057 = vmatpush.bf16.msra.mxu0 %v967
    %1058 = vmatpush.bf16.msra.mxu0 %v965
    %1059 = vmatmul.bf16.gmra.mxu0 %v811
    %v1060 = vpop.f32.mrf.mxu0
    %v1061 = vadd.f32 %v1048, %v1060
    %v1062 = vpop.f32.mrf.mxu0
    %1063 = vdwg.mxu0
    %v1064 = vpack.c.bf16 %v1061, %v1035
    %v1065 = vunpack.c.l.bf16 %v1064
    %v1066 = vunpack.c.h.bf16 %v1064
    %v1067 = vmax.f32 %v1065, 0.0
    %v1068 = vmax.f32 %v1066, 0.0
    %v1069 = vpack.c.bf16 %v1067, %v1067
    %v1070 = vpack.c.bf16 %v1068, %v1068
    %s1071 = scalar_lea.vmem [#allocation9], 768
    %v1072 = vld [vmem:[%s1071] sm:$0xff]
    %v1073 = vld [vmem:[%s1071 + $0x8] sm:$0xff]
    %v1074 = vld [vmem:[%s1071 + $0x10] sm:$0xff]
    %v1075 = vld [vmem:[%s1071 + $0x18] sm:$0xff]
    %v1076 = vld [vmem:[%s1071 + $0x20] sm:$0xff]
    %v1077 = vld [vmem:[%s1071 + $0x28] sm:$0xff]
    %v1078 = vld [vmem:[%s1071 + $0x30] sm:$0xff]
    %v1079 = vld [vmem:[%s1071 + $0x38] sm:$0xff]
    %v1080 = vld [vmem:[%s1071 + $0x40] sm:$0xff]
    %v1081 = vld [vmem:[%s1071 + $0x48] sm:$0xff]
    %v1082 = vld [vmem:[%s1071 + $0x50] sm:$0xff]
    %v1083 = vld [vmem:[%s1071 + $0x58] sm:$0xff]
    %v1084 = vld [vmem:[%s1071 + $0x60] sm:$0xff]
    %v1085 = vld [vmem:[%s1071 + $0x68] sm:$0xff]
    %v1086 = vld [vmem:[%s1071 + $0x70] sm:$0xff]
    %v1087 = vld [vmem:[%s1071 + $0x78] sm:$0xff]
    %v1088 = vld [vmem:[%s1071 + $0x80] sm:$0xff]
    %v1089 = vld [vmem:[%s1071 + $0x88] sm:$0xff]
    %v1090 = vld [vmem:[%s1071 + $0x90] sm:$0xff]
    %v1091 = vld [vmem:[%s1071 + $0x98] sm:$0xff]
    %v1092 = vld [vmem:[%s1071 + $0xa0] sm:$0xff]
    %v1093 = vld [vmem:[%s1071 + $0xa8] sm:$0xff]
    %v1094 = vld [vmem:[%s1071 + $0xb0] sm:$0xff]
    %v1095 = vld [vmem:[%s1071 + $0xb8] sm:$0xff]
    %v1096 = vld [vmem:[%s1071 + $0xc0] sm:$0xff]
    %v1097 = vld [vmem:[%s1071 + $0xc8] sm:$0xff]
    %v1098 = vld [vmem:[%s1071 + $0xd0] sm:$0xff]
    %v1099 = vld [vmem:[%s1071 + $0xd8] sm:$0xff]
    %v1100 = vld [vmem:[%s1071 + $0xe0] sm:$0xff]
    %v1101 = vld [vmem:[%s1071 + $0xe8] sm:$0xff]
    %v1102 = vld [vmem:[%s1071 + $0xf0] sm:$0xff]
    %v1103 = vld [vmem:[%s1071 + $0xf8] sm:$0xff]
    %s1104 = scalar_lea.vmem [#allocation11], 6
    %v1105 = vld [vmem:[%s1104] sm:$0x3]
    %v1107 = vperm.slane %v1105, 0
    %v1108 = vperm.slane %v1105, 1
    %v1143 = vunpack.c.l.b16 %v1072
    %v1144 = vunpack.c.h.b16 %v1072
    %v1145 = vunpack.c.l.b16 %v1073
    %v1146 = vunpack.c.h.b16 %v1073
    %v1147 = vunpack.c.l.b16 %v1074
    %v1148 = vunpack.c.h.b16 %v1074
    %v1149 = vunpack.c.l.b16 %v1075
    %v1150 = vunpack.c.h.b16 %v1075
    %v1151 = vunpack.c.l.b16 %v1076
    %v1152 = vunpack.c.h.b16 %v1076
    %v1153 = vunpack.c.l.b16 %v1077
    %v1154 = vunpack.c.h.b16 %v1077
    %v1155 = vunpack.c.l.b16 %v1078
    %v1156 = vunpack.c.h.b16 %v1078
    %v1157 = vunpack.c.l.b16 %v1079
    %v1158 = vunpack.c.h.b16 %v1079
    %v1159 = vunpack.c.l.b16 %v1080
    %v1160 = vunpack.c.h.b16 %v1080
    %v1161 = vunpack.c.l.b16 %v1081
    %v1162 = vunpack.c.h.b16 %v1081
    %v1163 = vunpack.c.l.b16 %v1082
    %v1164 = vunpack.c.h.b16 %v1082
    %v1165 = vunpack.c.l.b16 %v1083
    %v1166 = vunpack.c.h.b16 %v1083
    %v1167 = vunpack.c.l.b16 %v1084
    %v1168 = vunpack.c.h.b16 %v1084
    %v1169 = vunpack.c.l.b16 %v1085
    %v1170 = vunpack.c.h.b16 %v1085
    %v1171 = vunpack.c.l.b16 %v1086
    %v1172 = vunpack.c.h.b16 %v1086
    %v1173 = vunpack.c.l.b16 %v1087
    %v1174 = vunpack.c.h.b16 %v1087
    %v1175 = vunpack.c.l.b16 %v1088
    %v1176 = vunpack.c.h.b16 %v1088
    %v1177 = vunpack.c.l.b16 %v1089
    %v1178 = vunpack.c.h.b16 %v1089
    %v1179 = vunpack.c.l.b16 %v1090
    %v1180 = vunpack.c.h.b16 %v1090
    %v1181 = vunpack.c.l.b16 %v1091
    %v1182 = vunpack.c.h.b16 %v1091
    %v1183 = vunpack.c.l.b16 %v1092
    %v1184 = vunpack.c.h.b16 %v1092
    %v1185 = vunpack.c.l.b16 %v1093
    %v1186 = vunpack.c.h.b16 %v1093
    %v1187 = vunpack.c.l.b16 %v1094
    %v1188 = vunpack.c.h.b16 %v1094
    %v1189 = vunpack.c.l.b16 %v1095
    %v1190 = vunpack.c.h.b16 %v1095
    %v1191 = vunpack.c.l.b16 %v1096
    %v1192 = vunpack.c.h.b16 %v1096
    %v1193 = vunpack.c.l.b16 %v1097
    %v1194 = vunpack.c.h.b16 %v1097
    %v1195 = vunpack.c.l.b16 %v1098
    %v1196 = vunpack.c.h.b16 %v1098
    %v1197 = vunpack.c.l.b16 %v1099
    %v1198 = vunpack.c.h.b16 %v1099
    %v1199 = vunpack.c.l.b16 %v1100
    %v1200 = vunpack.c.h.b16 %v1100
    %v1201 = vunpack.c.l.b16 %v1101
    %v1202 = vunpack.c.h.b16 %v1101
    %v1203 = vunpack.c.l.b16 %v1102
    %v1204 = vunpack.c.h.b16 %v1102
    %v1205 = vunpack.c.l.b16 %v1103
    %v1206 = vunpack.c.h.b16 %v1103
    %v1207 = vpack.c.b16 %v1145, %v1143
    %v1208 = vpack.c.b16 %v1146, %v1144
    %v1209 = vpack.c.b16 %v1149, %v1147
    %v1210 = vpack.c.b16 %v1150, %v1148
    %v1211 = vpack.c.b16 %v1153, %v1151
    %v1212 = vpack.c.b16 %v1154, %v1152
    %v1213 = vpack.c.b16 %v1157, %v1155
    %v1214 = vpack.c.b16 %v1158, %v1156
    %v1215 = vpack.c.b16 %v1161, %v1159
    %v1216 = vpack.c.b16 %v1162, %v1160
    %v1217 = vpack.c.b16 %v1165, %v1163
    %v1218 = vpack.c.b16 %v1166, %v1164
    %v1219 = vpack.c.b16 %v1169, %v1167
    %v1220 = vpack.c.b16 %v1170, %v1168
    %v1221 = vpack.c.b16 %v1173, %v1171
    %v1222 = vpack.c.b16 %v1174, %v1172
    %v1223 = vpack.c.b16 %v1177, %v1175
    %v1224 = vpack.c.b16 %v1178, %v1176
    %v1225 = vpack.c.b16 %v1181, %v1179
    %v1226 = vpack.c.b16 %v1182, %v1180
    %v1227 = vpack.c.b16 %v1185, %v1183
    %v1228 = vpack.c.b16 %v1186, %v1184
    %v1229 = vpack.c.b16 %v1189, %v1187
    %v1230 = vpack.c.b16 %v1190, %v1188
    %v1231 = vpack.c.b16 %v1193, %v1191
    %v1232 = vpack.c.b16 %v1194, %v1192
    %v1233 = vpack.c.b16 %v1197, %v1195
    %v1234 = vpack.c.b16 %v1198, %v1196
    %v1235 = vpack.c.b16 %v1201, %v1199
    %v1236 = vpack.c.b16 %v1202, %v1200
    %v1237 = vpack.c.b16 %v1205, %v1203
    %v1238 = vpack.c.b16 %v1206, %v1204
    %1271 = vmatpush.bf16.msra.mxu0 %v1221
    %1272 = vmatpush.bf16.msra.mxu0 %v1219
    %1273 = vmatpush.bf16.msra.mxu0 %v1217
    %1274 = vmatpush.bf16.msra.mxu0 %v1215
    %1275 = vmatpush.bf16.msra.mxu0 %v1213
    %1276 = vmatpush.bf16.msra.mxu0 %v1211
    %1277 = vmatpush.bf16.msra.mxu0 %v1209
    %1278 = vmatpush.bf16.msra.mxu0 %v1207
    %1279 = vmatmul.bf16.gmra.mxu0 %v1069
    %v1280 = vpop.f32.mrf.mxu0
    %v1281 = vadd.f32 %v1107, %v1280
    %v1282 = vpop.f32.mrf.mxu0
    %1283 = vdwg.mxu0
    %1284 = vmatpush.bf16.msra.mxu0 %v1237
    %1285 = vmatpush.bf16.msra.mxu0 %v1235
    %1286 = vmatpush.bf16.msra.mxu0 %v1233
    %1287 = vmatpush.bf16.msra.mxu0 %v1231
    %1288 = vmatpush.bf16.msra.mxu0 %v1229
    %1289 = vmatpush.bf16.msra.mxu0 %v1227
    %1290 = vmatpush.bf16.msra.mxu0 %v1225
    %1291 = vmatpush.bf16.msra.mxu0 %v1223
    %1292 = vmatmul.bf16.gmra.mxu0 %v1070
    %v1293 = vpop.f32.mrf.mxu0
    %v1294 = vadd.f32 %v1281, %v1293
    %v1295 = vpop.f32.mrf.mxu0
    %1296 = vdwg.mxu0
    %1297 = vmatpush.bf16.msra.mxu0 %v1222
    %1298 = vmatpush.bf16.msra.mxu0 %v1220
    %1299 = vmatpush.bf16.msra.mxu0 %v1218
    %1300 = vmatpush.bf16.msra.mxu0 %v1216
    %1301 = vmatpush.bf16.msra.mxu0 %v1214
    %1302 = vmatpush.bf16.msra.mxu0 %v1212
    %1303 = vmatpush.bf16.msra.mxu0 %v1210
    %1304 = vmatpush.bf16.msra.mxu0 %v1208
    %1305 = vmatmul.bf16.gmra.mxu0 %v1069
    %v1306 = vpop.f32.mrf.mxu0
    %v1307 = vadd.f32 %v1108, %v1306
    %v1308 = vpop.f32.mrf.mxu0
    %1309 = vdwg.mxu0
    %1310 = vmatpush.bf16.msra.mxu0 %v1238
    %1311 = vmatpush.bf16.msra.mxu0 %v1236
    %1312 = vmatpush.bf16.msra.mxu0 %v1234
    %1313 = vmatpush.bf16.msra.mxu0 %v1232
    %1314 = vmatpush.bf16.msra.mxu0 %v1230
    %1315 = vmatpush.bf16.msra.mxu0 %v1228
    %1316 = vmatpush.bf16.msra.mxu0 %v1226
    %1317 = vmatpush.bf16.msra.mxu0 %v1224
    %1318 = vmatmul.bf16.gmra.mxu0 %v1070
    %v1319 = vpop.f32.mrf.mxu0
    %v1320 = vadd.f32 %v1307, %v1319
    %v1321 = vpop.f32.mrf.mxu0
    %1322 = vdwg.mxu0
    %v1323 = vmul.f32 %v1294, 0.3
    %v1324 = vmul.f32 %v1320, 0.3
    %v1327 = vrot.slane %v1324, 6
    %v1328 = vsel %vm262, %v1323, %v1327
    %v1330 = vadd.f32 %v798, %v1328
    %1331 = vst [vmem:[#allocation2] sm:$0xf] %v1330
    %v1332 = vld [vmem:[#allocation2] sm:$0xf]
    %1334 = vst [vmem:[#allocation1] ss:$4 sm:$0xff] %v1332
    %v1335 = vld.sshfl [vmem:[#allocation1] sm:$0xff pattern:$0x73625140]
    %v1336 = vld.sshfl [vmem:[#allocation1 + $0x8] sm:$0xff pattern:$0x73625140]
    %v1339 = vpack.c.bf16 %v1336, %v1335
    %v1340 = vunpack.c.l.bf16 %v1339
    %v1341 = vunpack.c.h.bf16 %v1339
    %v1342 = vmax.f32 %v1340, 0.0
    %v1343 = vmax.f32 %v1341, 0.0
    %v1344 = vpack.c.bf16 %v1342, %v1342
    %v1345 = vpack.c.bf16 %v1343, %v1343
    %s1346 = scalar_lea.vmem [#allocation9], 1024
    %v1347 = vld [vmem:[%s1346] sm:$0xff]
    %v1348 = vld [vmem:[%s1346 + $0x8] sm:$0xff]
    %v1349 = vld [vmem:[%s1346 + $0x10] sm:$0xff]
    %v1350 = vld [vmem:[%s1346 + $0x18] sm:$0xff]
    %v1351 = vld [vmem:[%s1346 + $0x20] sm:$0xff]
    %v1352 = vld [vmem:[%s1346 + $0x28] sm:$0xff]
    %v1353 = vld [vmem:[%s1346 + $0x30] sm:$0xff]
    %v1354 = vld [vmem:[%s1346 + $0x38] sm:$0xff]
    %v1355 = vld [vmem:[%s1346 + $0x40] sm:$0xff]
    %v1356 = vld [vmem:[%s1346 + $0x48] sm:$0xff]
    %v1357 = vld [vmem:[%s1346 + $0x50] sm:$0xff]
    %v1358 = vld [vmem:[%s1346 + $0x58] sm:$0xff]
    %v1359 = vld [vmem:[%s1346 + $0x60] sm:$0xff]
    %v1360 = vld [vmem:[%s1346 + $0x68] sm:$0xff]
    %v1361 = vld [vmem:[%s1346 + $0x70] sm:$0xff]
    %v1362 = vld [vmem:[%s1346 + $0x78] sm:$0xff]
    %v1363 = vld [vmem:[%s1346 + $0x80] sm:$0xff]
    %v1364 = vld [vmem:[%s1346 + $0x88] sm:$0xff]
    %v1365 = vld [vmem:[%s1346 + $0x90] sm:$0xff]
    %v1366 = vld [vmem:[%s1346 + $0x98] sm:$0xff]
    %v1367 = vld [vmem:[%s1346 + $0xa0] sm:$0xff]
    %v1368 = vld [vmem:[%s1346 + $0xa8] sm:$0xff]
    %v1369 = vld [vmem:[%s1346 + $0xb0] sm:$0xff]
    %v1370 = vld [vmem:[%s1346 + $0xb8] sm:$0xff]
    %v1371 = vld [vmem:[%s1346 + $0xc0] sm:$0xff]
    %v1372 = vld [vmem:[%s1346 + $0xc8] sm:$0xff]
    %v1373 = vld [vmem:[%s1346 + $0xd0] sm:$0xff]
    %v1374 = vld [vmem:[%s1346 + $0xd8] sm:$0xff]
    %v1375 = vld [vmem:[%s1346 + $0xe0] sm:$0xff]
    %v1376 = vld [vmem:[%s1346 + $0xe8] sm:$0xff]
    %v1377 = vld [vmem:[%s1346 + $0xf0] sm:$0xff]
    %v1378 = vld [vmem:[%s1346 + $0xf8] sm:$0xff]
    %s1379 = scalar_lea.vmem [#allocation11], 8
    %v1380 = vld [vmem:[%s1379] sm:$0x3]
    %v1382 = vperm.slane %v1380, 0
    %v1383 = vperm.slane %v1380, 1
    %v1418 = vunpack.c.l.b16 %v1347
    %v1419 = vunpack.c.h.b16 %v1347
    %v1420 = vunpack.c.l.b16 %v1348
    %v1421 = vunpack.c.h.b16 %v1348
    %v1422 = vunpack.c.l.b16 %v1349
    %v1423 = vunpack.c.h.b16 %v1349
    %v1424 = vunpack.c.l.b16 %v1350
    %v1425 = vunpack.c.h.b16 %v1350
    %v1426 = vunpack.c.l.b16 %v1351
    %v1427 = vunpack.c.h.b16 %v1351
    %v1428 = vunpack.c.l.b16 %v1352
    %v1429 = vunpack.c.h.b16 %v1352
    %v1430 = vunpack.c.l.b16 %v1353
    %v1431 = vunpack.c.h.b16 %v1353
    %v1432 = vunpack.c.l.b16 %v1354
    %v1433 = vunpack.c.h.b16 %v1354
    %v1434 = vunpack.c.l.b16 %v1355
    %v1435 = vunpack.c.h.b16 %v1355
    %v1436 = vunpack.c.l.b16 %v1356
    %v1437 = vunpack.c.h.b16 %v1356
    %v1438 = vunpack.c.l.b16 %v1357
    %v1439 = vunpack.c.h.b16 %v1357
    %v1440 = vunpack.c.l.b16 %v1358
    %v1441 = vunpack.c.h.b16 %v1358
    %v1442 = vunpack.c.l.b16 %v1359
    %v1443 = vunpack.c.h.b16 %v1359
    %v1444 = vunpack.c.l.b16 %v1360
    %v1445 = vunpack.c.h.b16 %v1360
    %v1446 = vunpack.c.l.b16 %v1361
    %v1447 = vunpack.c.h.b16 %v1361
    %v1448 = vunpack.c.l.b16 %v1362
    %v1449 = vunpack.c.h.b16 %v1362
    %v1450 = vunpack.c.l.b16 %v1363
    %v1451 = vunpack.c.h.b16 %v1363
    %v1452 = vunpack.c.l.b16 %v1364
    %v1453 = vunpack.c.h.b16 %v1364
    %v1454 = vunpack.c.l.b16 %v1365
    %v1455 = vunpack.c.h.b16 %v1365
    %v1456 = vunpack.c.l.b16 %v1366
    %v1457 = vunpack.c.h.b16 %v1366
    %v1458 = vunpack.c.l.b16 %v1367
    %v1459 = vunpack.c.h.b16 %v1367
    %v1460 = vunpack.c.l.b16 %v1368
    %v1461 = vunpack.c.h.b16 %v1368
    %v1462 = vunpack.c.l.b16 %v1369
    %v1463 = vunpack.c.h.b16 %v1369
    %v1464 = vunpack.c.l.b16 %v1370
    %v1465 = vunpack.c.h.b16 %v1370
    %v1466 = vunpack.c.l.b16 %v1371
    %v1467 = vunpack.c.h.b16 %v1371
    %v1468 = vunpack.c.l.b16 %v1372
    %v1469 = vunpack.c.h.b16 %v1372
    %v1470 = vunpack.c.l.b16 %v1373
    %v1471 = vunpack.c.h.b16 %v1373
    %v1472 = vunpack.c.l.b16 %v1374
    %v1473 = vunpack.c.h.b16 %v1374
    %v1474 = vunpack.c.l.b16 %v1375
    %v1475 = vunpack.c.h.b16 %v1375
    %v1476 = vunpack.c.l.b16 %v1376
    %v1477 = vunpack.c.h.b16 %v1376
    %v1478 = vunpack.c.l.b16 %v1377
    %v1479 = vunpack.c.h.b16 %v1377
    %v1480 = vunpack.c.l.b16 %v1378
    %v1481 = vunpack.c.h.b16 %v1378
    %v1482 = vpack.c.b16 %v1420, %v1418
    %v1483 = vpack.c.b16 %v1421, %v1419
    %v1484 = vpack.c.b16 %v1424, %v1422
    %v1485 = vpack.c.b16 %v1425, %v1423
    %v1486 = vpack.c.b16 %v1428, %v1426
    %v1487 = vpack.c.b16 %v1429, %v1427
    %v1488 = vpack.c.b16 %v1432, %v1430
    %v1489 = vpack.c.b16 %v1433, %v1431
    %v1490 = vpack.c.b16 %v1436, %v1434
    %v1491 = vpack.c.b16 %v1437, %v1435
    %v1492 = vpack.c.b16 %v1440, %v1438
    %v1493 = vpack.c.b16 %v1441, %v1439
    %v1494 = vpack.c.b16 %v1444, %v1442
    %v1495 = vpack.c.b16 %v1445, %v1443
    %v1496 = vpack.c.b16 %v1448, %v1446
    %v1497 = vpack.c.b16 %v1449, %v1447
    %v1498 = vpack.c.b16 %v1452, %v1450
    %v1499 = vpack.c.b16 %v1453, %v1451
    %v1500 = vpack.c.b16 %v1456, %v1454
    %v1501 = vpack.c.b16 %v1457, %v1455
    %v1502 = vpack.c.b16 %v1460, %v1458
    %v1503 = vpack.c.b16 %v1461, %v1459
    %v1504 = vpack.c.b16 %v1464, %v1462
    %v1505 = vpack.c.b16 %v1465, %v1463
    %v1506 = vpack.c.b16 %v1468, %v1466
    %v1507 = vpack.c.b16 %v1469, %v1467
    %v1508 = vpack.c.b16 %v1472, %v1470
    %v1509 = vpack.c.b16 %v1473, %v1471
    %v1510 = vpack.c.b16 %v1476, %v1474
    %v1511 = vpack.c.b16 %v1477, %v1475
    %v1512 = vpack.c.b16 %v1480, %v1478
    %v1513 = vpack.c.b16 %v1481, %v1479
    %1546 = vmatpush.bf16.msra.mxu0 %v1496
    %1547 = vmatpush.bf16.msra.mxu0 %v1494
    %1548 = vmatpush.bf16.msra.mxu0 %v1492
    %1549 = vmatpush.bf16.msra.mxu0 %v1490
    %1550 = vmatpush.bf16.msra.mxu0 %v1488
    %1551 = vmatpush.bf16.msra.mxu0 %v1486
    %1552 = vmatpush.bf16.msra.mxu0 %v1484
    %1553 = vmatpush.bf16.msra.mxu0 %v1482
    %1554 = vmatmul.bf16.gmra.mxu0 %v1344
    %v1555 = vpop.f32.mrf.mxu0
    %v1556 = vadd.f32 %v1382, %v1555
    %v1557 = vpop.f32.mrf.mxu0
    %1558 = vdwg.mxu0
    %1559 = vmatpush.bf16.msra.mxu0 %v1512
    %1560 = vmatpush.bf16.msra.mxu0 %v1510
    %1561 = vmatpush.bf16.msra.mxu0 %v1508
    %1562 = vmatpush.bf16.msra.mxu0 %v1506
    %1563 = vmatpush.bf16.msra.mxu0 %v1504
    %1564 = vmatpush.bf16.msra.mxu0 %v1502
    %1565 = vmatpush.bf16.msra.mxu0 %v1500
    %1566 = vmatpush.bf16.msra.mxu0 %v1498
    %1567 = vmatmul.bf16.gmra.mxu0 %v1345
    %v1568 = vpop.f32.mrf.mxu0
    %v1569 = vadd.f32 %v1556, %v1568
    %v1570 = vpop.f32.mrf.mxu0
    %1571 = vdwg.mxu0
    %1572 = vmatpush.bf16.msra.mxu0 %v1497
    %1573 = vmatpush.bf16.msra.mxu0 %v1495
    %1574 = vmatpush.bf16.msra.mxu0 %v1493
    %1575 = vmatpush.bf16.msra.mxu0 %v1491
    %1576 = vmatpush.bf16.msra.mxu0 %v1489
    %1577 = vmatpush.bf16.msra.mxu0 %v1487
    %1578 = vmatpush.bf16.msra.mxu0 %v1485
    %1579 = vmatpush.bf16.msra.mxu0 %v1483
    %1580 = vmatmul.bf16.gmra.mxu0 %v1344
    %v1581 = vpop.f32.mrf.mxu0
    %v1582 = vadd.f32 %v1383, %v1581
    %v1583 = vpop.f32.mrf.mxu0
    %1584 = vdwg.mxu0
    %1585 = vmatpush.bf16.msra.mxu0 %v1513
    %1586 = vmatpush.bf16.msra.mxu0 %v1511
    %1587 = vmatpush.bf16.msra.mxu0 %v1509
    %1588 = vmatpush.bf16.msra.mxu0 %v1507
    %1589 = vmatpush.bf16.msra.mxu0 %v1505
    %1590 = vmatpush.bf16.msra.mxu0 %v1503
    %1591 = vmatpush.bf16.msra.mxu0 %v1501
    %1592 = vmatpush.bf16.msra.mxu0 %v1499
    %1593 = vmatmul.bf16.gmra.mxu0 %v1345
    %v1594 = vpop.f32.mrf.mxu0
    %v1595 = vadd.f32 %v1582, %v1594
    %v1596 = vpop.f32.mrf.mxu0
    %1597 = vdwg.mxu0
    %v1598 = vpack.c.bf16 %v1595, %v1569
    %v1599 = vunpack.c.l.bf16 %v1598
    %v1600 = vunpack.c.h.bf16 %v1598
    %v1601 = vmax.f32 %v1599, 0.0
    %v1602 = vmax.f32 %v1600, 0.0
    %v1603 = vpack.c.bf16 %v1601, %v1601
    %v1604 = vpack.c.bf16 %v1602, %v1602
    %s1605 = scalar_lea.vmem [#allocation9], 1280
    %v1606 = vld [vmem:[%s1605] sm:$0xff]
    %v1607 = vld [vmem:[%s1605 + $0x8] sm:$0xff]
    %v1608 = vld [vmem:[%s1605 + $0x10] sm:$0xff]
    %v1609 = vld [vmem:[%s1605 + $0x18] sm:$0xff]
    %v1610 = vld [vmem:[%s1605 + $0x20] sm:$0xff]
    %v1611 = vld [vmem:[%s1605 + $0x28] sm:$0xff]
    %v1612 = vld [vmem:[%s1605 + $0x30] sm:$0xff]
    %v1613 = vld [vmem:[%s1605 + $0x38] sm:$0xff]
    %v1614 = vld [vmem:[%s1605 + $0x40] sm:$0xff]
    %v1615 = vld [vmem:[%s1605 + $0x48] sm:$0xff]
    %v1616 = vld [vmem:[%s1605 + $0x50] sm:$0xff]
    %v1617 = vld [vmem:[%s1605 + $0x58] sm:$0xff]
    %v1618 = vld [vmem:[%s1605 + $0x60] sm:$0xff]
    %v1619 = vld [vmem:[%s1605 + $0x68] sm:$0xff]
    %v1620 = vld [vmem:[%s1605 + $0x70] sm:$0xff]
    %v1621 = vld [vmem:[%s1605 + $0x78] sm:$0xff]
    %v1622 = vld [vmem:[%s1605 + $0x80] sm:$0xff]
    %v1623 = vld [vmem:[%s1605 + $0x88] sm:$0xff]
    %v1624 = vld [vmem:[%s1605 + $0x90] sm:$0xff]
    %v1625 = vld [vmem:[%s1605 + $0x98] sm:$0xff]
    %v1626 = vld [vmem:[%s1605 + $0xa0] sm:$0xff]
    %v1627 = vld [vmem:[%s1605 + $0xa8] sm:$0xff]
    %v1628 = vld [vmem:[%s1605 + $0xb0] sm:$0xff]
    %v1629 = vld [vmem:[%s1605 + $0xb8] sm:$0xff]
    %v1630 = vld [vmem:[%s1605 + $0xc0] sm:$0xff]
    %v1631 = vld [vmem:[%s1605 + $0xc8] sm:$0xff]
    %v1632 = vld [vmem:[%s1605 + $0xd0] sm:$0xff]
    %v1633 = vld [vmem:[%s1605 + $0xd8] sm:$0xff]
    %v1634 = vld [vmem:[%s1605 + $0xe0] sm:$0xff]
    %v1635 = vld [vmem:[%s1605 + $0xe8] sm:$0xff]
    %v1636 = vld [vmem:[%s1605 + $0xf0] sm:$0xff]
    %v1637 = vld [vmem:[%s1605 + $0xf8] sm:$0xff]
    %s1638 = scalar_lea.vmem [#allocation11], 10
    %v1639 = vld [vmem:[%s1638] sm:$0x3]
    %v1641 = vperm.slane %v1639, 0
    %v1642 = vperm.slane %v1639, 1
    %v1677 = vunpack.c.l.b16 %v1606
    %v1678 = vunpack.c.h.b16 %v1606
    %v1679 = vunpack.c.l.b16 %v1607
    %v1680 = vunpack.c.h.b16 %v1607
    %v1681 = vunpack.c.l.b16 %v1608
    %v1682 = vunpack.c.h.b16 %v1608
    %v1683 = vunpack.c.l.b16 %v1609
    %v1684 = vunpack.c.h.b16 %v1609
    %v1685 = vunpack.c.l.b16 %v1610
    %v1686 = vunpack.c.h.b16 %v1610
    %v1687 = vunpack.c.l.b16 %v1611
    %v1688 = vunpack.c.h.b16 %v1611
    %v1689 = vunpack.c.l.b16 %v1612
    %v1690 = vunpack.c.h.b16 %v1612
    %v1691 = vunpack.c.l.b16 %v1613
    %v1692 = vunpack.c.h.b16 %v1613
    %v1693 = vunpack.c.l.b16 %v1614
    %v1694 = vunpack.c.h.b16 %v1614
    %v1695 = vunpack.c.l.b16 %v1615
    %v1696 = vunpack.c.h.b16 %v1615
    %v1697 = vunpack.c.l.b16 %v1616
    %v1698 = vunpack.c.h.b16 %v1616
    %v1699 = vunpack.c.l.b16 %v1617
    %v1700 = vunpack.c.h.b16 %v1617
    %v1701 = vunpack.c.l.b16 %v1618
    %v1702 = vunpack.c.h.b16 %v1618
    %v1703 = vunpack.c.l.b16 %v1619
    %v1704 = vunpack.c.h.b16 %v1619
    %v1705 = vunpack.c.l.b16 %v1620
    %v1706 = vunpack.c.h.b16 %v1620
    %v1707 = vunpack.c.l.b16 %v1621
    %v1708 = vunpack.c.h.b16 %v1621
    %v1709 = vunpack.c.l.b16 %v1622
    %v1710 = vunpack.c.h.b16 %v1622
    %v1711 = vunpack.c.l.b16 %v1623
    %v1712 = vunpack.c.h.b16 %v1623
    %v1713 = vunpack.c.l.b16 %v1624
    %v1714 = vunpack.c.h.b16 %v1624
    %v1715 = vunpack.c.l.b16 %v1625
    %v1716 = vunpack.c.h.b16 %v1625
    %v1717 = vunpack.c.l.b16 %v1626
    %v1718 = vunpack.c.h.b16 %v1626
    %v1719 = vunpack.c.l.b16 %v1627
    %v1720 = vunpack.c.h.b16 %v1627
    %v1721 = vunpack.c.l.b16 %v1628
    %v1722 = vunpack.c.h.b16 %v1628
    %v1723 = vunpack.c.l.b16 %v1629
    %v1724 = vunpack.c.h.b16 %v1629
    %v1725 = vunpack.c.l.b16 %v1630
    %v1726 = vunpack.c.h.b16 %v1630
    %v1727 = vunpack.c.l.b16 %v1631
    %v1728 = vunpack.c.h.b16 %v1631
    %v1729 = vunpack.c.l.b16 %v1632
    %v1730 = vunpack.c.h.b16 %v1632
    %v1731 = vunpack.c.l.b16 %v1633
    %v1732 = vunpack.c.h.b16 %v1633
    %v1733 = vunpack.c.l.b16 %v1634
    %v1734 = vunpack.c.h.b16 %v1634
    %v1735 = vunpack.c.l.b16 %v1635
    %v1736 = vunpack.c.h.b16 %v1635
    %v1737 = vunpack.c.l.b16 %v1636
    %v1738 = vunpack.c.h.b16 %v1636
    %v1739 = vunpack.c.l.b16 %v1637
    %v1740 = vunpack.c.h.b16 %v1637
    %v1741 = vpack.c.b16 %v1679, %v1677
    %v1742 = vpack.c.b16 %v1680, %v1678
    %v1743 = vpack.c.b16 %v1683, %v1681
    %v1744 = vpack.c.b16 %v1684, %v1682
    %v1745 = vpack.c.b16 %v1687, %v1685
    %v1746 = vpack.c.b16 %v1688, %v1686
    %v1747 = vpack.c.b16 %v1691, %v1689
    %v1748 = vpack.c.b16 %v1692, %v1690
    %v1749 = vpack.c.b16 %v1695, %v1693
    %v1750 = vpack.c.b16 %v1696, %v1694
    %v1751 = vpack.c.b16 %v1699, %v1697
    %v1752 = vpack.c.b16 %v1700, %v1698
    %v1753 = vpack.c.b16 %v1703, %v1701
    %v1754 = vpack.c.b16 %v1704, %v1702
    %v1755 = vpack.c.b16 %v1707, %v1705
    %v1756 = vpack.c.b16 %v1708, %v1706
    %v1757 = vpack.c.b16 %v1711, %v1709
    %v1758 = vpack.c.b16 %v1712, %v1710
    %v1759 = vpack.c.b16 %v1715, %v1713
    %v1760 = vpack.c.b16 %v1716, %v1714
    %v1761 = vpack.c.b16 %v1719, %v1717
    %v1762 = vpack.c.b16 %v1720, %v1718
    %v1763 = vpack.c.b16 %v1723, %v1721
    %v1764 = vpack.c.b16 %v1724, %v1722
    %v1765 = vpack.c.b16 %v1727, %v1725
    %v1766 = vpack.c.b16 %v1728, %v1726
    %v1767 = vpack.c.b16 %v1731, %v1729
    %v1768 = vpack.c.b16 %v1732, %v1730
    %v1769 = vpack.c.b16 %v1735, %v1733
    %v1770 = vpack.c.b16 %v1736, %v1734
    %v1771 = vpack.c.b16 %v1739, %v1737
    %v1772 = vpack.c.b16 %v1740, %v1738
    %1805 = vmatpush.bf16.msra.mxu0 %v1755
    %1806 = vmatpush.bf16.msra.mxu0 %v1753
    %1807 = vmatpush.bf16.msra.mxu0 %v1751
    %1808 = vmatpush.bf16.msra.mxu0 %v1749
    %1809 = vmatpush.bf16.msra.mxu0 %v1747
    %1810 = vmatpush.bf16.msra.mxu0 %v1745
    %1811 = vmatpush.bf16.msra.mxu0 %v1743
    %1812 = vmatpush.bf16.msra.mxu0 %v1741
    %1813 = vmatmul.bf16.gmra.mxu0 %v1603
    %v1814 = vpop.f32.mrf.mxu0
    %v1815 = vadd.f32 %v1641, %v1814
    %v1816 = vpop.f32.mrf.mxu0
    %1817 = vdwg.mxu0
    %1818 = vmatpush.bf16.msra.mxu0 %v1771
    %1819 = vmatpush.bf16.msra.mxu0 %v1769
    %1820 = vmatpush.bf16.msra.mxu0 %v1767
    %1821 = vmatpush.bf16.msra.mxu0 %v1765
    %1822 = vmatpush.bf16.msra.mxu0 %v1763
    %1823 = vmatpush.bf16.msra.mxu0 %v1761
    %1824 = vmatpush.bf16.msra.mxu0 %v1759
    %1825 = vmatpush.bf16.msra.mxu0 %v1757
    %1826 = vmatmul.bf16.gmra.mxu0 %v1604
    %v1827 = vpop.f32.mrf.mxu0
    %v1828 = vadd.f32 %v1815, %v1827
    %v1829 = vpop.f32.mrf.mxu0
    %1830 = vdwg.mxu0
    %1831 = vmatpush.bf16.msra.mxu0 %v1756
    %1832 = vmatpush.bf16.msra.mxu0 %v1754
    %1833 = vmatpush.bf16.msra.mxu0 %v1752
    %1834 = vmatpush.bf16.msra.mxu0 %v1750
    %1835 = vmatpush.bf16.msra.mxu0 %v1748
    %1836 = vmatpush.bf16.msra.mxu0 %v1746
    %1837 = vmatpush.bf16.msra.mxu0 %v1744
    %1838 = vmatpush.bf16.msra.mxu0 %v1742
    %1839 = vmatmul.bf16.gmra.mxu0 %v1603
    %v1840 = vpop.f32.mrf.mxu0
    %v1841 = vadd.f32 %v1642, %v1840
    %v1842 = vpop.f32.mrf.mxu0
    %1843 = vdwg.mxu0
    %1844 = vmatpush.bf16.msra.mxu0 %v1772
    %1845 = vmatpush.bf16.msra.mxu0 %v1770
    %1846 = vmatpush.bf16.msra.mxu0 %v1768
    %1847 = vmatpush.bf16.msra.mxu0 %v1766
    %1848 = vmatpush.bf16.msra.mxu0 %v1764
    %1849 = vmatpush.bf16.msra.mxu0 %v1762
    %1850 = vmatpush.bf16.msra.mxu0 %v1760
    %1851 = vmatpush.bf16.msra.mxu0 %v1758
    %1852 = vmatmul.bf16.gmra.mxu0 %v1604
    %v1853 = vpop.f32.mrf.mxu0
    %v1854 = vadd.f32 %v1841, %v1853
    %v1855 = vpop.f32.mrf.mxu0
    %1856 = vdwg.mxu0
    %v1857 = vmul.f32 %v1828, 0.3
    %v1858 = vmul.f32 %v1854, 0.3
    %v1861 = vrot.slane %v1858, 6
    %v1862 = vsel %vm262, %v1857, %v1861
    %v1864 = vadd.f32 %v1332, %v1862
    %1865 = vst [vmem:[#allocation2] sm:$0xf] %v1864
    %v1866 = vld [vmem:[#allocation2] sm:$0xf]
    %1868 = vst [vmem:[#allocation1] ss:$4 sm:$0xff] %v1866
    %v1869 = vld.sshfl [vmem:[#allocation1] sm:$0xff pattern:$0x73625140]
    %v1870 = vld.sshfl [vmem:[#allocation1 + $0x8] sm:$0xff pattern:$0x73625140]
    %v1873 = vpack.c.bf16 %v1870, %v1869
    %v1874 = vunpack.c.l.bf16 %v1873
    %v1875 = vunpack.c.h.bf16 %v1873
    %v1876 = vmax.f32 %v1874, 0.0
    %v1877 = vmax.f32 %v1875, 0.0
    %v1878 = vpack.c.bf16 %v1876, %v1876
    %v1879 = vpack.c.bf16 %v1877, %v1877
    %s1880 = scalar_lea.vmem [#allocation9], 1536
    %v1881 = vld [vmem:[%s1880] sm:$0xff]
    %v1882 = vld [vmem:[%s1880 + $0x8] sm:$0xff]
    %v1883 = vld [vmem:[%s1880 + $0x10] sm:$0xff]
    %v1884 = vld [vmem:[%s1880 + $0x18] sm:$0xff]
    %v1885 = vld [vmem:[%s1880 + $0x20] sm:$0xff]
    %v1886 = vld [vmem:[%s1880 + $0x28] sm:$0xff]
    %v1887 = vld [vmem:[%s1880 + $0x30] sm:$0xff]
    %v1888 = vld [vmem:[%s1880 + $0x38] sm:$0xff]
    %v1889 = vld [vmem:[%s1880 + $0x40] sm:$0xff]
    %v1890 = vld [vmem:[%s1880 + $0x48] sm:$0xff]
    %v1891 = vld [vmem:[%s1880 + $0x50] sm:$0xff]
    %v1892 = vld [vmem:[%s1880 + $0x58] sm:$0xff]
    %v1893 = vld [vmem:[%s1880 + $0x60] sm:$0xff]
    %v1894 = vld [vmem:[%s1880 + $0x68] sm:$0xff]
    %v1895 = vld [vmem:[%s1880 + $0x70] sm:$0xff]
    %v1896 = vld [vmem:[%s1880 + $0x78] sm:$0xff]
    %v1897 = vld [vmem:[%s1880 + $0x80] sm:$0xff]
    %v1898 = vld [vmem:[%s1880 + $0x88] sm:$0xff]
    %v1899 = vld [vmem:[%s1880 + $0x90] sm:$0xff]
    %v1900 = vld [vmem:[%s1880 + $0x98] sm:$0xff]
    %v1901 = vld [vmem:[%s1880 + $0xa0] sm:$0xff]
    %v1902 = vld [vmem:[%s1880 + $0xa8] sm:$0xff]
    %v1903 = vld [vmem:[%s1880 + $0xb0] sm:$0xff]
    %v1904 = vld [vmem:[%s1880 + $0xb8] sm:$0xff]
    %v1905 = vld [vmem:[%s1880 + $0xc0] sm:$0xff]
    %v1906 = vld [vmem:[%s1880 + $0xc8] sm:$0xff]
    %v1907 = vld [vmem:[%s1880 + $0xd0] sm:$0xff]
    %v1908 = vld [vmem:[%s1880 + $0xd8] sm:$0xff]
    %v1909 = vld [vmem:[%s1880 + $0xe0] sm:$0xff]
    %v1910 = vld [vmem:[%s1880 + $0xe8] sm:$0xff]
    %v1911 = vld [vmem:[%s1880 + $0xf0] sm:$0xff]
    %v1912 = vld [vmem:[%s1880 + $0xf8] sm:$0xff]
    %s1913 = scalar_lea.vmem [#allocation11], 12
    %v1914 = vld [vmem:[%s1913] sm:$0x3]
    %v1916 = vperm.slane %v1914, 0
    %v1917 = vperm.slane %v1914, 1
    %v1952 = vunpack.c.l.b16 %v1881
    %v1953 = vunpack.c.h.b16 %v1881
    %v1954 = vunpack.c.l.b16 %v1882
    %v1955 = vunpack.c.h.b16 %v1882
    %v1956 = vunpack.c.l.b16 %v1883
    %v1957 = vunpack.c.h.b16 %v1883
    %v1958 = vunpack.c.l.b16 %v1884
    %v1959 = vunpack.c.h.b16 %v1884
    %v1960 = vunpack.c.l.b16 %v1885
    %v1961 = vunpack.c.h.b16 %v1885
    %v1962 = vunpack.c.l.b16 %v1886
    %v1963 = vunpack.c.h.b16 %v1886
    %v1964 = vunpack.c.l.b16 %v1887
    %v1965 = vunpack.c.h.b16 %v1887
    %v1966 = vunpack.c.l.b16 %v1888
    %v1967 = vunpack.c.h.b16 %v1888
    %v1968 = vunpack.c.l.b16 %v1889
    %v1969 = vunpack.c.h.b16 %v1889
    %v1970 = vunpack.c.l.b16 %v1890
    %v1971 = vunpack.c.h.b16 %v1890
    %v1972 = vunpack.c.l.b16 %v1891
    %v1973 = vunpack.c.h.b16 %v1891
    %v1974 = vunpack.c.l.b16 %v1892
    %v1975 = vunpack.c.h.b16 %v1892
    %v1976 = vunpack.c.l.b16 %v1893
    %v1977 = vunpack.c.h.b16 %v1893
    %v1978 = vunpack.c.l.b16 %v1894
    %v1979 = vunpack.c.h.b16 %v1894
    %v1980 = vunpack.c.l.b16 %v1895
    %v1981 = vunpack.c.h.b16 %v1895
    %v1982 = vunpack.c.l.b16 %v1896
    %v1983 = vunpack.c.h.b16 %v1896
    %v1984 = vunpack.c.l.b16 %v1897
    %v1985 = vunpack.c.h.b16 %v1897
    %v1986 = vunpack.c.l.b16 %v1898
    %v1987 = vunpack.c.h.b16 %v1898
    %v1988 = vunpack.c.l.b16 %v1899
    %v1989 = vunpack.c.h.b16 %v1899
    %v1990 = vunpack.c.l.b16 %v1900
    %v1991 = vunpack.c.h.b16 %v1900
    %v1992 = vunpack.c.l.b16 %v1901
    %v1993 = vunpack.c.h.b16 %v1901
    %v1994 = vunpack.c.l.b16 %v1902
    %v1995 = vunpack.c.h.b16 %v1902
    %v1996 = vunpack.c.l.b16 %v1903
    %v1997 = vunpack.c.h.b16 %v1903
    %v1998 = vunpack.c.l.b16 %v1904
    %v1999 = vunpack.c.h.b16 %v1904
    %v2000 = vunpack.c.l.b16 %v1905
    %v2001 = vunpack.c.h.b16 %v1905
    %v2002 = vunpack.c.l.b16 %v1906
    %v2003 = vunpack.c.h.b16 %v1906
    %v2004 = vunpack.c.l.b16 %v1907
    %v2005 = vunpack.c.h.b16 %v1907
    %v2006 = vunpack.c.l.b16 %v1908
    %v2007 = vunpack.c.h.b16 %v1908
    %v2008 = vunpack.c.l.b16 %v1909
    %v2009 = vunpack.c.h.b16 %v1909
    %v2010 = vunpack.c.l.b16 %v1910
    %v2011 = vunpack.c.h.b16 %v1910
    %v2012 = vunpack.c.l.b16 %v1911
    %v2013 = vunpack.c.h.b16 %v1911
    %v2014 = vunpack.c.l.b16 %v1912
    %v2015 = vunpack.c.h.b16 %v1912
    %v2016 = vpack.c.b16 %v1954, %v1952
    %v2017 = vpack.c.b16 %v1955, %v1953
    %v2018 = vpack.c.b16 %v1958, %v1956
    %v2019 = vpack.c.b16 %v1959, %v1957
    %v2020 = vpack.c.b16 %v1962, %v1960
    %v2021 = vpack.c.b16 %v1963, %v1961
    %v2022 = vpack.c.b16 %v1966, %v1964
    %v2023 = vpack.c.b16 %v1967, %v1965
    %v2024 = vpack.c.b16 %v1970, %v1968
    %v2025 = vpack.c.b16 %v1971, %v1969
    %v2026 = vpack.c.b16 %v1974, %v1972
    %v2027 = vpack.c.b16 %v1975, %v1973
    %v2028 = vpack.c.b16 %v1978, %v1976
    %v2029 = vpack.c.b16 %v1979, %v1977
    %v2030 = vpack.c.b16 %v1982, %v1980
    %v2031 = vpack.c.b16 %v1983, %v1981
    %v2032 = vpack.c.b16 %v1986, %v1984
    %v2033 = vpack.c.b16 %v1987, %v1985
    %v2034 = vpack.c.b16 %v1990, %v1988
    %v2035 = vpack.c.b16 %v1991, %v1989
    %v2036 = vpack.c.b16 %v1994, %v1992
    %v2037 = vpack.c.b16 %v1995, %v1993
    %v2038 = vpack.c.b16 %v1998, %v1996
    %v2039 = vpack.c.b16 %v1999, %v1997
    %v2040 = vpack.c.b16 %v2002, %v2000
    %v2041 = vpack.c.b16 %v2003, %v2001
    %v2042 = vpack.c.b16 %v2006, %v2004
    %v2043 = vpack.c.b16 %v2007, %v2005
    %v2044 = vpack.c.b16 %v2010, %v2008
    %v2045 = vpack.c.b16 %v2011, %v2009
    %v2046 = vpack.c.b16 %v2014, %v2012
    %v2047 = vpack.c.b16 %v2015, %v2013
    %2080 = vmatpush.bf16.msra.mxu0 %v2030
    %2081 = vmatpush.bf16.msra.mxu0 %v2028
    %2082 = vmatpush.bf16.msra.mxu0 %v2026
    %2083 = vmatpush.bf16.msra.mxu0 %v2024
    %2084 = vmatpush.bf16.msra.mxu0 %v2022
    %2085 = vmatpush.bf16.msra.mxu0 %v2020
    %2086 = vmatpush.bf16.msra.mxu0 %v2018
    %2087 = vmatpush.bf16.msra.mxu0 %v2016
    %2088 = vmatmul.bf16.gmra.mxu0 %v1878
    %v2089 = vpop.f32.mrf.mxu0
    %v2090 = vadd.f32 %v1916, %v2089
    %v2091 = vpop.f32.mrf.mxu0
    %2092 = vdwg.mxu0
    %2093 = vmatpush.bf16.msra.mxu0 %v2046
    %2094 = vmatpush.bf16.msra.mxu0 %v2044
    %2095 = vmatpush.bf16.msra.mxu0 %v2042
    %2096 = vmatpush.bf16.msra.mxu0 %v2040
    %2097 = vmatpush.bf16.msra.mxu0 %v2038
    %2098 = vmatpush.bf16.msra.mxu0 %v2036
    %2099 = vmatpush.bf16.msra.mxu0 %v2034
    %2100 = vmatpush.bf16.msra.mxu0 %v2032
    %2101 = vmatmul.bf16.gmra.mxu0 %v1879
    %v2102 = vpop.f32.mrf.mxu0
    %v2103 = vadd.f32 %v2090, %v2102
    %v2104 = vpop.f32.mrf.mxu0
    %2105 = vdwg.mxu0
    %2106 = vmatpush.bf16.msra.mxu0 %v2031
    %2107 = vmatpush.bf16.msra.mxu0 %v2029
    %2108 = vmatpush.bf16.msra.mxu0 %v2027
    %2109 = vmatpush.bf16.msra.mxu0 %v2025
    %2110 = vmatpush.bf16.msra.mxu0 %v2023
    %2111 = vmatpush.bf16.msra.mxu0 %v2021
    %2112 = vmatpush.bf16.msra.mxu0 %v2019
    %2113 = vmatpush.bf16.msra.mxu0 %v2017
    %2114 = vmatmul.bf16.gmra.mxu0 %v1878
    %v2115 = vpop.f32.mrf.mxu0
    %v2116 = vadd.f32 %v1917, %v2115
    %v2117 = vpop.f32.mrf.mxu0
    %2118 = vdwg.mxu0
    %2119 = vmatpush.bf16.msra.mxu0 %v2047
    %2120 = vmatpush.bf16.msra.mxu0 %v2045
    %2121 = vmatpush.bf16.msra.mxu0 %v2043
    %2122 = vmatpush.bf16.msra.mxu0 %v2041
    %2123 = vmatpush.bf16.msra.mxu0 %v2039
    %2124 = vmatpush.bf16.msra.mxu0 %v2037
    %2125 = vmatpush.bf16.msra.mxu0 %v2035
    %2126 = vmatpush.bf16.msra.mxu0 %v2033
    %2127 = vmatmul.bf16.gmra.mxu0 %v1879
    %v2128 = vpop.f32.mrf.mxu0
    %v2129 = vadd.f32 %v2116, %v2128
    %v2130 = vpop.f32.mrf.mxu0
    %2131 = vdwg.mxu0
    %v2132 = vpack.c.bf16 %v2129, %v2103
    %v2133 = vunpack.c.l.bf16 %v2132
    %v2134 = vunpack.c.h.bf16 %v2132
    %v2135 = vmax.f32 %v2133, 0.0
    %v2136 = vmax.f32 %v2134, 0.0
    %v2137 = vpack.c.bf16 %v2135, %v2135
    %v2138 = vpack.c.bf16 %v2136, %v2136
    %s2139 = scalar_lea.vmem [#allocation9], 1792
    %v2140 = vld [vmem:[%s2139] sm:$0xff]
    %v2141 = vld [vmem:[%s2139 + $0x8] sm:$0xff]
    %v2142 = vld [vmem:[%s2139 + $0x10] sm:$0xff]
    %v2143 = vld [vmem:[%s2139 + $0x18] sm:$0xff]
    %v2144 = vld [vmem:[%s2139 + $0x20] sm:$0xff]
    %v2145 = vld [vmem:[%s2139 + $0x28] sm:$0xff]
    %v2146 = vld [vmem:[%s2139 + $0x30] sm:$0xff]
    %v2147 = vld [vmem:[%s2139 + $0x38] sm:$0xff]
    %v2148 = vld [vmem:[%s2139 + $0x40] sm:$0xff]
    %v2149 = vld [vmem:[%s2139 + $0x48] sm:$0xff]
    %v2150 = vld [vmem:[%s2139 + $0x50] sm:$0xff]
    %v2151 = vld [vmem:[%s2139 + $0x58] sm:$0xff]
    %v2152 = vld [vmem:[%s2139 + $0x60] sm:$0xff]
    %v2153 = vld [vmem:[%s2139 + $0x68] sm:$0xff]
    %v2154 = vld [vmem:[%s2139 + $0x70] sm:$0xff]
    %v2155 = vld [vmem:[%s2139 + $0x78] sm:$0xff]
    %v2156 = vld [vmem:[%s2139 + $0x80] sm:$0xff]
    %v2157 = vld [vmem:[%s2139 + $0x88] sm:$0xff]
    %v2158 = vld [vmem:[%s2139 + $0x90] sm:$0xff]
    %v2159 = vld [vmem:[%s2139 + $0x98] sm:$0xff]
    %v2160 = vld [vmem:[%s2139 + $0xa0] sm:$0xff]
    %v2161 = vld [vmem:[%s2139 + $0xa8] sm:$0xff]
    %v2162 = vld [vmem:[%s2139 + $0xb0] sm:$0xff]
    %v2163 = vld [vmem:[%s2139 + $0xb8] sm:$0xff]
    %v2164 = vld [vmem:[%s2139 + $0xc0] sm:$0xff]
    %v2165 = vld [vmem:[%s2139 + $0xc8] sm:$0xff]
    %v2166 = vld [vmem:[%s2139 + $0xd0] sm:$0xff]
    %v2167 = vld [vmem:[%s2139 + $0xd8] sm:$0xff]
    %v2168 = vld [vmem:[%s2139 + $0xe0] sm:$0xff]
    %v2169 = vld [vmem:[%s2139 + $0xe8] sm:$0xff]
    %v2170 = vld [vmem:[%s2139 + $0xf0] sm:$0xff]
    %v2171 = vld [vmem:[%s2139 + $0xf8] sm:$0xff]
    %s2172 = scalar_lea.vmem [#allocation11], 14
    %v2173 = vld [vmem:[%s2172] sm:$0x3]
    %v2175 = vperm.slane %v2173, 0
    %v2176 = vperm.slane %v2173, 1
    %v2211 = vunpack.c.l.b16 %v2140
    %v2212 = vunpack.c.h.b16 %v2140
    %v2213 = vunpack.c.l.b16 %v2141
    %v2214 = vunpack.c.h.b16 %v2141
    %v2215 = vunpack.c.l.b16 %v2142
    %v2216 = vunpack.c.h.b16 %v2142
    %v2217 = vunpack.c.l.b16 %v2143
    %v2218 = vunpack.c.h.b16 %v2143
    %v2219 = vunpack.c.l.b16 %v2144
    %v2220 = vunpack.c.h.b16 %v2144
    %v2221 = vunpack.c.l.b16 %v2145
    %v2222 = vunpack.c.h.b16 %v2145
    %v2223 = vunpack.c.l.b16 %v2146
    %v2224 = vunpack.c.h.b16 %v2146
    %v2225 = vunpack.c.l.b16 %v2147
    %v2226 = vunpack.c.h.b16 %v2147
    %v2227 = vunpack.c.l.b16 %v2148
    %v2228 = vunpack.c.h.b16 %v2148
    %v2229 = vunpack.c.l.b16 %v2149
    %v2230 = vunpack.c.h.b16 %v2149
    %v2231 = vunpack.c.l.b16 %v2150
    %v2232 = vunpack.c.h.b16 %v2150
    %v2233 = vunpack.c.l.b16 %v2151
    %v2234 = vunpack.c.h.b16 %v2151
    %v2235 = vunpack.c.l.b16 %v2152
    %v2236 = vunpack.c.h.b16 %v2152
    %v2237 = vunpack.c.l.b16 %v2153
    %v2238 = vunpack.c.h.b16 %v2153
    %v2239 = vunpack.c.l.b16 %v2154
    %v2240 = vunpack.c.h.b16 %v2154
    %v2241 = vunpack.c.l.b16 %v2155
    %v2242 = vunpack.c.h.b16 %v2155
    %v2243 = vunpack.c.l.b16 %v2156
    %v2244 = vunpack.c.h.b16 %v2156
    %v2245 = vunpack.c.l.b16 %v2157
    %v2246 = vunpack.c.h.b16 %v2157
    %v2247 = vunpack.c.l.b16 %v2158
    %v2248 = vunpack.c.h.b16 %v2158
    %v2249 = vunpack.c.l.b16 %v2159
    %v2250 = vunpack.c.h.b16 %v2159
    %v2251 = vunpack.c.l.b16 %v2160
    %v2252 = vunpack.c.h.b16 %v2160
    %v2253 = vunpack.c.l.b16 %v2161
    %v2254 = vunpack.c.h.b16 %v2161
    %v2255 = vunpack.c.l.b16 %v2162
    %v2256 = vunpack.c.h.b16 %v2162
    %v2257 = vunpack.c.l.b16 %v2163
    %v2258 = vunpack.c.h.b16 %v2163
    %v2259 = vunpack.c.l.b16 %v2164
    %v2260 = vunpack.c.h.b16 %v2164
    %v2261 = vunpack.c.l.b16 %v2165
    %v2262 = vunpack.c.h.b16 %v2165
    %v2263 = vunpack.c.l.b16 %v2166
    %v2264 = vunpack.c.h.b16 %v2166
    %v2265 = vunpack.c.l.b16 %v2167
    %v2266 = vunpack.c.h.b16 %v2167
    %v2267 = vunpack.c.l.b16 %v2168
    %v2268 = vunpack.c.h.b16 %v2168
    %v2269 = vunpack.c.l.b16 %v2169
    %v2270 = vunpack.c.h.b16 %v2169
    %v2271 = vunpack.c.l.b16 %v2170
    %v2272 = vunpack.c.h.b16 %v2170
    %v2273 = vunpack.c.l.b16 %v2171
    %v2274 = vunpack.c.h.b16 %v2171
    %v2275 = vpack.c.b16 %v2213, %v2211
    %v2276 = vpack.c.b16 %v2214, %v2212
    %v2277 = vpack.c.b16 %v2217, %v2215
    %v2278 = vpack.c.b16 %v2218, %v2216
    %v2279 = vpack.c.b16 %v2221, %v2219
    %v2280 = vpack.c.b16 %v2222, %v2220
    %v2281 = vpack.c.b16 %v2225, %v2223
    %v2282 = vpack.c.b16 %v2226, %v2224
    %v2283 = vpack.c.b16 %v2229, %v2227
    %v2284 = vpack.c.b16 %v2230, %v2228
    %v2285 = vpack.c.b16 %v2233, %v2231
    %v2286 = vpack.c.b16 %v2234, %v2232
    %v2287 = vpack.c.b16 %v2237, %v2235
    %v2288 = vpack.c.b16 %v2238, %v2236
    %v2289 = vpack.c.b16 %v2241, %v2239
    %v2290 = vpack.c.b16 %v2242, %v2240
    %v2291 = vpack.c.b16 %v2245, %v2243
    %v2292 = vpack.c.b16 %v2246, %v2244
    %v2293 = vpack.c.b16 %v2249, %v2247
    %v2294 = vpack.c.b16 %v2250, %v2248
    %v2295 = vpack.c.b16 %v2253, %v2251
    %v2296 = vpack.c.b16 %v2254, %v2252
    %v2297 = vpack.c.b16 %v2257, %v2255
    %v2298 = vpack.c.b16 %v2258, %v2256
    %v2299 = vpack.c.b16 %v2261, %v2259
    %v2300 = vpack.c.b16 %v2262, %v2260
    %v2301 = vpack.c.b16 %v2265, %v2263
    %v2302 = vpack.c.b16 %v2266, %v2264
    %v2303 = vpack.c.b16 %v2269, %v2267
    %v2304 = vpack.c.b16 %v2270, %v2268
    %v2305 = vpack.c.b16 %v2273, %v2271
    %v2306 = vpack.c.b16 %v2274, %v2272
    %2339 = vmatpush.bf16.msra.mxu0 %v2289
    %2340 = vmatpush.bf16.msra.mxu0 %v2287
    %2341 = vmatpush.bf16.msra.mxu0 %v2285
    %2342 = vmatpush.bf16.msra.mxu0 %v2283
    %2343 = vmatpush.bf16.msra.mxu0 %v2281
    %2344 = vmatpush.bf16.msra.mxu0 %v2279
    %2345 = vmatpush.bf16.msra.mxu0 %v2277
    %2346 = vmatpush.bf16.msra.mxu0 %v2275
    %2347 = vmatmul.bf16.gmra.mxu0 %v2137
    %v2348 = vpop.f32.mrf.mxu0
    %v2349 = vadd.f32 %v2175, %v2348
    %v2350 = vpop.f32.mrf.mxu0
    %2351 = vdwg.mxu0
    %2352 = vmatpush.bf16.msra.mxu0 %v2305
    %2353 = vmatpush.bf16.msra.mxu0 %v2303
    %2354 = vmatpush.bf16.msra.mxu0 %v2301
    %2355 = vmatpush.bf16.msra.mxu0 %v2299
    %2356 = vmatpush.bf16.msra.mxu0 %v2297
    %2357 = vmatpush.bf16.msra.mxu0 %v2295
    %2358 = vmatpush.bf16.msra.mxu0 %v2293
    %2359 = vmatpush.bf16.msra.mxu0 %v2291
    %2360 = vmatmul.bf16.gmra.mxu0 %v2138
    %v2361 = vpop.f32.mrf.mxu0
    %v2362 = vadd.f32 %v2349, %v2361
    %v2363 = vpop.f32.mrf.mxu0
    %2364 = vdwg.mxu0
    %2365 = vmatpush.bf16.msra.mxu0 %v2290
    %2366 = vmatpush.bf16.msra.mxu0 %v2288
    %2367 = vmatpush.bf16.msra.mxu0 %v2286
    %2368 = vmatpush.bf16.msra.mxu0 %v2284
    %2369 = vmatpush.bf16.msra.mxu0 %v2282
    %2370 = vmatpush.bf16.msra.mxu0 %v2280
    %2371 = vmatpush.bf16.msra.mxu0 %v2278
    %2372 = vmatpush.bf16.msra.mxu0 %v2276
    %2373 = vmatmul.bf16.gmra.mxu0 %v2137
    %v2374 = vpop.f32.mrf.mxu0
    %v2375 = vadd.f32 %v2176, %v2374
    %v2376 = vpop.f32.mrf.mxu0
    %2377 = vdwg.mxu0
    %2378 = vmatpush.bf16.msra.mxu0 %v2306
    %2379 = vmatpush.bf16.msra.mxu0 %v2304
    %2380 = vmatpush.bf16.msra.mxu0 %v2302
    %2381 = vmatpush.bf16.msra.mxu0 %v2300
    %2382 = vmatpush.bf16.msra.mxu0 %v2298
    %2383 = vmatpush.bf16.msra.mxu0 %v2296
    %2384 = vmatpush.bf16.msra.mxu0 %v2294
    %2385 = vmatpush.bf16.msra.mxu0 %v2292
    %2386 = vmatmul.bf16.gmra.mxu0 %v2138
    %v2387 = vpop.f32.mrf.mxu0
    %v2388 = vadd.f32 %v2375, %v2387
    %v2389 = vpop.f32.mrf.mxu0
    %2390 = vdwg.mxu0
    %v2391 = vmul.f32 %v2362, 0.3
    %v2392 = vmul.f32 %v2388, 0.3
    %v2395 = vrot.slane %v2392, 6
    %v2396 = vsel %vm262, %v2391, %v2395
    %v2398 = vadd.f32 %v1866, %v2396
    %2399 = vst [vmem:[#allocation2] sm:$0xf] %v2398
    %v2400 = vld [vmem:[#allocation2] sm:$0xf]
    %2402 = vst [vmem:[#allocation1] ss:$4 sm:$0xff] %v2400
    %v2403 = vld.sshfl [vmem:[#allocation1] sm:$0xff pattern:$0x73625140]
    %v2404 = vld.sshfl [vmem:[#allocation1 + $0x8] sm:$0xff pattern:$0x73625140]
    %v2407 = vpack.c.bf16 %v2404, %v2403
    %v2408 = vunpack.c.l.bf16 %v2407
    %v2409 = vunpack.c.h.bf16 %v2407
    %v2410 = vmax.f32 %v2408, 0.0
    %v2411 = vmax.f32 %v2409, 0.0
    %v2412 = vpack.c.bf16 %v2410, %v2410
    %v2413 = vpack.c.bf16 %v2411, %v2411
    %s2414 = scalar_lea.vmem [#allocation9], 2048
    %v2415 = vld [vmem:[%s2414] sm:$0xff]
    %v2416 = vld [vmem:[%s2414 + $0x8] sm:$0xff]
    %v2417 = vld [vmem:[%s2414 + $0x10] sm:$0xff]
    %v2418 = vld [vmem:[%s2414 + $0x18] sm:$0xff]
    %v2419 = vld [vmem:[%s2414 + $0x20] sm:$0xff]
    %v2420 = vld [vmem:[%s2414 + $0x28] sm:$0xff]
    %v2421 = vld [vmem:[%s2414 + $0x30] sm:$0xff]
    %v2422 = vld [vmem:[%s2414 + $0x38] sm:$0xff]
    %v2423 = vld [vmem:[%s2414 + $0x40] sm:$0xff]
    %v2424 = vld [vmem:[%s2414 + $0x48] sm:$0xff]
    %v2425 = vld [vmem:[%s2414 + $0x50] sm:$0xff]
    %v2426 = vld [vmem:[%s2414 + $0x58] sm:$0xff]
    %v2427 = vld [vmem:[%s2414 + $0x60] sm:$0xff]
    %v2428 = vld [vmem:[%s2414 + $0x68] sm:$0xff]
    %v2429 = vld [vmem:[%s2414 + $0x70] sm:$0xff]
    %v2430 = vld [vmem:[%s2414 + $0x78] sm:$0xff]
    %v2431 = vld [vmem:[%s2414 + $0x80] sm:$0xff]
    %v2432 = vld [vmem:[%s2414 + $0x88] sm:$0xff]
    %v2433 = vld [vmem:[%s2414 + $0x90] sm:$0xff]
    %v2434 = vld [vmem:[%s2414 + $0x98] sm:$0xff]
    %v2435 = vld [vmem:[%s2414 + $0xa0] sm:$0xff]
    %v2436 = vld [vmem:[%s2414 + $0xa8] sm:$0xff]
    %v2437 = vld [vmem:[%s2414 + $0xb0] sm:$0xff]
    %v2438 = vld [vmem:[%s2414 + $0xb8] sm:$0xff]
    %v2439 = vld [vmem:[%s2414 + $0xc0] sm:$0xff]
    %v2440 = vld [vmem:[%s2414 + $0xc8] sm:$0xff]
    %v2441 = vld [vmem:[%s2414 + $0xd0] sm:$0xff]
    %v2442 = vld [vmem:[%s2414 + $0xd8] sm:$0xff]
    %v2443 = vld [vmem:[%s2414 + $0xe0] sm:$0xff]
    %v2444 = vld [vmem:[%s2414 + $0xe8] sm:$0xff]
    %v2445 = vld [vmem:[%s2414 + $0xf0] sm:$0xff]
    %v2446 = vld [vmem:[%s2414 + $0xf8] sm:$0xff]
    %s2447 = scalar_lea.vmem [#allocation11], 16
    %v2448 = vld [vmem:[%s2447] sm:$0x3]
    %v2450 = vperm.slane %v2448, 0
    %v2451 = vperm.slane %v2448, 1
    %v2486 = vunpack.c.l.b16 %v2415
    %v2487 = vunpack.c.h.b16 %v2415
    %v2488 = vunpack.c.l.b16 %v2416
    %v2489 = vunpack.c.h.b16 %v2416
    %v2490 = vunpack.c.l.b16 %v2417
    %v2491 = vunpack.c.h.b16 %v2417
    %v2492 = vunpack.c.l.b16 %v2418
    %v2493 = vunpack.c.h.b16 %v2418
    %v2494 = vunpack.c.l.b16 %v2419
    %v2495 = vunpack.c.h.b16 %v2419
    %v2496 = vunpack.c.l.b16 %v2420
    %v2497 = vunpack.c.h.b16 %v2420
    %v2498 = vunpack.c.l.b16 %v2421
    %v2499 = vunpack.c.h.b16 %v2421
    %v2500 = vunpack.c.l.b16 %v2422
    %v2501 = vunpack.c.h.b16 %v2422
    %v2502 = vunpack.c.l.b16 %v2423
    %v2503 = vunpack.c.h.b16 %v2423
    %v2504 = vunpack.c.l.b16 %v2424
    %v2505 = vunpack.c.h.b16 %v2424
    %v2506 = vunpack.c.l.b16 %v2425
    %v2507 = vunpack.c.h.b16 %v2425
    %v2508 = vunpack.c.l.b16 %v2426
    %v2509 = vunpack.c.h.b16 %v2426
    %v2510 = vunpack.c.l.b16 %v2427
    %v2511 = vunpack.c.h.b16 %v2427
    %v2512 = vunpack.c.l.b16 %v2428
    %v2513 = vunpack.c.h.b16 %v2428
    %v2514 = vunpack.c.l.b16 %v2429
    %v2515 = vunpack.c.h.b16 %v2429
    %v2516 = vunpack.c.l.b16 %v2430
    %v2517 = vunpack.c.h.b16 %v2430
    %v2518 = vunpack.c.l.b16 %v2431
    %v2519 = vunpack.c.h.b16 %v2431
    %v2520 = vunpack.c.l.b16 %v2432
    %v2521 = vunpack.c.h.b16 %v2432
    %v2522 = vunpack.c.l.b16 %v2433
    %v2523 = vunpack.c.h.b16 %v2433
    %v2524 = vunpack.c.l.b16 %v2434
    %v2525 = vunpack.c.h.b16 %v2434
    %v2526 = vunpack.c.l.b16 %v2435
    %v2527 = vunpack.c.h.b16 %v2435
    %v2528 = vunpack.c.l.b16 %v2436
    %v2529 = vunpack.c.h.b16 %v2436
    %v2530 = vunpack.c.l.b16 %v2437
    %v2531 = vunpack.c.h.b16 %v2437
    %v2532 = vunpack.c.l.b16 %v2438
    %v2533 = vunpack.c.h.b16 %v2438
    %v2534 = vunpack.c.l.b16 %v2439
    %v2535 = vunpack.c.h.b16 %v2439
    %v2536 = vunpack.c.l.b16 %v2440
    %v2537 = vunpack.c.h.b16 %v2440
    %v2538 = vunpack.c.l.b16 %v2441
    %v2539 = vunpack.c.h.b16 %v2441
    %v2540 = vunpack.c.l.b16 %v2442
    %v2541 = vunpack.c.h.b16 %v2442
    %v2542 = vunpack.c.l.b16 %v2443
    %v2543 = vunpack.c.h.b16 %v2443
    %v2544 = vunpack.c.l.b16 %v2444
    %v2545 = vunpack.c.h.b16 %v2444
    %v2546 = vunpack.c.l.b16 %v2445
    %v2547 = vunpack.c.h.b16 %v2445
    %v2548 = vunpack.c.l.b16 %v2446
    %v2549 = vunpack.c.h.b16 %v2446
    %v2550 = vpack.c.b16 %v2488, %v2486
    %v2551 = vpack.c.b16 %v2489, %v2487
    %v2552 = vpack.c.b16 %v2492, %v2490
    %v2553 = vpack.c.b16 %v2493, %v2491
    %v2554 = vpack.c.b16 %v2496, %v2494
    %v2555 = vpack.c.b16 %v2497, %v2495
    %v2556 = vpack.c.b16 %v2500, %v2498
    %v2557 = vpack.c.b16 %v2501, %v2499
    %v2558 = vpack.c.b16 %v2504, %v2502
    %v2559 = vpack.c.b16 %v2505, %v2503
    %v2560 = vpack.c.b16 %v2508, %v2506
    %v2561 = vpack.c.b16 %v2509, %v2507
    %v2562 = vpack.c.b16 %v2512, %v2510
    %v2563 = vpack.c.b16 %v2513, %v2511
    %v2564 = vpack.c.b16 %v2516, %v2514
    %v2565 = vpack.c.b16 %v2517, %v2515
    %v2566 = vpack.c.b16 %v2520, %v2518
    %v2567 = vpack.c.b16 %v2521, %v2519
    %v2568 = vpack.c.b16 %v2524, %v2522
    %v2569 = vpack.c.b16 %v2525, %v2523
    %v2570 = vpack.c.b16 %v2528, %v2526
    %v2571 = vpack.c.b16 %v2529, %v2527
    %v2572 = vpack.c.b16 %v2532, %v2530
    %v2573 = vpack.c.b16 %v2533, %v2531
    %v2574 = vpack.c.b16 %v2536, %v2534
    %v2575 = vpack.c.b16 %v2537, %v2535
    %v2576 = vpack.c.b16 %v2540, %v2538
    %v2577 = vpack.c.b16 %v2541, %v2539
    %v2578 = vpack.c.b16 %v2544, %v2542
    %v2579 = vpack.c.b16 %v2545, %v2543
    %v2580 = vpack.c.b16 %v2548, %v2546
    %v2581 = vpack.c.b16 %v2549, %v2547
    %2614 = vmatpush.bf16.msra.mxu0 %v2564
    %2615 = vmatpush.bf16.msra.mxu0 %v2562
    %2616 = vmatpush.bf16.msra.mxu0 %v2560
    %2617 = vmatpush.bf16.msra.mxu0 %v2558
    %2618 = vmatpush.bf16.msra.mxu0 %v2556
    %2619 = vmatpush.bf16.msra.mxu0 %v2554
    %2620 = vmatpush.bf16.msra.mxu0 %v2552
    %2621 = vmatpush.bf16.msra.mxu0 %v2550
    %2622 = vmatmul.bf16.gmra.mxu0 %v2412
    %v2623 = vpop.f32.mrf.mxu0
    %v2624 = vadd.f32 %v2450, %v2623
    %v2625 = vpop.f32.mrf.mxu0
    %2626 = vdwg.mxu0
    %2627 = vmatpush.bf16.msra.mxu0 %v2580
    %2628 = vmatpush.bf16.msra.mxu0 %v2578
    %2629 = vmatpush.bf16.msra.mxu0 %v2576
    %2630 = vmatpush.bf16.msra.mxu0 %v2574
    %2631 = vmatpush.bf16.msra.mxu0 %v2572
    %2632 = vmatpush.bf16.msra.mxu0 %v2570
    %2633 = vmatpush.bf16.msra.mxu0 %v2568
    %2634 = vmatpush.bf16.msra.mxu0 %v2566
    %2635 = vmatmul.bf16.gmra.mxu0 %v2413
    %v2636 = vpop.f32.mrf.mxu0
    %v2637 = vadd.f32 %v2624, %v2636
    %v2638 = vpop.f32.mrf.mxu0
    %2639 = vdwg.mxu0
    %2640 = vmatpush.bf16.msra.mxu0 %v2565
    %2641 = vmatpush.bf16.msra.mxu0 %v2563
    %2642 = vmatpush.bf16.msra.mxu0 %v2561
    %2643 = vmatpush.bf16.msra.mxu0 %v2559
    %2644 = vmatpush.bf16.msra.mxu0 %v2557
    %2645 = vmatpush.bf16.msra.mxu0 %v2555
    %2646 = vmatpush.bf16.msra.mxu0 %v2553
    %2647 = vmatpush.bf16.msra.mxu0 %v2551
    %2648 = vmatmul.bf16.gmra.mxu0 %v2412
    %v2649 = vpop.f32.mrf.mxu0
    %v2650 = vadd.f32 %v2451, %v2649
    %v2651 = vpop.f32.mrf.mxu0
    %2652 = vdwg.mxu0
    %2653 = vmatpush.bf16.msra.mxu0 %v2581
    %2654 = vmatpush.bf16.msra.mxu0 %v2579
    %2655 = vmatpush.bf16.msra.mxu0 %v2577
    %2656 = vmatpush.bf16.msra.mxu0 %v2575
    %2657 = vmatpush.bf16.msra.mxu0 %v2573
    %2658 = vmatpush.bf16.msra.mxu0 %v2571
    %2659 = vmatpush.bf16.msra.mxu0 %v2569
    %2660 = vmatpush.bf16.msra.mxu0 %v2567
    %2661 = vmatmul.bf16.gmra.mxu0 %v2413
    %v2662 = vpop.f32.mrf.mxu0
    %v2663 = vadd.f32 %v2650, %v2662
    %v2664 = vpop.f32.mrf.mxu0
    %2665 = vdwg.mxu0
    %v2666 = vpack.c.bf16 %v2663, %v2637
    %v2667 = vunpack.c.l.bf16 %v2666
    %v2668 = vunpack.c.h.bf16 %v2666
    %v2669 = vmax.f32 %v2667, 0.0
    %v2670 = vmax.f32 %v2668, 0.0
    %v2671 = vpack.c.bf16 %v2669, %v2669
    %v2672 = vpack.c.bf16 %v2670, %v2670
    %s2673 = scalar_lea.vmem [#allocation9], 2304
    %v2674 = vld [vmem:[%s2673] sm:$0xff]
    %v2675 = vld [vmem:[%s2673 + $0x8] sm:$0xff]
    %v2676 = vld [vmem:[%s2673 + $0x10] sm:$0xff]
    %v2677 = vld [vmem:[%s2673 + $0x18] sm:$0xff]
    %v2678 = vld [vmem:[%s2673 + $0x20] sm:$0xff]
    %v2679 = vld [vmem:[%s2673 + $0x28] sm:$0xff]
    %v2680 = vld [vmem:[%s2673 + $0x30] sm:$0xff]
    %v2681 = vld [vmem:[%s2673 + $0x38] sm:$0xff]
    %v2682 = vld [vmem:[%s2673 + $0x40] sm:$0xff]
    %v2683 = vld [vmem:[%s2673 + $0x48] sm:$0xff]
    %v2684 = vld [vmem:[%s2673 + $0x50] sm:$0xff]
    %v2685 = vld [vmem:[%s2673 + $0x58] sm:$0xff]
    %v2686 = vld [vmem:[%s2673 + $0x60] sm:$0xff]
    %v2687 = vld [vmem:[%s2673 + $0x68] sm:$0xff]
    %v2688 = vld [vmem:[%s2673 + $0x70] sm:$0xff]
    %v2689 = vld [vmem:[%s2673 + $0x78] sm:$0xff]
    %v2690 = vld [vmem:[%s2673 + $0x80] sm:$0xff]
    %v2691 = vld [vmem:[%s2673 + $0x88] sm:$0xff]
    %v2692 = vld [vmem:[%s2673 + $0x90] sm:$0xff]
    %v2693 = vld [vmem:[%s2673 + $0x98] sm:$0xff]
    %v2694 = vld [vmem:[%s2673 + $0xa0] sm:$0xff]
    %v2695 = vld [vmem:[%s2673 + $0xa8] sm:$0xff]
    %v2696 = vld [vmem:[%s2673 + $0xb0] sm:$0xff]
    %v2697 = vld [vmem:[%s2673 + $0xb8] sm:$0xff]
    %v2698 = vld [vmem:[%s2673 + $0xc0] sm:$0xff]
    %v2699 = vld [vmem:[%s2673 + $0xc8] sm:$0xff]
    %v2700 = vld [vmem:[%s2673 + $0xd0] sm:$0xff]
    %v2701 = vld [vmem:[%s2673 + $0xd8] sm:$0xff]
    %v2702 = vld [vmem:[%s2673 + $0xe0] sm:$0xff]
    %v2703 = vld [vmem:[%s2673 + $0xe8] sm:$0xff]
    %v2704 = vld [vmem:[%s2673 + $0xf0] sm:$0xff]
    %v2705 = vld [vmem:[%s2673 + $0xf8] sm:$0xff]
    %s2706 = scalar_lea.vmem [#allocation11], 18
    %v2707 = vld [vmem:[%s2706] sm:$0x3]
    %v2709 = vperm.slane %v2707, 0
    %v2710 = vperm.slane %v2707, 1
    %v2745 = vunpack.c.l.b16 %v2674
    %v2746 = vunpack.c.h.b16 %v2674
    %v2747 = vunpack.c.l.b16 %v2675
    %v2748 = vunpack.c.h.b16 %v2675
    %v2749 = vunpack.c.l.b16 %v2676
    %v2750 = vunpack.c.h.b16 %v2676
    %v2751 = vunpack.c.l.b16 %v2677
    %v2752 = vunpack.c.h.b16 %v2677
    %v2753 = vunpack.c.l.b16 %v2678
    %v2754 = vunpack.c.h.b16 %v2678
    %v2755 = vunpack.c.l.b16 %v2679
    %v2756 = vunpack.c.h.b16 %v2679
    %v2757 = vunpack.c.l.b16 %v2680
    %v2758 = vunpack.c.h.b16 %v2680
    %v2759 = vunpack.c.l.b16 %v2681
    %v2760 = vunpack.c.h.b16 %v2681
    %v2761 = vunpack.c.l.b16 %v2682
    %v2762 = vunpack.c.h.b16 %v2682
    %v2763 = vunpack.c.l.b16 %v2683
    %v2764 = vunpack.c.h.b16 %v2683
    %v2765 = vunpack.c.l.b16 %v2684
    %v2766 = vunpack.c.h.b16 %v2684
    %v2767 = vunpack.c.l.b16 %v2685
    %v2768 = vunpack.c.h.b16 %v2685
    %v2769 = vunpack.c.l.b16 %v2686
    %v2770 = vunpack.c.h.b16 %v2686
    %v2771 = vunpack.c.l.b16 %v2687
    %v2772 = vunpack.c.h.b16 %v2687
    %v2773 = vunpack.c.l.b16 %v2688
    %v2774 = vunpack.c.h.b16 %v2688
    %v2775 = vunpack.c.l.b16 %v2689
    %v2776 = vunpack.c.h.b16 %v2689
    %v2777 = vunpack.c.l.b16 %v2690
    %v2778 = vunpack.c.h.b16 %v2690
    %v2779 = vunpack.c.l.b16 %v2691
    %v2780 = vunpack.c.h.b16 %v2691
    %v2781 = vunpack.c.l.b16 %v2692
    %v2782 = vunpack.c.h.b16 %v2692
    %v2783 = vunpack.c.l.b16 %v2693
    %v2784 = vunpack.c.h.b16 %v2693
    %v2785 = vunpack.c.l.b16 %v2694
    %v2786 = vunpack.c.h.b16 %v2694
    %v2787 = vunpack.c.l.b16 %v2695
    %v2788 = vunpack.c.h.b16 %v2695
    %v2789 = vunpack.c.l.b16 %v2696
    %v2790 = vunpack.c.h.b16 %v2696
    %v2791 = vunpack.c.l.b16 %v2697
    %v2792 = vunpack.c.h.b16 %v2697
    %v2793 = vunpack.c.l.b16 %v2698
    %v2794 = vunpack.c.h.b16 %v2698
    %v2795 = vunpack.c.l.b16 %v2699
    %v2796 = vunpack.c.h.b16 %v2699
    %v2797 = vunpack.c.l.b16 %v2700
    %v2798 = vunpack.c.h.b16 %v2700
    %v2799 = vunpack.c.l.b16 %v2701
    %v2800 = vunpack.c.h.b16 %v2701
    %v2801 = vunpack.c.l.b16 %v2702
    %v2802 = vunpack.c.h.b16 %v2702
    %v2803 = vunpack.c.l.b16 %v2703
    %v2804 = vunpack.c.h.b16 %v2703
    %v2805 = vunpack.c.l.b16 %v2704
    %v2806 = vunpack.c.h.b16 %v2704
    %v2807 = vunpack.c.l.b16 %v2705
    %v2808 = vunpack.c.h.b16 %v2705
    %v2809 = vpack.c.b16 %v2747, %v2745
    %v2810 = vpack.c.b16 %v2748, %v2746
    %v2811 = vpack.c.b16 %v2751, %v2749
    %v2812 = vpack.c.b16 %v2752, %v2750
    %v2813 = vpack.c.b16 %v2755, %v2753
    %v2814 = vpack.c.b16 %v2756, %v2754
    %v2815 = vpack.c.b16 %v2759, %v2757
    %v2816 = vpack.c.b16 %v2760, %v2758
    %v2817 = vpack.c.b16 %v2763, %v2761
    %v2818 = vpack.c.b16 %v2764, %v2762
    %v2819 = vpack.c.b16 %v2767, %v2765
    %v2820 = vpack.c.b16 %v2768, %v2766
    %v2821 = vpack.c.b16 %v2771, %v2769
    %v2822 = vpack.c.b16 %v2772, %v2770
    %v2823 = vpack.c.b16 %v2775, %v2773
    %v2824 = vpack.c.b16 %v2776, %v2774
    %v2825 = vpack.c.b16 %v2779, %v2777
    %v2826 = vpack.c.b16 %v2780, %v2778
    %v2827 = vpack.c.b16 %v2783, %v2781
    %v2828 = vpack.c.b16 %v2784, %v2782
    %v2829 = vpack.c.b16 %v2787, %v2785
    %v2830 = vpack.c.b16 %v2788, %v2786
    %v2831 = vpack.c.b16 %v2791, %v2789
    %v2832 = vpack.c.b16 %v2792, %v2790
    %v2833 = vpack.c.b16 %v2795, %v2793
    %v2834 = vpack.c.b16 %v2796, %v2794
    %v2835 = vpack.c.b16 %v2799, %v2797
    %v2836 = vpack.c.b16 %v2800, %v2798
    %v2837 = vpack.c.b16 %v2803, %v2801
    %v2838 = vpack.c.b16 %v2804, %v2802
    %v2839 = vpack.c.b16 %v2807, %v2805
    %v2840 = vpack.c.b16 %v2808, %v2806
    %2873 = vmatpush.bf16.msra.mxu0 %v2823
    %2874 = vmatpush.bf16.msra.mxu0 %v2821
    %2875 = vmatpush.bf16.msra.mxu0 %v2819
    %2876 = vmatpush.bf16.msra.mxu0 %v2817
    %2877 = vmatpush.bf16.msra.mxu0 %v2815
    %2878 = vmatpush.bf16.msra.mxu0 %v2813
    %2879 = vmatpush.bf16.msra.mxu0 %v2811
    %2880 = vmatpush.bf16.msra.mxu0 %v2809
    %2881 = vmatmul.bf16.gmra.mxu0 %v2671
    %v2882 = vpop.f32.mrf.mxu0
    %v2883 = vadd.f32 %v2709, %v2882
    %v2884 = vpop.f32.mrf.mxu0
    %2885 = vdwg.mxu0
    %2886 = vmatpush.bf16.msra.mxu0 %v2839
    %2887 = vmatpush.bf16.msra.mxu0 %v2837
    %2888 = vmatpush.bf16.msra.mxu0 %v2835
    %2889 = vmatpush.bf16.msra.mxu0 %v2833
    %2890 = vmatpush.bf16.msra.mxu0 %v2831
    %2891 = vmatpush.bf16.msra.mxu0 %v2829
    %2892 = vmatpush.bf16.msra.mxu0 %v2827
    %2893 = vmatpush.bf16.msra.mxu0 %v2825
    %2894 = vmatmul.bf16.gmra.mxu0 %v2672
    %v2895 = vpop.f32.mrf.mxu0
    %v2896 = vadd.f32 %v2883, %v2895
    %v2897 = vpop.f32.mrf.mxu0
    %2898 = vdwg.mxu0
    %2899 = vmatpush.bf16.msra.mxu0 %v2824
    %2900 = vmatpush.bf16.msra.mxu0 %v2822
    %2901 = vmatpush.bf16.msra.mxu0 %v2820
    %2902 = vmatpush.bf16.msra.mxu0 %v2818
    %2903 = vmatpush.bf16.msra.mxu0 %v2816
    %2904 = vmatpush.bf16.msra.mxu0 %v2814
    %2905 = vmatpush.bf16.msra.mxu0 %v2812
    %2906 = vmatpush.bf16.msra.mxu0 %v2810
    %2907 = vmatmul.bf16.gmra.mxu0 %v2671
    %v2908 = vpop.f32.mrf.mxu0
    %v2909 = vadd.f32 %v2710, %v2908
    %v2910 = vpop.f32.mrf.mxu0
    %2911 = vdwg.mxu0
    %2912 = vmatpush.bf16.msra.mxu0 %v2840
    %2913 = vmatpush.bf16.msra.mxu0 %v2838
    %2914 = vmatpush.bf16.msra.mxu0 %v2836
    %2915 = vmatpush.bf16.msra.mxu0 %v2834
    %2916 = vmatpush.bf16.msra.mxu0 %v2832
    %2917 = vmatpush.bf16.msra.mxu0 %v2830
    %2918 = vmatpush.bf16.msra.mxu0 %v2828
    %2919 = vmatpush.bf16.msra.mxu0 %v2826
    %2920 = vmatmul.bf16.gmra.mxu0 %v2672
    %v2921 = vpop.f32.mrf.mxu0
    %v2922 = vadd.f32 %v2909, %v2921
    %v2923 = vpop.f32.mrf.mxu0
    %2924 = vdwg.mxu0
    %v2925 = vmul.f32 %v2896, 0.3
    %v2926 = vmul.f32 %v2922, 0.3
    %v2929 = vrot.slane %v2926, 6
    %v2930 = vsel %vm262, %v2925, %v2929
    %v2932 = vadd.f32 %v2400, %v2930
    %2933 = vst [vmem:[#allocation2] sm:$0xf] %v2932
    %v2934 = vld [vmem:[#allocation2] sm:$0xf]
    %2936 = vst [vmem:[#allocation1] ss:$4 sm:$0xff] %v2934
    %v2937 = vld.sshfl [vmem:[#allocation1] sm:$0xff pattern:$0x73625140]
    %v2938 = vld.sshfl [vmem:[#allocation1 + $0x8] sm:$0xff pattern:$0x73625140]
    %v2941 = vpack.c.bf16 %v2937, %v2937
    %v2942 = vpack.c.bf16 %v2938, %v2938
    %v2943 = vld [vmem:[#allocation12] sm:$0xf]
    %v2944 = vld [vmem:[#allocation12 + $0x4] sm:$0xf]
    %v2945 = vld [vmem:[#allocation12 + $0x8] sm:$0xf]
    %v2946 = vld [vmem:[#allocation12 + $0xc] sm:$0xf]
    %v2947 = vld [vmem:[#allocation12 + $0x10] sm:$0xf]
    %v2948 = vld [vmem:[#allocation12 + $0x14] sm:$0xf]
    %v2949 = vld [vmem:[#allocation12 + $0x18] sm:$0xf]
    %v2950 = vld [vmem:[#allocation12 + $0x1c] sm:$0xf]
    %v2951 = vld [vmem:[#allocation12 + $0x20] sm:$0xf]
    %v2952 = vld [vmem:[#allocation12 + $0x24] sm:$0xf]
    %v2953 = vld [vmem:[#allocation12 + $0x28] sm:$0xf]
    %v2954 = vld [vmem:[#allocation12 + $0x2c] sm:$0xf]
    %v2955 = vld [vmem:[#allocation12 + $0x30] sm:$0xf]
    %v2956 = vld [vmem:[#allocation12 + $0x34] sm:$0xf]
    %v2957 = vld [vmem:[#allocation12 + $0x38] sm:$0xf]
    %v2958 = vld [vmem:[#allocation12 + $0x3c] sm:$0xf]
    %v2959 = vld [vmem:[#allocation12 + $0x40] sm:$0xf]
    %v2960 = vld [vmem:[#allocation12 + $0x44] sm:$0xf]
    %v2961 = vld [vmem:[#allocation12 + $0x48] sm:$0xf]
    %v2962 = vld [vmem:[#allocation12 + $0x4c] sm:$0xf]
    %v2963 = vld [vmem:[#allocation12 + $0x50] sm:$0xf]
    %v2964 = vld [vmem:[#allocation12 + $0x54] sm:$0xf]
    %v2965 = vld [vmem:[#allocation12 + $0x58] sm:$0xf]
    %v2966 = vld [vmem:[#allocation12 + $0x5c] sm:$0xf]
    %v2967 = vld [vmem:[#allocation12 + $0x60] sm:$0xf]
    %v2968 = vld [vmem:[#allocation12 + $0x64] sm:$0xf]
    %v2969 = vld [vmem:[#allocation12 + $0x68] sm:$0xf]
    %v2970 = vld [vmem:[#allocation12 + $0x6c] sm:$0xf]
    %v2971 = vld [vmem:[#allocation12 + $0x70] sm:$0xf]
    %v2972 = vld [vmem:[#allocation12 + $0x74] sm:$0xf]
    %v2973 = vld [vmem:[#allocation12 + $0x78] sm:$0xf]
    %v2974 = vld [vmem:[#allocation12 + $0x7c] sm:$0xf]
    %v2975 = vld [vmem:[#allocation14] sm:$0x1]
    %v2977 = vperm.slane %v2975, 0
    %v3011 = vunpack.c.l.b16 %v2943
    %v3012 = vunpack.c.l.b16 %v2944
    %v3013 = vunpack.c.l.b16 %v2945
    %v3014 = vunpack.c.l.b16 %v2946
    %v3015 = vunpack.c.l.b16 %v2947
    %v3016 = vunpack.c.l.b16 %v2948
    %v3017 = vunpack.c.l.b16 %v2949
    %v3018 = vunpack.c.l.b16 %v2950
    %v3019 = vunpack.c.l.b16 %v2951
    %v3020 = vunpack.c.l.b16 %v2952
    %v3021 = vunpack.c.l.b16 %v2953
    %v3022 = vunpack.c.l.b16 %v2954
    %v3023 = vunpack.c.l.b16 %v2955
    %v3024 = vunpack.c.l.b16 %v2956
    %v3025 = vunpack.c.l.b16 %v2957
    %v3026 = vunpack.c.l.b16 %v2958
    %v3027 = vunpack.c.l.b16 %v2959
    %v3028 = vunpack.c.l.b16 %v2960
    %v3029 = vunpack.c.l.b16 %v2961
    %v3030 = vunpack.c.l.b16 %v2962
    %v3031 = vunpack.c.l.b16 %v2963
    %v3032 = vunpack.c.l.b16 %v2964
    %v3033 = vunpack.c.l.b16 %v2965
    %v3034 = vunpack.c.l.b16 %v2966
    %v3035 = vunpack.c.l.b16 %v2967
    %v3036 = vunpack.c.l.b16 %v2968
    %v3037 = vunpack.c.l.b16 %v2969
    %v3038 = vunpack.c.l.b16 %v2970
    %v3039 = vunpack.c.l.b16 %v2971
    %v3040 = vunpack.c.l.b16 %v2972
    %v3041 = vunpack.c.l.b16 %v2973
    %v3042 = vunpack.c.l.b16 %v2974
    %v3043 = vpack.c.b16 %v3012, %v3011
    %v3044 = vpack.c.b16 %v3014, %v3013
    %v3045 = vpack.c.b16 %v3016, %v3015
    %v3046 = vpack.c.b16 %v3018, %v3017
    %v3047 = vpack.c.b16 %v3020, %v3019
    %v3048 = vpack.c.b16 %v3022, %v3021
    %v3049 = vpack.c.b16 %v3024, %v3023
    %v3050 = vpack.c.b16 %v3026, %v3025
    %v3051 = vpack.c.b16 %v3028, %v3027
    %v3052 = vpack.c.b16 %v3030, %v3029
    %v3053 = vpack.c.b16 %v3032, %v3031
    %v3054 = vpack.c.b16 %v3034, %v3033
    %v3055 = vpack.c.b16 %v3036, %v3035
    %v3056 = vpack.c.b16 %v3038, %v3037
    %v3057 = vpack.c.b16 %v3040, %v3039
    %v3058 = vpack.c.b16 %v3042, %v3041
    %3075 = vmatpush.bf16.msra.mxu0 %v3050
    %3076 = vmatpush.bf16.msra.mxu0 %v3049
    %3077 = vmatpush.bf16.msra.mxu0 %v3048
    %3078 = vmatpush.bf16.msra.mxu0 %v3047
    %3079 = vmatpush.bf16.msra.mxu0 %v3046
    %3080 = vmatpush.bf16.msra.mxu0 %v3045
    %3081 = vmatpush.bf16.msra.mxu0 %v3044
    %3082 = vmatpush.bf16.msra.mxu0 %v3043
    %3083 = vmatmul.bf16.gmra.mxu0 %v2941
    %v3084 = vpop.f32.mrf.mxu0
    %v3085 = vadd.f32 %v2977, %v3084
    %v3086 = vpop.f32.mrf.mxu0
    %3087 = vdwg.mxu0
    %3088 = vmatpush.bf16.msra.mxu0 %v3058
    %3089 = vmatpush.bf16.msra.mxu0 %v3057
    %3090 = vmatpush.bf16.msra.mxu0 %v3056
    %3091 = vmatpush.bf16.msra.mxu0 %v3055
    %3092 = vmatpush.bf16.msra.mxu0 %v3054
    %3093 = vmatpush.bf16.msra.mxu0 %v3053
    %3094 = vmatpush.bf16.msra.mxu0 %v3052
    %3095 = vmatpush.bf16.msra.mxu0 %v3051
    %3096 = vmatmul.bf16.gmra.mxu0 %v2942
    %v3097 = vpop.f32.mrf.mxu0
    %v3098 = vadd.f32 %v3085, %v3097
    %v3099 = vpop.f32.mrf.mxu0
    %3100 = vdwg.mxu0
    %v3101 = vtanh.pop %v3098
    %3102 = vst [vmem:[#allocation15] sm:$0x3] %v3101
    // Predicated region
    $region58: #{tpu_custom_call.1} parent=1 // pred_check
      _
    $region59: #{tpu_custom_call.1} parent=1 // pred_check_branch
      %3104 = sbr.rel (0) target = $region61
    $region60: #{tpu_custom_call.1} parent=1 // pred_region
      %3106 = vsyncadd [#allocation5], 0
      %s3108 = sshll.u32 [#allocation15], 4
      %s3109 = int_to_ptr.vmem [resolvable:$true] %s3108
      %s3110 = sshll.u32 %s7, 4
      %s3111 = int_to_ptr.hbm [resolvable:$true] %s3110
      %3113 = dma.vmem_to_hbm [thread:$0]  %s3109, 32, %s3111, [#allocation5]
    $region61: #{tpu_custom_call.1} parent=1 // pred_fallthru
      _
    // Predicated region
    $region62: #{tpu_custom_call.1} parent=1 // pred_check
      _
    $region63: #{tpu_custom_call.1} parent=1 // pred_check_branch
      %3115 = sbr.rel (0) target = $region65
    $region64: #{tpu_custom_call.1} parent=1 // pred_region
      %3117 = dma.done [#allocation5], 32
    $region65: #{tpu_custom_call.1} parent=1 // pred_fallthru
      _
    %3118 = vsyncpa [#allocation4], 1
    %3119 = vsyncpa [#allocation7], 1
    %3120 = vsyncpa [#allocation10], 1
    %3121 = vsyncpa [#allocation13], 1
    %3122 = vsyncpa [#allocation5], 1

</llo_original>
